<compile_context>
chip_gen: v7x
topology: tpu7x:2x2x1
jax: 0.10.0
libtpu: 0.0.40
codegen_flags: <defaults>
</compile_context>

<pallas_src>
import functools

import jax
import jax.numpy as jnp
from jax.experimental import pallas as pl
from jax.experimental.pallas import tpu as pltpu

# in/out feature sizes of the 15 Linear layers, in forward order.
LAYER_DIMS = [
    (301, 150), (150, 80), (80, 40), (40, 20), (20, 10), (10, 5), (5, 2),        # enc1..enc7
    (2, 5), (5, 10), (10, 20), (20, 40), (40, 80), (80, 120), (120, 150), (150, 301),  # dec1..dec8
]
# activation per layer: 'relu', 'sigmoid', or None (identity)
LAYER_ACT = [
    "relu", "relu", "relu", "relu", "relu", "sigmoid", None,          # enc1..enc7
    "relu", "relu", "relu", "relu", "relu", "relu", "sigmoid", None,  # dec1..dec8
]
Z_LAYER = 6          # output of enc7 (pre-decoder latent) is returned as z
N_LAYERS = len(LAYER_DIMS)

F_IN = LAYER_DIMS[0][0]       # 301
F_OUT = LAYER_DIMS[-1][1]     # 301
Z_DIM = LAYER_DIMS[Z_LAYER][1]  # 2


def _pad_up(n, m):
    return ((n + m - 1) // m) * m


# Lane-padded layer dims (multiples of 128).
PADDED_DIMS = [(_pad_up(i, 128), _pad_up(o, 128)) for (i, o) in LAYER_DIMS]
IN_PAD0 = PADDED_DIMS[0][0]          # 384  (padded input width)
Z_PAD = PADDED_DIMS[Z_LAYER][1]      # 128  (padded latent width)
MAX_OUT = max(o for (_, o) in PADDED_DIMS)  # 384

# Row offsets of each (padded) weight inside the single packed weight buffer.
# All offsets are multiples of 128 -> in-kernel slices are aligned sub-views.
_ROW_OFFSETS = []
_r = 0
for (_ip, _op) in PADDED_DIMS:
    _ROW_OFFSETS.append(_r)
    _r += _ip
W_ROWS_TOTAL = _r                    # 2432 rows x 384 lanes (bf16: ~1.8 MiB)
B_ROWS = _pad_up(N_LAYERS, 8)        # 16 rows x 384 lanes of packed f32 biases

SMALL_BATCH = 256                    # below this: single grid step


def _autoencoder_kernel(x_ref, w_ref, b_ref, out_ref, z_ref):
    """x_ref: (bb, 301) f32; w_ref: (2432, 384) bf16; b_ref: (16, 384) f32.

    out_ref: (bb, 301) reconstruction; z_ref: (bb, 128) padded latent.
    Padded weight rows/cols and bias lanes are exactly zero, so padded
    activation lanes (relu(0)=0, sigmoid(0)=0.5) never leak into real lanes.
    """
    x = x_ref[...]                                           # (bb, 301) f32
    # Pad 301 -> 384 lanes in VMEM (zeros) so every matmul is lane-dense.
    pad = jnp.zeros((x.shape[0], IN_PAD0 - F_IN), x.dtype)
    h = jnp.concatenate([x, pad], axis=-1)                   # (bb, 384) f32

    for li, ((in_pad, out_pad), act) in enumerate(zip(PADDED_DIMS, LAYER_ACT)):
        r0 = _ROW_OFFSETS[li]
        # Static, 128-aligned slices of the packed buffers (sub-views).
        w = w_ref[r0:r0 + in_pad, :out_pad]                  # (in_pad, out_pad) bf16
        b = b_ref[li:li + 1, :out_pad]                       # (1, out_pad) f32
        # bf16 MXU matmul with f32 accumulation; bias/activation in f32.
        h = jnp.dot(h.astype(jnp.bfloat16), w,
                    preferred_element_type=jnp.float32) + b
        if act == "relu":
            h = jnp.maximum(h, 0.0)
        elif act == "sigmoid":
            h = jax.nn.sigmoid(h)
        if li == Z_LAYER:
            z_ref[...] = h.astype(z_ref.dtype)               # (bb, 128)

    out_ref[...] = h[:, :F_OUT].astype(out_ref.dtype)        # (bb, 301)


def init_params(key):
    """PyTorch nn.Linear default init: U[-1/sqrt(in), 1/sqrt(in)].

    Returns a flat list [w0, b0, w1, b1, ...] with w stored as (in, out)
    and b as (out,), at the TRUE (unpadded) sizes, in float32.
    """
    params = []
    for (fan_in, fan_out) in LAYER_DIMS:
        key, kw, kb = jax.random.split(key, 3)
        bound = 1.0 / jnp.sqrt(jnp.float32(fan_in))
        w = jax.random.uniform(kw, (fan_in, fan_out), jnp.float32, -bound, bound)
        b = jax.random.uniform(kb, (fan_out,), jnp.float32, -bound, bound)
        params += [w, b]
    return params


def pack_params(params):
    """Pack the 15 weights (bf16) / biases (f32) into two lane-padded buffers.

    Padded rows/cols/lanes are exactly zero so padded activations can never
    contaminate real lanes of the next layer.
    """
    w_buf = jnp.zeros((W_ROWS_TOTAL, MAX_OUT), jnp.bfloat16)
    b_buf = jnp.zeros((B_ROWS, MAX_OUT), jnp.float32)
    for li, (fan_in, fan_out) in enumerate(LAYER_DIMS):
        r0 = _ROW_OFFSETS[li]
        w = params[2 * li].astype(jnp.bfloat16)
        b = params[2 * li + 1].astype(jnp.float32)
        w_buf = w_buf.at[r0:r0 + fan_in, :fan_out].set(w)
        b_buf = b_buf.at[li, :fan_out].set(b)
    return w_buf, b_buf


@functools.partial(jax.jit, static_argnames=("block_b",))
def _net_forward_padded(x_pad, w_buf, b_buf, block_b):
    """x_pad: (B_pad, 301) f32 with B_pad % block_b == 0."""
    b_padded = x_pad.shape[0]
    grid = (b_padded // block_b,)

    out_shape = (
        jax.ShapeDtypeStruct((b_padded, F_OUT), jnp.float32),   # reconstruction
        jax.ShapeDtypeStruct((b_padded, Z_PAD), jnp.float32),   # latent z (padded)
    )

    return pl.pallas_call(
        _autoencoder_kernel,
        out_shape=out_shape,
        grid_spec=pltpu.PrefetchScalarGridSpec(
            num_scalar_prefetch=0,
            grid=grid,
            in_specs=[
                # Full 301-lane last dim (equals array dim -> legal block).
                pl.BlockSpec((block_b, F_IN), lambda i: (i, 0)),
                # Packed params: constant index_map -> DMA'd once, VMEM resident.
                pl.BlockSpec((W_ROWS_TOTAL, MAX_OUT), lambda i: (0, 0)),
                pl.BlockSpec((B_ROWS, MAX_OUT), lambda i: (0, 0)),
            ],
            out_specs=[
                pl.BlockSpec((block_b, F_OUT), lambda i: (i, 0)),
                pl.BlockSpec((block_b, Z_PAD), lambda i: (i, 0)),
            ],
        ),
        compiler_params=pltpu.CompilerParams(
            dimension_semantics=("parallel",),
            vmem_limit_bytes=48 * 1024 * 1024,
        ),
    )(x_pad, w_buf, b_buf)


def net_forward(x, w_buf, b_buf, block_b=512):
    """Forward pass. x: (B, 301) f32.  Returns (recon (B,301), z (B,2))."""
    B, f_in = x.shape
    assert f_in == F_IN
    block_b = _pad_up(int(block_b), 8)

    if B <= SMALL_BATCH:
        # Single grid step for small batches.
        bb = _pad_up(B, 8)
    else:
        # Cap the tile so the grid has >= 2 steps (both v7x TensorCores busy).
        half = _pad_up((B + 1) // 2, 8)
        bb = min(block_b, half)
    b_padded = _pad_up(B, bb)

    x = x.astype(jnp.float32)
    if b_padded != B:
        # Only batch rows are padded (no lane-pad copy pass in the wrapper).
        x_in = jnp.zeros((b_padded, F_IN), jnp.float32).at[:B].set(x)
    else:
        x_in = x

    out, z_pad = _net_forward_padded(x_in, w_buf, b_buf, bb)
    if b_padded != B:
        out = out[:B]
    return out, z_pad[:B, :Z_DIM]


def net_forward_ref(x, params):
    """Pure-JAX reference mirroring the kernel's bf16-operand / f32-accum math."""
    h = x.astype(jnp.float32)
    z = None
    for li, act in enumerate(LAYER_ACT):
        w, b = params[2 * li], params[2 * li + 1]
        h = jnp.dot(h.astype(jnp.bfloat16), w.astype(jnp.bfloat16),
                    preferred_element_type=jnp.float32) + b
        if act == "relu":
            h = jnp.maximum(h, 0.0)
        elif act == "sigmoid":
            h = jax.nn.sigmoid(h)
        if li == Z_LAYER:
            z = h
    return h, z


if __name__ == "__main__":
    key = jax.random.PRNGKey(0)
    key, kx1, kx2 = jax.random.split(key, 3)
    params = init_params(key)
    w_buf, b_buf = pack_params(params)

    # 1) Small batch: single-step path (also exercises batch padding 200->208).
    B1 = 200
    x1 = jax.random.normal(kx1, (B1, F_IN), jnp.float32)
    out1, z1 = net_forward(x1, w_buf, b_buf)
    out1, z1 = jax.block_until_ready((out1, z1))
    ref_out1, ref_z1 = net_forward_ref(x1, params)
    assert out1.shape == (B1, 301) and z1.shape == (B1, 2)
    assert jnp.allclose(out1, ref_out1, atol=1e-2, rtol=1e-2)
    assert jnp.allclose(z1, ref_z1, atol=1e-2, rtol=1e-2)

    # 2) Larger batch: multi-step grid (>= 2 steps so both v7x TCs get work).
    B2 = 600
    x2 = jax.random.normal(kx2, (B2, F_IN), jnp.float32)
    out2, z2 = net_forward(x2, w_buf, b_buf, block_b=512)
    out2, z2 = jax.block_until_ready((out2, z2))
    ref_out2, ref_z2 = net_forward_ref(x2, params)
    assert out2.shape == (B2, 301) and z2.shape == (B2, 2)
    assert jnp.allclose(out2, ref_out2, atol=1e-2, rtol=1e-2)
    assert jnp.allclose(z2, ref_z2, atol=1e-2, rtol=1e-2)

    print("KERNEL_OK")
</pallas_src>

<mosaic_0001>
module attributes {stable_mosaic.version = 11 : i64} {
  func.func @_autoencoder_kernel(%arg0: i32, %arg1: memref<200x301xf32, #tpu.memory_space<vmem>>, %arg2: memref<2432x384xbf16, #tpu.memory_space<vmem>>, %arg3: memref<16x384xf32, #tpu.memory_space<vmem>>, %arg4: memref<200x301xf32, #tpu.memory_space<vmem>>, %arg5: memref<200x128xf32, #tpu.memory_space<vmem>>) attributes {dimension_semantics = [#tpu.dimension_semantics<parallel>], iteration_bounds = array<i64: 1>, scalar_prefetch = 0 : i64, scratch_operands = 0 : i64, tpu.core_type = #tpu.core_type<tc>, window_params = [{transform_indices = @transform_0, window_bounds = array<i64: 200, 301>}, {pipeline_mode = #tpu.pipeline_mode<synchronous>, transform_indices = @transform_1, window_bounds = array<i64: 2432, 384>}, {pipeline_mode = #tpu.pipeline_mode<synchronous>, transform_indices = @transform_2, window_bounds = array<i64: 16, 384>}, {transform_indices = @transform_3, window_bounds = array<i64: 200, 301>}, {transform_indices = @transform_4, window_bounds = array<i64: 200, 128>}]} {
    %c0 = arith.constant 0 : index
    %c0_0 = arith.constant 0 : index
    %0 = vector.load %arg1[%c0, %c0_0] : memref<200x301xf32, #tpu.memory_space<vmem>>, vector<200x301xf32>
    %cst = arith.constant 0.000000e+00 : f32
    %1 = vector.broadcast %cst : f32 to vector<200x83xf32>
    %2 = tpu.concatenate %0, %1 in 1 : vector<200x301xf32>, vector<200x83xf32> -> vector<200x384xf32>
    %c0_1 = arith.constant 0 : index
    %c0_2 = arith.constant 0 : index
    %3 = vector.load %arg2[%c0_1, %c0_2] : memref<2432x384xbf16, #tpu.memory_space<vmem>>, vector<384x256xbf16>
    %c0_3 = arith.constant 0 : index
    %c0_4 = arith.constant 0 : index
    %4 = vector.load %arg3[%c0_3, %c0_4] : memref<16x384xf32, #tpu.memory_space<vmem>>, vector<1x256xf32>
    %5 = arith.truncf %2 : vector<200x384xf32> to vector<200x384xbf16>
    %cst_5 = arith.constant dense<0.000000e+00> : vector<200x256xf32>
    %6 = tpu.matmul %5, %3, %cst_5 {dimension_numbers = #tpu.dot_dimension_numbers<[1], [0], [0], [1], [0, 0, 1, 1], [], []>} : vector<200x384xbf16>, vector<384x256xbf16>, vector<200x256xf32> -> vector<200x256xf32>
    %7 = vector.broadcast %4 : vector<1x256xf32> to vector<200x256xf32>
    %8 = arith.addf %6, %7 : vector<200x256xf32>
    %cst_6 = arith.constant 0.000000e+00 : f32
    %9 = vector.broadcast %cst_6 : f32 to vector<200x256xf32>
    %10 = arith.maximumf %8, %9 : vector<200x256xf32>
    %c384 = arith.constant 384 : index
    %c0_7 = arith.constant 0 : index
    %11 = vector.load %arg2[%c384, %c0_7] : memref<2432x384xbf16, #tpu.memory_space<vmem>>, vector<256x128xbf16>
    %c1 = arith.constant 1 : index
    %c0_8 = arith.constant 0 : index
    %12 = vector.load %arg3[%c1, %c0_8] : memref<16x384xf32, #tpu.memory_space<vmem>>, vector<1x128xf32>
    %13 = arith.truncf %10 : vector<200x256xf32> to vector<200x256xbf16>
    %cst_9 = arith.constant dense<0.000000e+00> : vector<200x128xf32>
    %14 = tpu.matmul %13, %11, %cst_9 {dimension_numbers = #tpu.dot_dimension_numbers<[1], [0], [0], [1], [0, 0, 1, 1], [], []>} : vector<200x256xbf16>, vector<256x128xbf16>, vector<200x128xf32> -> vector<200x128xf32>
    %15 = vector.broadcast %12 : vector<1x128xf32> to vector<200x128xf32>
    %16 = arith.addf %14, %15 : vector<200x128xf32>
    %cst_10 = arith.constant 0.000000e+00 : f32
    %17 = vector.broadcast %cst_10 : f32 to vector<200x128xf32>
    %18 = arith.maximumf %16, %17 : vector<200x128xf32>
    %c640 = arith.constant 640 : index
    %c0_11 = arith.constant 0 : index
    %19 = vector.load %arg2[%c640, %c0_11] : memref<2432x384xbf16, #tpu.memory_space<vmem>>, vector<128x128xbf16>
    %c2 = arith.constant 2 : index
    %c0_12 = arith.constant 0 : index
    %20 = vector.load %arg3[%c2, %c0_12] : memref<16x384xf32, #tpu.memory_space<vmem>>, vector<1x128xf32>
    %21 = arith.truncf %18 : vector<200x128xf32> to vector<200x128xbf16>
    %cst_13 = arith.constant dense<0.000000e+00> : vector<200x128xf32>
    %22 = tpu.matmul %21, %19, %cst_13 {dimension_numbers = #tpu.dot_dimension_numbers<[1], [0], [0], [1], [0, 0, 1, 1], [], []>} : vector<200x128xbf16>, vector<128x128xbf16>, vector<200x128xf32> -> vector<200x128xf32>
    %23 = vector.broadcast %20 : vector<1x128xf32> to vector<200x128xf32>
    %24 = arith.addf %22, %23 : vector<200x128xf32>
    %cst_14 = arith.constant 0.000000e+00 : f32
    %25 = vector.broadcast %cst_14 : f32 to vector<200x128xf32>
    %26 = arith.maximumf %24, %25 : vector<200x128xf32>
    %c768 = arith.constant 768 : index
    %c0_15 = arith.constant 0 : index
    %27 = vector.load %arg2[%c768, %c0_15] : memref<2432x384xbf16, #tpu.memory_space<vmem>>, vector<128x128xbf16>
    %c3 = arith.constant 3 : index
    %c0_16 = arith.constant 0 : index
    %28 = vector.load %arg3[%c3, %c0_16] : memref<16x384xf32, #tpu.memory_space<vmem>>, vector<1x128xf32>
    %29 = arith.truncf %26 : vector<200x128xf32> to vector<200x128xbf16>
    %cst_17 = arith.constant dense<0.000000e+00> : vector<200x128xf32>
    %30 = tpu.matmul %29, %27, %cst_17 {dimension_numbers = #tpu.dot_dimension_numbers<[1], [0], [0], [1], [0, 0, 1, 1], [], []>} : vector<200x128xbf16>, vector<128x128xbf16>, vector<200x128xf32> -> vector<200x128xf32>
    %31 = vector.broadcast %28 : vector<1x128xf32> to vector<200x128xf32>
    %32 = arith.addf %30, %31 : vector<200x128xf32>
    %cst_18 = arith.constant 0.000000e+00 : f32
    %33 = vector.broadcast %cst_18 : f32 to vector<200x128xf32>
    %34 = arith.maximumf %32, %33 : vector<200x128xf32>
    %c896 = arith.constant 896 : index
    %c0_19 = arith.constant 0 : index
    %35 = vector.load %arg2[%c896, %c0_19] : memref<2432x384xbf16, #tpu.memory_space<vmem>>, vector<128x128xbf16>
    %c4 = arith.constant 4 : index
    %c0_20 = arith.constant 0 : index
    %36 = vector.load %arg3[%c4, %c0_20] : memref<16x384xf32, #tpu.memory_space<vmem>>, vector<1x128xf32>
    %37 = arith.truncf %34 : vector<200x128xf32> to vector<200x128xbf16>
    %cst_21 = arith.constant dense<0.000000e+00> : vector<200x128xf32>
    %38 = tpu.matmul %37, %35, %cst_21 {dimension_numbers = #tpu.dot_dimension_numbers<[1], [0], [0], [1], [0, 0, 1, 1], [], []>} : vector<200x128xbf16>, vector<128x128xbf16>, vector<200x128xf32> -> vector<200x128xf32>
    %39 = vector.broadcast %36 : vector<1x128xf32> to vector<200x128xf32>
    %40 = arith.addf %38, %39 : vector<200x128xf32>
    %cst_22 = arith.constant 0.000000e+00 : f32
    %41 = vector.broadcast %cst_22 : f32 to vector<200x128xf32>
    %42 = arith.maximumf %40, %41 : vector<200x128xf32>
    %c1024 = arith.constant 1024 : index
    %c0_23 = arith.constant 0 : index
    %43 = vector.load %arg2[%c1024, %c0_23] : memref<2432x384xbf16, #tpu.memory_space<vmem>>, vector<128x128xbf16>
    %c5 = arith.constant 5 : index
    %c0_24 = arith.constant 0 : index
    %44 = vector.load %arg3[%c5, %c0_24] : memref<16x384xf32, #tpu.memory_space<vmem>>, vector<1x128xf32>
    %45 = arith.truncf %42 : vector<200x128xf32> to vector<200x128xbf16>
    %cst_25 = arith.constant dense<0.000000e+00> : vector<200x128xf32>
    %46 = tpu.matmul %45, %43, %cst_25 {dimension_numbers = #tpu.dot_dimension_numbers<[1], [0], [0], [1], [0, 0, 1, 1], [], []>} : vector<200x128xbf16>, vector<128x128xbf16>, vector<200x128xf32> -> vector<200x128xf32>
    %47 = vector.broadcast %44 : vector<1x128xf32> to vector<200x128xf32>
    %48 = arith.addf %46, %47 : vector<200x128xf32>
    %49 = arith.negf %48 : vector<200x128xf32>
    %50 = math.exp %49 : vector<200x128xf32>
    %cst_26 = arith.constant 1.000000e+00 : f32
    %51 = vector.broadcast %cst_26 : f32 to vector<200x128xf32>
    %52 = arith.addf %51, %50 : vector<200x128xf32>
    %53 = arith.divf %51, %52 : vector<200x128xf32>
    %c1152 = arith.constant 1152 : index
    %c0_27 = arith.constant 0 : index
    %54 = vector.load %arg2[%c1152, %c0_27] : memref<2432x384xbf16, #tpu.memory_space<vmem>>, vector<128x128xbf16>
    %c6 = arith.constant 6 : index
    %c0_28 = arith.constant 0 : index
    %55 = vector.load %arg3[%c6, %c0_28] : memref<16x384xf32, #tpu.memory_space<vmem>>, vector<1x128xf32>
    %56 = arith.truncf %53 : vector<200x128xf32> to vector<200x128xbf16>
    %cst_29 = arith.constant dense<0.000000e+00> : vector<200x128xf32>
    %57 = tpu.matmul %56, %54, %cst_29 {dimension_numbers = #tpu.dot_dimension_numbers<[1], [0], [0], [1], [0, 0, 1, 1], [], []>} : vector<200x128xbf16>, vector<128x128xbf16>, vector<200x128xf32> -> vector<200x128xf32>
    %58 = vector.broadcast %55 : vector<1x128xf32> to vector<200x128xf32>
    %59 = arith.addf %57, %58 : vector<200x128xf32>
    %c0_30 = arith.constant 0 : index
    %c0_31 = arith.constant 0 : index
    %60 = vector.load %arg5[%c0_30, %c0_31] : memref<200x128xf32, #tpu.memory_space<vmem>>, vector<200x128xf32>
    tpu.vector_store %arg5[%c0_30, %c0_31], %59 {strides = array<i32>} : memref<200x128xf32, #tpu.memory_space<vmem>>, vector<200x128xf32>,
    %c1280 = arith.constant 1280 : index
    %c0_32 = arith.constant 0 : index
    %61 = vector.load %arg2[%c1280, %c0_32] : memref<2432x384xbf16, #tpu.memory_space<vmem>>, vector<128x128xbf16>
    %c7 = arith.constant 7 : index
    %c0_33 = arith.constant 0 : index
    %62 = vector.load %arg3[%c7, %c0_33] : memref<16x384xf32, #tpu.memory_space<vmem>>, vector<1x128xf32>
    %63 = arith.truncf %59 : vector<200x128xf32> to vector<200x128xbf16>
    %cst_34 = arith.constant dense<0.000000e+00> : vector<200x128xf32>
    %64 = tpu.matmul %63, %61, %cst_34 {dimension_numbers = #tpu.dot_dimension_numbers<[1], [0], [0], [1], [0, 0, 1, 1], [], []>} : vector<200x128xbf16>, vector<128x128xbf16>, vector<200x128xf32> -> vector<200x128xf32>
    %65 = vector.broadcast %62 : vector<1x128xf32> to vector<200x128xf32>
    %66 = arith.addf %64, %65 : vector<200x128xf32>
    %cst_35 = arith.constant 0.000000e+00 : f32
    %67 = vector.broadcast %cst_35 : f32 to vector<200x128xf32>
    %68 = arith.maximumf %66, %67 : vector<200x128xf32>
    %c1408 = arith.constant 1408 : index
    %c0_36 = arith.constant 0 : index
    %69 = vector.load %arg2[%c1408, %c0_36] : memref<2432x384xbf16, #tpu.memory_space<vmem>>, vector<128x128xbf16>
    %c8 = arith.constant 8 : index
    %c0_37 = arith.constant 0 : index
    %70 = vector.load %arg3[%c8, %c0_37] : memref<16x384xf32, #tpu.memory_space<vmem>>, vector<1x128xf32>
    %71 = arith.truncf %68 : vector<200x128xf32> to vector<200x128xbf16>
    %cst_38 = arith.constant dense<0.000000e+00> : vector<200x128xf32>
    %72 = tpu.matmul %71, %69, %cst_38 {dimension_numbers = #tpu.dot_dimension_numbers<[1], [0], [0], [1], [0, 0, 1, 1], [], []>} : vector<200x128xbf16>, vector<128x128xbf16>, vector<200x128xf32> -> vector<200x128xf32>
    %73 = vector.broadcast %70 : vector<1x128xf32> to vector<200x128xf32>
    %74 = arith.addf %72, %73 : vector<200x128xf32>
    %cst_39 = arith.constant 0.000000e+00 : f32
    %75 = vector.broadcast %cst_39 : f32 to vector<200x128xf32>
    %76 = arith.maximumf %74, %75 : vector<200x128xf32>
    %c1536 = arith.constant 1536 : index
    %c0_40 = arith.constant 0 : index
    %77 = vector.load %arg2[%c1536, %c0_40] : memref<2432x384xbf16, #tpu.memory_space<vmem>>, vector<128x128xbf16>
    %c9 = arith.constant 9 : index
    %c0_41 = arith.constant 0 : index
    %78 = vector.load %arg3[%c9, %c0_41] : memref<16x384xf32, #tpu.memory_space<vmem>>, vector<1x128xf32>
    %79 = arith.truncf %76 : vector<200x128xf32> to vector<200x128xbf16>
    %cst_42 = arith.constant dense<0.000000e+00> : vector<200x128xf32>
    %80 = tpu.matmul %79, %77, %cst_42 {dimension_numbers = #tpu.dot_dimension_numbers<[1], [0], [0], [1], [0, 0, 1, 1], [], []>} : vector<200x128xbf16>, vector<128x128xbf16>, vector<200x128xf32> -> vector<200x128xf32>
    %81 = vector.broadcast %78 : vector<1x128xf32> to vector<200x128xf32>
    %82 = arith.addf %80, %81 : vector<200x128xf32>
    %cst_43 = arith.constant 0.000000e+00 : f32
    %83 = vector.broadcast %cst_43 : f32 to vector<200x128xf32>
    %84 = arith.maximumf %82, %83 : vector<200x128xf32>
    %c1664 = arith.constant 1664 : index
    %c0_44 = arith.constant 0 : index
    %85 = vector.load %arg2[%c1664, %c0_44] : memref<2432x384xbf16, #tpu.memory_space<vmem>>, vector<128x128xbf16>
    %c10 = arith.constant 10 : index
    %c0_45 = arith.constant 0 : index
    %86 = vector.load %arg3[%c10, %c0_45] : memref<16x384xf32, #tpu.memory_space<vmem>>, vector<1x128xf32>
    %87 = arith.truncf %84 : vector<200x128xf32> to vector<200x128xbf16>
    %cst_46 = arith.constant dense<0.000000e+00> : vector<200x128xf32>
    %88 = tpu.matmul %87, %85, %cst_46 {dimension_numbers = #tpu.dot_dimension_numbers<[1], [0], [0], [1], [0, 0, 1, 1], [], []>} : vector<200x128xbf16>, vector<128x128xbf16>, vector<200x128xf32> -> vector<200x128xf32>
    %89 = vector.broadcast %86 : vector<1x128xf32> to vector<200x128xf32>
    %90 = arith.addf %88, %89 : vector<200x128xf32>
    %cst_47 = arith.constant 0.000000e+00 : f32
    %91 = vector.broadcast %cst_47 : f32 to vector<200x128xf32>
    %92 = arith.maximumf %90, %91 : vector<200x128xf32>
    %c1792 = arith.constant 1792 : index
    %c0_48 = arith.constant 0 : index
    %93 = vector.load %arg2[%c1792, %c0_48] : memref<2432x384xbf16, #tpu.memory_space<vmem>>, vector<128x128xbf16>
    %c11 = arith.constant 11 : index
    %c0_49 = arith.constant 0 : index
    %94 = vector.load %arg3[%c11, %c0_49] : memref<16x384xf32, #tpu.memory_space<vmem>>, vector<1x128xf32>
    %95 = arith.truncf %92 : vector<200x128xf32> to vector<200x128xbf16>
    %cst_50 = arith.constant dense<0.000000e+00> : vector<200x128xf32>
    %96 = tpu.matmul %95, %93, %cst_50 {dimension_numbers = #tpu.dot_dimension_numbers<[1], [0], [0], [1], [0, 0, 1, 1], [], []>} : vector<200x128xbf16>, vector<128x128xbf16>, vector<200x128xf32> -> vector<200x128xf32>
    %97 = vector.broadcast %94 : vector<1x128xf32> to vector<200x128xf32>
    %98 = arith.addf %96, %97 : vector<200x128xf32>
    %cst_51 = arith.constant 0.000000e+00 : f32
    %99 = vector.broadcast %cst_51 : f32 to vector<200x128xf32>
    %100 = arith.maximumf %98, %99 : vector<200x128xf32>
    %c1920 = arith.constant 1920 : index
    %c0_52 = arith.constant 0 : index
    %101 = vector.load %arg2[%c1920, %c0_52] : memref<2432x384xbf16, #tpu.memory_space<vmem>>, vector<128x128xbf16>
    %c12 = arith.constant 12 : index
    %c0_53 = arith.constant 0 : index
    %102 = vector.load %arg3[%c12, %c0_53] : memref<16x384xf32, #tpu.memory_space<vmem>>, vector<1x128xf32>
    %103 = arith.truncf %100 : vector<200x128xf32> to vector<200x128xbf16>
    %cst_54 = arith.constant dense<0.000000e+00> : vector<200x128xf32>
    %104 = tpu.matmul %103, %101, %cst_54 {dimension_numbers = #tpu.dot_dimension_numbers<[1], [0], [0], [1], [0, 0, 1, 1], [], []>} : vector<200x128xbf16>, vector<128x128xbf16>, vector<200x128xf32> -> vector<200x128xf32>
    %105 = vector.broadcast %102 : vector<1x128xf32> to vector<200x128xf32>
    %106 = arith.addf %104, %105 : vector<200x128xf32>
    %cst_55 = arith.constant 0.000000e+00 : f32
    %107 = vector.broadcast %cst_55 : f32 to vector<200x128xf32>
    %108 = arith.maximumf %106, %107 : vector<200x128xf32>
    %c2048 = arith.constant 2048 : index
    %c0_56 = arith.constant 0 : index
    %109 = vector.load %arg2[%c2048, %c0_56] : memref<2432x384xbf16, #tpu.memory_space<vmem>>, vector<128x256xbf16>
    %c13 = arith.constant 13 : index
    %c0_57 = arith.constant 0 : index
    %110 = vector.load %arg3[%c13, %c0_57] : memref<16x384xf32, #tpu.memory_space<vmem>>, vector<1x256xf32>
    %111 = arith.truncf %108 : vector<200x128xf32> to vector<200x128xbf16>
    %cst_58 = arith.constant dense<0.000000e+00> : vector<200x256xf32>
    %112 = tpu.matmul %111, %109, %cst_58 {dimension_numbers = #tpu.dot_dimension_numbers<[1], [0], [0], [1], [0, 0, 1, 1], [], []>} : vector<200x128xbf16>, vector<128x256xbf16>, vector<200x256xf32> -> vector<200x256xf32>
    %113 = vector.broadcast %110 : vector<1x256xf32> to vector<200x256xf32>
    %114 = arith.addf %112, %113 : vector<200x256xf32>
    %115 = arith.negf %114 : vector<200x256xf32>
    %116 = math.exp %115 : vector<200x256xf32>
    %cst_59 = arith.constant 1.000000e+00 : f32
    %117 = vector.broadcast %cst_59 : f32 to vector<200x256xf32>
    %118 = arith.addf %117, %116 : vector<200x256xf32>
    %119 = arith.divf %117, %118 : vector<200x256xf32>
    %c2176 = arith.constant 2176 : index
    %c0_60 = arith.constant 0 : index
    %120 = vector.load %arg2[%c2176, %c0_60] : memref<2432x384xbf16, #tpu.memory_space<vmem>>, vector<256x384xbf16>
    %c14 = arith.constant 14 : index
    %c0_61 = arith.constant 0 : index
    %121 = vector.load %arg3[%c14, %c0_61] : memref<16x384xf32, #tpu.memory_space<vmem>>, vector<1x384xf32>
    %122 = arith.truncf %119 : vector<200x256xf32> to vector<200x256xbf16>
    %cst_62 = arith.constant dense<0.000000e+00> : vector<200x384xf32>
    %123 = tpu.matmul %122, %120, %cst_62 {dimension_numbers = #tpu.dot_dimension_numbers<[1], [0], [0], [1], [0, 0, 1, 1], [], []>} : vector<200x256xbf16>, vector<256x384xbf16>, vector<200x384xf32> -> vector<200x384xf32>
    %124 = vector.broadcast %121 : vector<1x384xf32> to vector<200x384xf32>
    %125 = arith.addf %123, %124 : vector<200x384xf32>
    %126 = vector.extract_strided_slice %125 {offsets = [0, 0], sizes = [200, 301], strides = [1, 1]} : vector<200x384xf32> to vector<200x301xf32>
    %c0_63 = arith.constant 0 : index
    %c0_64 = arith.constant 0 : index
    %127 = vector.load %arg4[%c0_63, %c0_64] : memref<200x301xf32, #tpu.memory_space<vmem>>, vector<200x301xf32>
    tpu.vector_store %arg4[%c0_63, %c0_64], %126 {strides = array<i32>} : memref<200x301xf32, #tpu.memory_space<vmem>>, vector<200x301xf32>,
    return
  }
  func.func @transform_0(%arg0: i32) -> (i32, i32) {
    %c0_i32 = arith.constant 0 : i32
    %c0_i32_0 = arith.constant 0 : i32
    return %arg0, %c0_i32 : i32, i32
  }
  func.func @transform_1(%arg0: i32) -> (i32, i32) {
    %c0_i32 = arith.constant 0 : i32
    %c0_i32_0 = arith.constant 0 : i32
    %c0_i32_1 = arith.constant 0 : i32
    return %c0_i32, %c0_i32_0 : i32, i32
  }
  func.func @transform_2(%arg0: i32) -> (i32, i32) {
    %c0_i32 = arith.constant 0 : i32
    %c0_i32_0 = arith.constant 0 : i32
    %c0_i32_1 = arith.constant 0 : i32
    return %c0_i32, %c0_i32_0 : i32, i32
  }
  func.func @transform_3(%arg0: i32) -> (i32, i32) {
    %c0_i32 = arith.constant 0 : i32
    %c0_i32_0 = arith.constant 0 : i32
    return %arg0, %c0_i32 : i32, i32
  }
  func.func @transform_4(%arg0: i32) -> (i32, i32) {
    %c0_i32 = arith.constant 0 : i32
    %c0_i32_0 = arith.constant 0 : i32
    return %arg0, %c0_i32 : i32, i32
  }
}

</mosaic_0001>

<llo_original>
// kernel: _net_forward_padded.1
$region0: #{_net_forward_padded.1}
  #allocation0 [shape = 'u32[]', space=smem, size = 0x4, offset = 0x4, fixed_abs, tag = 'smem constant byte address 0x4 - core index']
  #allocation1 [shape = 'u32[144,128]{1,0:T(1,128)}', space=vmem, size = 0x12000, scoped, tag = 'internal scratch']
  %s0 = inlined_call_operand.hbm [shape: f32[200,301], index: 0, kind: input, shape index: {}]
  %s1 = inlined_call_operand.hbm [shape: bf16[2432,384], index: 1, kind: input, shape index: {}]
  %s2 = inlined_call_operand.hbm [shape: f32[16,384], index: 2, kind: input, shape index: {}]
  %s3 = inlined_call_operand.hbm [shape: f32[200,301], index: 3, kind: output, shape index: {0}]
  %s4 = inlined_call_operand.hbm [shape: f32[200,128], index: 4, kind: output, shape index: {1}]
  %5 = xla_tuple %s3, %s4
  %s6 = sld [smem:[#allocation0]]
  $region42: #{_net_forward_padded.1} parent=0
    _
  %s8 = ssub.s32 1, %s6
  %s9 = scalar_select 0, %s8, %s6
  $region1: #{_net_forward_padded.1} parent=0
    #allocation2 [shape = 'u8[307200]{0}', space=vmem, size = 0x4b000, scoped, tag = 'input window, operand 0, single buffered']
    #allocation3 [shape = 's32[1]{0}', space=sflag, size = 0x4, scoped, tag = 'scoped memory for _net_forward_padded.1']
    #allocation4 [shape = 's32[1]{0}', space=sflag, size = 0x4, scoped, tag = 'scoped memory for _net_forward_padded.1']
    #allocation5 [shape = 'u8[1867776]{0}', space=vmem, size = 0x1c8000, scoped, tag = 'input window, operand 1, single buffered']
    #allocation6 [shape = 's32[1]{0}', space=sflag, size = 0x4, scoped, tag = 'scoped memory for _net_forward_padded.1']
    #allocation7 [shape = 'u8[24576]{0}', space=vmem, size = 0x6000, scoped, tag = 'input window, operand 2, single buffered']
    #allocation8 [shape = 'u8[307200]{0}', space=vmem, size = 0x4b000, scoped, tag = 'output window, operand 0, single buffered']
    #allocation9 [shape = 'u8[102400]{0}', space=vmem, size = 0x19000, scoped, tag = 'output window, operand 1, single buffered']
    #allocation10 [shape = 's32[1]{0}', space=sflag, size = 0x4, scoped, tag = 'scoped memory for _net_forward_padded.1']
    %10 = vsyncpa [#allocation3], 0
    %11 = vsyncpa [#allocation6], 0
    %12 = vsyncpa [#allocation4], 0
    %13 = vsyncpa [#allocation10], 0
    // Predicated region
    $region2: #{_net_forward_padded.1} parent=1 // pred_check
      _
    $region3: #{_net_forward_padded.1} parent=1 // pred_check_branch
      %15 = sbr.rel (0) target = $region5
    $region4: #{_net_forward_padded.1} parent=1 // pred_region
      %s17 = ssub.s32 9600, 9600
      %18 = vsyncadd [#allocation3], %s17
      %s19 = sshll.u32 [#allocation2], 4
      %s20 = int_to_ptr.vmem [resolvable:$true] %s19
      %25 = dma.hbm_to_vmem [thread:$0]  %s0, 9600, %s20, [#allocation3], 384, 384, 24
    $region5: #{_net_forward_padded.1} parent=1 // pred_fallthru
      _
    // Predicated region
    $region6: #{_net_forward_padded.1} parent=1 // pred_check
      _
    $region7: #{_net_forward_padded.1} parent=1 // pred_check_branch
      %27 = sbr.rel (0) target = $region9
    $region8: #{_net_forward_padded.1} parent=1 // pred_region
      %s29 = ssub.s32 58368, 58368
      %30 = vsyncadd [#allocation6], %s29
      %s31 = sshll.u32 [#allocation5], 4
      %s32 = int_to_ptr.vmem [resolvable:$true] %s31
      %37 = dma.hbm_to_vmem [thread:$0]  %s1, 58368, %s32, [#allocation6], 192, 192, 12
    $region9: #{_net_forward_padded.1} parent=1 // pred_fallthru
      _
    // Predicated region
    $region10: #{_net_forward_padded.1} parent=1 // pred_check
      _
    $region11: #{_net_forward_padded.1} parent=1 // pred_check_branch
      %39 = sbr.rel (0) target = $region13
    $region12: #{_net_forward_padded.1} parent=1 // pred_region
      %s41 = ssub.s32 768, 768
      %42 = vsyncadd [#allocation6], %s41
      %s43 = sshll.u32 [#allocation7], 4
      %s44 = int_to_ptr.vmem [resolvable:$true] %s43
      %49 = dma.hbm_to_vmem [thread:$0]  %s2, 768, %s44, [#allocation6], 384, 384, 24
    $region13: #{_net_forward_padded.1} parent=1 // pred_fallthru
      _
    // Predicated region
    $region14: #{_net_forward_padded.1} parent=1 // pred_check
      _
    $region15: #{_net_forward_padded.1} parent=1 // pred_check_branch
      %51 = sbr.rel (0) target = $region17
    $region16: #{_net_forward_padded.1} parent=1 // pred_region
      %52 = dma.done [#allocation3], 9600
    $region17: #{_net_forward_padded.1} parent=1 // pred_fallthru
      _
    // Predicated region
    $region18: #{_net_forward_padded.1} parent=1 // pred_check
      _
    $region19: #{_net_forward_padded.1} parent=1 // pred_check_branch
      %54 = sbr.rel (0) target = $region21
    $region20: #{_net_forward_padded.1} parent=1 // pred_region
      %55 = dma.done [#allocation6], 58368
    $region21: #{_net_forward_padded.1} parent=1 // pred_fallthru
      _
    // Predicated region
    $region22: #{_net_forward_padded.1} parent=1 // pred_check
      _
    $region23: #{_net_forward_padded.1} parent=1 // pred_check_branch
      %57 = sbr.rel (0) target = $region25
    $region24: #{_net_forward_padded.1} parent=1 // pred_region
      %58 = dma.done [#allocation6], 768
    $region25: #{_net_forward_padded.1} parent=1 // pred_fallthru
      _
    %v60 = vld [vmem:[#allocation2] sm:$0xff]
    %v61 = vld [vmem:[#allocation2 + $0x8] sm:$0xff]
    %v62 = vld [vmem:[#allocation2 + $0x10] sm:$0xff]
    %v63 = vld [vmem:[#allocation2 + $0x18] sm:$0xff]
    %v64 = vld [vmem:[#allocation2 + $0x20] sm:$0xff]
    %v65 = vld [vmem:[#allocation2 + $0x28] sm:$0xff]
    %v66 = vld [vmem:[#allocation2 + $0x30] sm:$0xff]
    %v67 = vld [vmem:[#allocation2 + $0x38] sm:$0xff]
    %v68 = vld [vmem:[#allocation2 + $0x40] sm:$0xff]
    %v69 = vld [vmem:[#allocation2 + $0x48] sm:$0xff]
    %v70 = vld [vmem:[#allocation2 + $0x50] sm:$0xff]
    %v71 = vld [vmem:[#allocation2 + $0x58] sm:$0xff]
    %v72 = vld [vmem:[#allocation2 + $0x60] sm:$0xff]
    %v73 = vld [vmem:[#allocation2 + $0x68] sm:$0xff]
    %v74 = vld [vmem:[#allocation2 + $0x70] sm:$0xff]
    %v75 = vld [vmem:[#allocation2 + $0x78] sm:$0xff]
    %v76 = vld [vmem:[#allocation2 + $0x80] sm:$0xff]
    %v77 = vld [vmem:[#allocation2 + $0x88] sm:$0xff]
    %v78 = vld [vmem:[#allocation2 + $0x90] sm:$0xff]
    %v79 = vld [vmem:[#allocation2 + $0x98] sm:$0xff]
    %v80 = vld [vmem:[#allocation2 + $0xa0] sm:$0xff]
    %v81 = vld [vmem:[#allocation2 + $0xa8] sm:$0xff]
    %v82 = vld [vmem:[#allocation2 + $0xb0] sm:$0xff]
    %v83 = vld [vmem:[#allocation2 + $0xb8] sm:$0xff]
    %v84 = vld [vmem:[#allocation2 + $0xc0] sm:$0xff]
    %v85 = vld [vmem:[#allocation2 + $0xc8] sm:$0xff]
    %v86 = vld [vmem:[#allocation2 + $0xd0] sm:$0xff]
    %v87 = vld [vmem:[#allocation2 + $0xd8] sm:$0xff]
    %v88 = vld [vmem:[#allocation2 + $0xe0] sm:$0xff]
    %v89 = vld [vmem:[#allocation2 + $0xe8] sm:$0xff]
    %v90 = vld [vmem:[#allocation2 + $0xf0] sm:$0xff]
    %v91 = vld [vmem:[#allocation2 + $0xf8] sm:$0xff]
    %v92 = vld [vmem:[#allocation2 + $0x100] sm:$0xff]
    %v93 = vld [vmem:[#allocation2 + $0x108] sm:$0xff]
    %v94 = vld [vmem:[#allocation2 + $0x110] sm:$0xff]
    %v95 = vld [vmem:[#allocation2 + $0x118] sm:$0xff]
    %v96 = vld [vmem:[#allocation2 + $0x120] sm:$0xff]
    %v97 = vld [vmem:[#allocation2 + $0x128] sm:$0xff]
    %v98 = vld [vmem:[#allocation2 + $0x130] sm:$0xff]
    %v99 = vld [vmem:[#allocation2 + $0x138] sm:$0xff]
    %v100 = vld [vmem:[#allocation2 + $0x140] sm:$0xff]
    %v101 = vld [vmem:[#allocation2 + $0x148] sm:$0xff]
    %v102 = vld [vmem:[#allocation2 + $0x150] sm:$0xff]
    %v103 = vld [vmem:[#allocation2 + $0x158] sm:$0xff]
    %v104 = vld [vmem:[#allocation2 + $0x160] sm:$0xff]
    %v105 = vld [vmem:[#allocation2 + $0x168] sm:$0xff]
    %v106 = vld [vmem:[#allocation2 + $0x170] sm:$0xff]
    %v107 = vld [vmem:[#allocation2 + $0x178] sm:$0xff]
    %v108 = vld [vmem:[#allocation2 + $0x180] sm:$0xff]
    %v109 = vld [vmem:[#allocation2 + $0x188] sm:$0xff]
    %v110 = vld [vmem:[#allocation2 + $0x190] sm:$0xff]
    %v111 = vld [vmem:[#allocation2 + $0x198] sm:$0xff]
    %v112 = vld [vmem:[#allocation2 + $0x1a0] sm:$0xff]
    %v113 = vld [vmem:[#allocation2 + $0x1a8] sm:$0xff]
    %v114 = vld [vmem:[#allocation2 + $0x1b0] sm:$0xff]
    %v115 = vld [vmem:[#allocation2 + $0x1b8] sm:$0xff]
    %v116 = vld [vmem:[#allocation2 + $0x1c0] sm:$0xff]
    %v117 = vld [vmem:[#allocation2 + $0x1c8] sm:$0xff]
    %v118 = vld [vmem:[#allocation2 + $0x1d0] sm:$0xff]
    %v119 = vld [vmem:[#allocation2 + $0x1d8] sm:$0xff]
    %v120 = vld [vmem:[#allocation2 + $0x1e0] sm:$0xff]
    %v121 = vld [vmem:[#allocation2 + $0x1e8] sm:$0xff]
    %v122 = vld [vmem:[#allocation2 + $0x1f0] sm:$0xff]
    %v123 = vld [vmem:[#allocation2 + $0x1f8] sm:$0xff]
    %v124 = vld [vmem:[#allocation2 + $0x200] sm:$0xff]
    %v125 = vld [vmem:[#allocation2 + $0x208] sm:$0xff]
    %v126 = vld [vmem:[#allocation2 + $0x210] sm:$0xff]
    %v127 = vld [vmem:[#allocation2 + $0x218] sm:$0xff]
    %v128 = vld [vmem:[#allocation2 + $0x220] sm:$0xff]
    %v129 = vld [vmem:[#allocation2 + $0x228] sm:$0xff]
    %v130 = vld [vmem:[#allocation2 + $0x230] sm:$0xff]
    %v131 = vld [vmem:[#allocation2 + $0x238] sm:$0xff]
    %v132 = vld [vmem:[#allocation2 + $0x240] sm:$0xff]
    %v133 = vld [vmem:[#allocation2 + $0x248] sm:$0xff]
    %v134 = vld [vmem:[#allocation2 + $0x250] sm:$0xff]
    %vm135 = vcmask 367616
    %v136 = vsel %vm135, %v62, 0.0
    %v137 = vsel %vm135, %v65, 0.0
    %v138 = vsel %vm135, %v68, 0.0
    %v139 = vsel %vm135, %v71, 0.0
    %v140 = vsel %vm135, %v74, 0.0
    %v141 = vsel %vm135, %v77, 0.0
    %v142 = vsel %vm135, %v80, 0.0
    %v143 = vsel %vm135, %v83, 0.0
    %v144 = vsel %vm135, %v86, 0.0
    %v145 = vsel %vm135, %v89, 0.0
    %v146 = vsel %vm135, %v92, 0.0
    %v147 = vsel %vm135, %v95, 0.0
    %v148 = vsel %vm135, %v98, 0.0
    %v149 = vsel %vm135, %v101, 0.0
    %v150 = vsel %vm135, %v104, 0.0
    %v151 = vsel %vm135, %v107, 0.0
    %v152 = vsel %vm135, %v110, 0.0
    %v153 = vsel %vm135, %v113, 0.0
    %v154 = vsel %vm135, %v116, 0.0
    %v155 = vsel %vm135, %v119, 0.0
    %v156 = vsel %vm135, %v122, 0.0
    %v157 = vsel %vm135, %v125, 0.0
    %v158 = vsel %vm135, %v128, 0.0
    %v159 = vsel %vm135, %v131, 0.0
    %v160 = vsel %vm135, %v134, 0.0
    %v161 = vld [vmem:[#allocation5] sm:$0xff]
    %v162 = vld [vmem:[#allocation5 + $0xc] sm:$0xff]
    %v163 = vld [vmem:[#allocation5 + $0x18] sm:$0xff]
    %v164 = vld [vmem:[#allocation5 + $0x24] sm:$0xff]
    %v165 = vld [vmem:[#allocation5 + $0x30] sm:$0xff]
    %v166 = vld [vmem:[#allocation5 + $0x3c] sm:$0xff]
    %v167 = vld [vmem:[#allocation5 + $0x48] sm:$0xff]
    %v168 = vld [vmem:[#allocation5 + $0x54] sm:$0xff]
    %v169 = vld [vmem:[#allocation5 + $0x60] sm:$0xff]
    %v170 = vld [vmem:[#allocation5 + $0x6c] sm:$0xff]
    %v171 = vld [vmem:[#allocation5 + $0x78] sm:$0xff]
    %v172 = vld [vmem:[#allocation5 + $0x84] sm:$0xff]
    %v173 = vld [vmem:[#allocation5 + $0x90] sm:$0xff]
    %v174 = vld [vmem:[#allocation5 + $0x9c] sm:$0xff]
    %v175 = vld [vmem:[#allocation5 + $0xa8] sm:$0xff]
    %v176 = vld [vmem:[#allocation5 + $0xb4] sm:$0xff]
    %v177 = vld [vmem:[#allocation5 + $0xc0] sm:$0xff]
    %v178 = vld [vmem:[#allocation5 + $0xcc] sm:$0xff]
    %v179 = vld [vmem:[#allocation5 + $0xd8] sm:$0xff]
    %v180 = vld [vmem:[#allocation5 + $0xe4] sm:$0xff]
    %v181 = vld [vmem:[#allocation5 + $0xf0] sm:$0xff]
    %v182 = vld [vmem:[#allocation5 + $0xfc] sm:$0xff]
    %v183 = vld [vmem:[#allocation5 + $0x108] sm:$0xff]
    %v184 = vld [vmem:[#allocation5 + $0x114] sm:$0xff]
    %v185 = vld [vmem:[#allocation5 + $0x120] sm:$0xff]
    %v186 = vld [vmem:[#allocation5 + $0x12c] sm:$0xff]
    %v187 = vld [vmem:[#allocation5 + $0x138] sm:$0xff]
    %v188 = vld [vmem:[#allocation5 + $0x144] sm:$0xff]
    %v189 = vld [vmem:[#allocation5 + $0x150] sm:$0xff]
    %v190 = vld [vmem:[#allocation5 + $0x15c] sm:$0xff]
    %v191 = vld [vmem:[#allocation5 + $0x168] sm:$0xff]
    %v192 = vld [vmem:[#allocation5 + $0x174] sm:$0xff]
    %v193 = vld [vmem:[#allocation5 + $0x180] sm:$0xff]
    %v194 = vld [vmem:[#allocation5 + $0x18c] sm:$0xff]
    %v195 = vld [vmem:[#allocation5 + $0x198] sm:$0xff]
    %v196 = vld [vmem:[#allocation5 + $0x1a4] sm:$0xff]
    %v197 = vld [vmem:[#allocation5 + $0x1b0] sm:$0xff]
    %v198 = vld [vmem:[#allocation5 + $0x1bc] sm:$0xff]
    %v199 = vld [vmem:[#allocation5 + $0x1c8] sm:$0xff]
    %v200 = vld [vmem:[#allocation5 + $0x1d4] sm:$0xff]
    %v201 = vld [vmem:[#allocation5 + $0x1e0] sm:$0xff]
    %v202 = vld [vmem:[#allocation5 + $0x1ec] sm:$0xff]
    %v203 = vld [vmem:[#allocation5 + $0x1f8] sm:$0xff]
    %v204 = vld [vmem:[#allocation5 + $0x204] sm:$0xff]
    %v205 = vld [vmem:[#allocation5 + $0x210] sm:$0xff]
    %v206 = vld [vmem:[#allocation5 + $0x21c] sm:$0xff]
    %v207 = vld [vmem:[#allocation5 + $0x228] sm:$0xff]
    %v208 = vld [vmem:[#allocation5 + $0x234] sm:$0xff]
    %v209 = vld [vmem:[#allocation7] ss:$8 sm:$0x3]
    %v210 = vpack.c.bf16 %v63, %v60
    %v211 = vpack.c.bf16 %v64, %v61
    %v212 = vpack.c.bf16 %v137, %v136
    %v213 = vpack.c.bf16 %v69, %v66
    %v214 = vpack.c.bf16 %v70, %v67
    %v215 = vpack.c.bf16 %v139, %v138
    %v216 = vpack.c.bf16 %v75, %v72
    %v217 = vpack.c.bf16 %v76, %v73
    %v218 = vpack.c.bf16 %v141, %v140
    %v219 = vpack.c.bf16 %v81, %v78
    %v220 = vpack.c.bf16 %v82, %v79
    %v221 = vpack.c.bf16 %v143, %v142
    %v222 = vpack.c.bf16 %v87, %v84
    %v223 = vpack.c.bf16 %v88, %v85
    %v224 = vpack.c.bf16 %v145, %v144
    %v225 = vpack.c.bf16 %v93, %v90
    %v226 = vpack.c.bf16 %v94, %v91
    %v227 = vpack.c.bf16 %v147, %v146
    %v228 = vpack.c.bf16 %v99, %v96
    %v229 = vpack.c.bf16 %v100, %v97
    %v230 = vpack.c.bf16 %v149, %v148
    %v231 = vpack.c.bf16 %v105, %v102
    %v232 = vpack.c.bf16 %v106, %v103
    %v233 = vpack.c.bf16 %v151, %v150
    %v234 = vpack.c.bf16 %v111, %v108
    %v235 = vpack.c.bf16 %v112, %v109
    %v236 = vpack.c.bf16 %v153, %v152
    %v237 = vpack.c.bf16 %v117, %v114
    %v238 = vpack.c.bf16 %v118, %v115
    %v239 = vpack.c.bf16 %v155, %v154
    %v240 = vpack.c.bf16 %v123, %v120
    %v241 = vpack.c.bf16 %v124, %v121
    %v242 = vpack.c.bf16 %v157, %v156
    %v243 = vpack.c.bf16 %v129, %v126
    %v244 = vpack.c.bf16 %v130, %v127
    %v245 = vpack.c.bf16 %v159, %v158
    %v246 = vpack.c.bf16 %v132, %v132
    %v247 = vpack.c.bf16 %v133, %v133
    %v248 = vpack.c.bf16 %v160, %v160
    %v250 = vlaneseq
    %v251 = vshrl.u32 %v250, 7
    %v252 = vsub.s32 0, %v251
    %v253 = vrot.slane %v209, %v252
    %v254 = vlaneseq
    %v255 = vshrl.u32 %v254, 7
    %v256 = vsub.s32 1, %v255
    %v257 = vrot.slane %v209, %v256
    %v308 = vunpack.c.l.b16 %v161
    %v309 = vunpack.c.h.b16 %v161
    %v310 = vunpack.c.l.b16 %v162
    %v311 = vunpack.c.h.b16 %v162
    %v312 = vunpack.c.l.b16 %v163
    %v313 = vunpack.c.h.b16 %v163
    %v314 = vunpack.c.l.b16 %v164
    %v315 = vunpack.c.h.b16 %v164
    %v316 = vunpack.c.l.b16 %v165
    %v317 = vunpack.c.h.b16 %v165
    %v318 = vunpack.c.l.b16 %v166
    %v319 = vunpack.c.h.b16 %v166
    %v320 = vunpack.c.l.b16 %v167
    %v321 = vunpack.c.h.b16 %v167
    %v322 = vunpack.c.l.b16 %v168
    %v323 = vunpack.c.h.b16 %v168
    %v324 = vunpack.c.l.b16 %v169
    %v325 = vunpack.c.h.b16 %v169
    %v326 = vunpack.c.l.b16 %v170
    %v327 = vunpack.c.h.b16 %v170
    %v328 = vunpack.c.l.b16 %v171
    %v329 = vunpack.c.h.b16 %v171
    %v330 = vunpack.c.l.b16 %v172
    %v331 = vunpack.c.h.b16 %v172
    %v332 = vunpack.c.l.b16 %v173
    %v333 = vunpack.c.h.b16 %v173
    %v334 = vunpack.c.l.b16 %v174
    %v335 = vunpack.c.h.b16 %v174
    %v336 = vunpack.c.l.b16 %v175
    %v337 = vunpack.c.h.b16 %v175
    %v338 = vunpack.c.l.b16 %v176
    %v339 = vunpack.c.h.b16 %v176
    %v340 = vunpack.c.l.b16 %v177
    %v341 = vunpack.c.h.b16 %v177
    %v342 = vunpack.c.l.b16 %v178
    %v343 = vunpack.c.h.b16 %v178
    %v344 = vunpack.c.l.b16 %v179
    %v345 = vunpack.c.h.b16 %v179
    %v346 = vunpack.c.l.b16 %v180
    %v347 = vunpack.c.h.b16 %v180
    %v348 = vunpack.c.l.b16 %v181
    %v349 = vunpack.c.h.b16 %v181
    %v350 = vunpack.c.l.b16 %v182
    %v351 = vunpack.c.h.b16 %v182
    %v352 = vunpack.c.l.b16 %v183
    %v353 = vunpack.c.h.b16 %v183
    %v354 = vunpack.c.l.b16 %v184
    %v355 = vunpack.c.h.b16 %v184
    %v356 = vunpack.c.l.b16 %v185
    %v357 = vunpack.c.h.b16 %v185
    %v358 = vunpack.c.l.b16 %v186
    %v359 = vunpack.c.h.b16 %v186
    %v360 = vunpack.c.l.b16 %v187
    %v361 = vunpack.c.h.b16 %v187
    %v362 = vunpack.c.l.b16 %v188
    %v363 = vunpack.c.h.b16 %v188
    %v364 = vunpack.c.l.b16 %v189
    %v365 = vunpack.c.h.b16 %v189
    %v366 = vunpack.c.l.b16 %v190
    %v367 = vunpack.c.h.b16 %v190
    %v368 = vunpack.c.l.b16 %v191
    %v369 = vunpack.c.h.b16 %v191
    %v370 = vunpack.c.l.b16 %v192
    %v371 = vunpack.c.h.b16 %v192
    %v372 = vunpack.c.l.b16 %v193
    %v373 = vunpack.c.h.b16 %v193
    %v374 = vunpack.c.l.b16 %v194
    %v375 = vunpack.c.h.b16 %v194
    %v376 = vunpack.c.l.b16 %v195
    %v377 = vunpack.c.h.b16 %v195
    %v378 = vunpack.c.l.b16 %v196
    %v379 = vunpack.c.h.b16 %v196
    %v380 = vunpack.c.l.b16 %v197
    %v381 = vunpack.c.h.b16 %v197
    %v382 = vunpack.c.l.b16 %v198
    %v383 = vunpack.c.h.b16 %v198
    %v384 = vunpack.c.l.b16 %v199
    %v385 = vunpack.c.h.b16 %v199
    %v386 = vunpack.c.l.b16 %v200
    %v387 = vunpack.c.h.b16 %v200
    %v388 = vunpack.c.l.b16 %v201
    %v389 = vunpack.c.h.b16 %v201
    %v390 = vunpack.c.l.b16 %v202
    %v391 = vunpack.c.h.b16 %v202
    %v392 = vunpack.c.l.b16 %v203
    %v393 = vunpack.c.h.b16 %v203
    %v394 = vunpack.c.l.b16 %v204
    %v395 = vunpack.c.h.b16 %v204
    %v396 = vunpack.c.l.b16 %v205
    %v397 = vunpack.c.h.b16 %v205
    %v398 = vunpack.c.l.b16 %v206
    %v399 = vunpack.c.h.b16 %v206
    %v400 = vunpack.c.l.b16 %v207
    %v401 = vunpack.c.h.b16 %v207
    %v402 = vunpack.c.l.b16 %v208
    %v403 = vunpack.c.h.b16 %v208
    %v404 = vpack.c.b16 %v310, %v308
    %v405 = vpack.c.b16 %v311, %v309
    %v406 = vpack.c.b16 %v314, %v312
    %v407 = vpack.c.b16 %v315, %v313
    %v408 = vpack.c.b16 %v318, %v316
    %v409 = vpack.c.b16 %v319, %v317
    %v410 = vpack.c.b16 %v322, %v320
    %v411 = vpack.c.b16 %v323, %v321
    %v412 = vpack.c.b16 %v326, %v324
    %v413 = vpack.c.b16 %v327, %v325
    %v414 = vpack.c.b16 %v330, %v328
    %v415 = vpack.c.b16 %v331, %v329
    %v416 = vpack.c.b16 %v334, %v332
    %v417 = vpack.c.b16 %v335, %v333
    %v418 = vpack.c.b16 %v338, %v336
    %v419 = vpack.c.b16 %v339, %v337
    %v420 = vpack.c.b16 %v342, %v340
    %v421 = vpack.c.b16 %v343, %v341
    %v422 = vpack.c.b16 %v346, %v344
    %v423 = vpack.c.b16 %v347, %v345
    %v424 = vpack.c.b16 %v350, %v348
    %v425 = vpack.c.b16 %v351, %v349
    %v426 = vpack.c.b16 %v354, %v352
    %v427 = vpack.c.b16 %v355, %v353
    %v428 = vpack.c.b16 %v358, %v356
    %v429 = vpack.c.b16 %v359, %v357
    %v430 = vpack.c.b16 %v362, %v360
    %v431 = vpack.c.b16 %v363, %v361
    %v432 = vpack.c.b16 %v366, %v364
    %v433 = vpack.c.b16 %v367, %v365
    %v434 = vpack.c.b16 %v370, %v368
    %v435 = vpack.c.b16 %v371, %v369
    %v436 = vpack.c.b16 %v374, %v372
    %v437 = vpack.c.b16 %v375, %v373
    %v438 = vpack.c.b16 %v378, %v376
    %v439 = vpack.c.b16 %v379, %v377
    %v440 = vpack.c.b16 %v382, %v380
    %v441 = vpack.c.b16 %v383, %v381
    %v442 = vpack.c.b16 %v386, %v384
    %v443 = vpack.c.b16 %v387, %v385
    %v444 = vpack.c.b16 %v390, %v388
    %v445 = vpack.c.b16 %v391, %v389
    %v446 = vpack.c.b16 %v394, %v392
    %v447 = vpack.c.b16 %v395, %v393
    %v448 = vpack.c.b16 %v398, %v396
    %v449 = vpack.c.b16 %v399, %v397
    %v450 = vpack.c.b16 %v402, %v400
    %v451 = vpack.c.b16 %v403, %v401
    %500 = vmatprep.subr.bf16.mxu0 %v405
    %501 = vmatpush1.bf16.msra.mxu0 %v404
    %502 = vmatprep.subr.bf16.mxu0 %v407
    %503 = vmatpush1.bf16.msra.mxu0 %v406
    %504 = vmatprep.subr.bf16.mxu0 %v409
    %505 = vmatpush1.bf16.msra.mxu0 %v408
    %506 = vmatprep.subr.bf16.mxu0 %v411
    %507 = vmatpush1.bf16.msra.mxu0 %v410
    %508 = vmatprep.subr.bf16.mxu0 %v413
    %509 = vmatpush1.bf16.msra.mxu0 %v412
    %510 = vmatprep.subr.bf16.mxu0 %v415
    %511 = vmatpush1.bf16.msra.mxu0 %v414
    %512 = vmatprep.subr.bf16.mxu0 %v417
    %513 = vmatpush1.bf16.msra.mxu0 %v416
    %514 = vmatprep.subr.bf16.mxu0 %v419
    %515 = vmatpush1.bf16.msra.mxu0 %v418
    %516 = vmatprep.subr.bf16.mxu0 %v421
    %517 = vmatpush1.bf16.msra.mxu0 %v420
    %518 = vmatprep.subr.bf16.mxu0 %v423
    %519 = vmatpush1.bf16.msra.mxu0 %v422
    %520 = vmatprep.subr.bf16.mxu0 %v425
    %521 = vmatpush1.bf16.msra.mxu0 %v424
    %522 = vmatprep.subr.bf16.mxu0 %v427
    %523 = vmatpush1.bf16.msra.mxu0 %v426
    %524 = vmatprep.subr.bf16.mxu0 %v429
    %525 = vmatpush1.bf16.msra.mxu0 %v428
    %526 = vmatprep.subr.bf16.mxu0 %v431
    %527 = vmatpush1.bf16.msra.mxu0 %v430
    %528 = vmatprep.subr.bf16.mxu0 %v433
    %529 = vmatpush1.bf16.msra.mxu0 %v432
    %530 = vmatprep.subr.bf16.mxu0 %v435
    %531 = vmatpush1.bf16.msra.mxu0 %v434
    %532 = vmatprep.mubr.bf16.mxu0 %v211
    %533 = vmatmul.mubr.bf16.gmra.mrb[0].mxu0 %v210
    %v534 = vpop.f32.mrb[0].mxu0
    %v535 = vadd.f32 %v253, %v534
    %v536 = vpop.f32.mrb[0].mxu0
    %v537 = vadd.f32 %v257, %v536
    %v538 = vpop.f32.mrb[0].mxu0
    %v539 = vadd.f32 %v253, %v538
    %v540 = vpop.f32.mrb[0].mxu0
    %v541 = vadd.f32 %v257, %v540
    %542 = vmatprep.mubr.bf16.mxu0 %v214
    %543 = vmatmul.mubr.bf16.gmra.mrb[0].mxu0 %v213
    %v544 = vpop.f32.mrb[0].mxu0
    %v545 = vadd.f32 %v253, %v544
    %v546 = vpop.f32.mrb[0].mxu0
    %v547 = vadd.f32 %v257, %v546
    %v548 = vpop.f32.mrb[0].mxu0
    %v549 = vadd.f32 %v253, %v548
    %v550 = vpop.f32.mrb[0].mxu0
    %v551 = vadd.f32 %v257, %v550
    %552 = vmatprep.mubr.bf16.mxu0 %v217
    %553 = vmatmul.mubr.bf16.gmra.mrb[0].mxu0 %v216
    %v554 = vpop.f32.mrb[0].mxu0
    %v555 = vadd.f32 %v253, %v554
    %v556 = vpop.f32.mrb[0].mxu0
    %v557 = vadd.f32 %v257, %v556
    %v558 = vpop.f32.mrb[0].mxu0
    %v559 = vadd.f32 %v253, %v558
    %v560 = vpop.f32.mrb[0].mxu0
    %v561 = vadd.f32 %v257, %v560
    %562 = vmatprep.mubr.bf16.mxu0 %v220
    %563 = vmatmul.mubr.bf16.gmra.mrb[0].mxu0 %v219
    %v564 = vpop.f32.mrb[0].mxu0
    %v565 = vadd.f32 %v253, %v564
    %v566 = vpop.f32.mrb[0].mxu0
    %v567 = vadd.f32 %v257, %v566
    %v568 = vpop.f32.mrb[0].mxu0
    %v569 = vadd.f32 %v253, %v568
    %v570 = vpop.f32.mrb[0].mxu0
    %v571 = vadd.f32 %v257, %v570
    %572 = vmatprep.mubr.bf16.mxu0 %v223
    %573 = vmatmul.mubr.bf16.gmra.mrb[0].mxu0 %v222
    %v574 = vpop.f32.mrb[0].mxu0
    %v575 = vadd.f32 %v253, %v574
    %v576 = vpop.f32.mrb[0].mxu0
    %v577 = vadd.f32 %v257, %v576
    %v578 = vpop.f32.mrb[0].mxu0
    %v579 = vadd.f32 %v253, %v578
    %v580 = vpop.f32.mrb[0].mxu0
    %v581 = vadd.f32 %v257, %v580
    %582 = vmatprep.mubr.bf16.mxu0 %v226
    %583 = vmatmul.mubr.bf16.gmra.mrb[0].mxu0 %v225
    %v584 = vpop.f32.mrb[0].mxu0
    %v585 = vadd.f32 %v253, %v584
    %v586 = vpop.f32.mrb[0].mxu0
    %v587 = vadd.f32 %v257, %v586
    %v588 = vpop.f32.mrb[0].mxu0
    %v589 = vadd.f32 %v253, %v588
    %v590 = vpop.f32.mrb[0].mxu0
    %v591 = vadd.f32 %v257, %v590
    %592 = vmatprep.mubr.bf16.mxu0 %v229
    %593 = vmatmul.mubr.bf16.gmra.mrb[0].mxu0 %v228
    %v594 = vpop.f32.mrb[0].mxu0
    %v595 = vadd.f32 %v253, %v594
    %v596 = vpop.f32.mrb[0].mxu0
    %v597 = vadd.f32 %v257, %v596
    %v598 = vpop.f32.mrb[0].mxu0
    %v599 = vadd.f32 %v253, %v598
    %v600 = vpop.f32.mrb[0].mxu0
    %v601 = vadd.f32 %v257, %v600
    %602 = vmatprep.mubr.bf16.mxu0 %v232
    %603 = vmatmul.mubr.bf16.gmra.mrb[0].mxu0 %v231
    %v604 = vpop.f32.mrb[0].mxu0
    %v605 = vadd.f32 %v253, %v604
    %v606 = vpop.f32.mrb[0].mxu0
    %v607 = vadd.f32 %v257, %v606
    %v608 = vpop.f32.mrb[0].mxu0
    %v609 = vadd.f32 %v253, %v608
    %v610 = vpop.f32.mrb[0].mxu0
    %v611 = vadd.f32 %v257, %v610
    %612 = vmatprep.mubr.bf16.mxu0 %v235
    %613 = vmatmul.mubr.bf16.gmra.mrb[0].mxu0 %v234
    %v614 = vpop.f32.mrb[0].mxu0
    %v615 = vadd.f32 %v253, %v614
    %v616 = vpop.f32.mrb[0].mxu0
    %v617 = vadd.f32 %v257, %v616
    %v618 = vpop.f32.mrb[0].mxu0
    %v619 = vadd.f32 %v253, %v618
    %v620 = vpop.f32.mrb[0].mxu0
    %v621 = vadd.f32 %v257, %v620
    %622 = vmatprep.mubr.bf16.mxu0 %v238
    %623 = vmatmul.mubr.bf16.gmra.mrb[0].mxu0 %v237
    %v624 = vpop.f32.mrb[0].mxu0
    %v625 = vadd.f32 %v253, %v624
    %v626 = vpop.f32.mrb[0].mxu0
    %v627 = vadd.f32 %v257, %v626
    %v628 = vpop.f32.mrb[0].mxu0
    %v629 = vadd.f32 %v253, %v628
    %v630 = vpop.f32.mrb[0].mxu0
    %v631 = vadd.f32 %v257, %v630
    %632 = vmatprep.mubr.bf16.mxu0 %v241
    %633 = vmatmul.mubr.bf16.gmra.mrb[0].mxu0 %v240
    %v634 = vpop.f32.mrb[0].mxu0
    %v635 = vadd.f32 %v253, %v634
    %v636 = vpop.f32.mrb[0].mxu0
    %v637 = vadd.f32 %v257, %v636
    %v638 = vpop.f32.mrb[0].mxu0
    %v639 = vadd.f32 %v253, %v638
    %v640 = vpop.f32.mrb[0].mxu0
    %v641 = vadd.f32 %v257, %v640
    %642 = vmatprep.mubr.bf16.mxu0 %v244
    %643 = vmatmul.mubr.bf16.gmra.mrb[0].mxu0 %v243
    %v644 = vpop.f32.mrb[0].mxu0
    %v645 = vadd.f32 %v253, %v644
    %v646 = vpop.f32.mrb[0].mxu0
    %v647 = vadd.f32 %v257, %v646
    %v648 = vpop.f32.mrb[0].mxu0
    %v649 = vadd.f32 %v253, %v648
    %v650 = vpop.f32.mrb[0].mxu0
    %v651 = vadd.f32 %v257, %v650
    %652 = vmatprep.mubr.bf16.mxu0 %v247
    %653 = vmatmul.mubr.bf16.gmra.mrb[0].mxu0 %v246
    %v654 = vpop.f32.mrb[0].mxu0
    %v655 = vadd.f32 %v253, %v654
    %v656 = vpop.f32.mrb[0].mxu0
    %v657 = vadd.f32 %v257, %v656
    %v658 = vpop.f32.mrb[0].mxu0
    %v659 = vpop.f32.mrb[0].mxu0
    %660 = vdwg.mxu0
    %661 = vmatprep.subr.bf16.mxu0 %v437
    %662 = vmatpush1.bf16.msra.mxu0 %v436
    %663 = vmatprep.subr.bf16.mxu0 %v439
    %664 = vmatpush1.bf16.msra.mxu0 %v438
    %665 = vmatprep.subr.bf16.mxu0 %v441
    %666 = vmatpush1.bf16.msra.mxu0 %v440
    %667 = vmatprep.subr.bf16.mxu0 %v443
    %668 = vmatpush1.bf16.msra.mxu0 %v442
    %669 = vmatprep.subr.bf16.mxu0 %v445
    %670 = vmatpush1.bf16.msra.mxu0 %v444
    %671 = vmatprep.subr.bf16.mxu0 %v447
    %672 = vmatpush1.bf16.msra.mxu0 %v446
    %673 = vmatprep.subr.bf16.mxu0 %v449
    %674 = vmatpush1.bf16.msra.mxu0 %v448
    %675 = vmatprep.subr.bf16.mxu0 %v451
    %676 = vmatpush1.bf16.msra.mxu0 %v450
    %677 = vmatprep.subr.bf16.mxu0 0
    %678 = vmatpush1.bf16.msra.mxu0 0
    %679 = vmatprep.subr.bf16.mxu0 0
    %680 = vmatpush1.bf16.msra.mxu0 0
    %681 = vmatprep.subr.bf16.mxu0 0
    %682 = vmatpush1.bf16.msra.mxu0 0
    %683 = vmatprep.subr.bf16.mxu0 0
    %684 = vmatpush1.bf16.msra.mxu0 0
    %685 = vmatprep.subr.bf16.mxu0 0
    %686 = vmatpush1.bf16.msra.mxu0 0
    %687 = vmatprep.subr.bf16.mxu0 0
    %688 = vmatpush1.bf16.msra.mxu0 0
    %689 = vmatprep.subr.bf16.mxu0 0
    %690 = vmatpush1.bf16.msra.mxu0 0
    %691 = vmatprep.subr.bf16.mxu0 0
    %692 = vmatpush1.bf16.msra.mxu0 0
    %693 = vmatprep.mubr.bf16.mxu0 0
    %694 = vmatmul.mubr.bf16.gmra.mrb[0].mxu0 %v212
    %v695 = vpop.f32.mrb[0].mxu0
    %v696 = vadd.f32 %v535, %v695
    %v697 = vpop.f32.mrb[0].mxu0
    %v698 = vadd.f32 %v537, %v697
    %v699 = vpop.f32.mrb[0].mxu0
    %v700 = vadd.f32 %v539, %v699
    %v701 = vpop.f32.mrb[0].mxu0
    %v702 = vadd.f32 %v541, %v701
    %703 = vmatprep.mubr.bf16.mxu0 0
    %704 = vmatmul.mubr.bf16.gmra.mrb[0].mxu0 %v215
    %v705 = vpop.f32.mrb[0].mxu0
    %v706 = vadd.f32 %v545, %v705
    %v707 = vpop.f32.mrb[0].mxu0
    %v708 = vadd.f32 %v547, %v707
    %v709 = vpop.f32.mrb[0].mxu0
    %v710 = vadd.f32 %v549, %v709
    %v711 = vpop.f32.mrb[0].mxu0
    %v712 = vadd.f32 %v551, %v711
    %713 = vmatprep.mubr.bf16.mxu0 0
    %714 = vmatmul.mubr.bf16.gmra.mrb[0].mxu0 %v218
    %v715 = vpop.f32.mrb[0].mxu0
    %v716 = vadd.f32 %v555, %v715
    %v717 = vpop.f32.mrb[0].mxu0
    %v718 = vadd.f32 %v557, %v717
    %v719 = vpop.f32.mrb[0].mxu0
    %v720 = vadd.f32 %v559, %v719
    %v721 = vpop.f32.mrb[0].mxu0
    %v722 = vadd.f32 %v561, %v721
    %723 = vmatprep.mubr.bf16.mxu0 0
    %724 = vmatmul.mubr.bf16.gmra.mrb[0].mxu0 %v221
    %v725 = vpop.f32.mrb[0].mxu0
    %v726 = vadd.f32 %v565, %v725
    %v727 = vpop.f32.mrb[0].mxu0
    %v728 = vadd.f32 %v567, %v727
    %v729 = vpop.f32.mrb[0].mxu0
    %v730 = vadd.f32 %v569, %v729
    %v731 = vpop.f32.mrb[0].mxu0
    %v732 = vadd.f32 %v571, %v731
    %733 = vmatprep.mubr.bf16.mxu0 0
    %734 = vmatmul.mubr.bf16.gmra.mrb[0].mxu0 %v224
    %v735 = vpop.f32.mrb[0].mxu0
    %v736 = vadd.f32 %v575, %v735
    %v737 = vpop.f32.mrb[0].mxu0
    %v738 = vadd.f32 %v577, %v737
    %v739 = vpop.f32.mrb[0].mxu0
    %v740 = vadd.f32 %v579, %v739
    %v741 = vpop.f32.mrb[0].mxu0
    %v742 = vadd.f32 %v581, %v741
    %743 = vmatprep.mubr.bf16.mxu0 0
    %744 = vmatmul.mubr.bf16.gmra.mrb[0].mxu0 %v227
    %v745 = vpop.f32.mrb[0].mxu0
    %v746 = vadd.f32 %v585, %v745
    %v747 = vpop.f32.mrb[0].mxu0
    %v748 = vadd.f32 %v587, %v747
    %v749 = vpop.f32.mrb[0].mxu0
    %v750 = vadd.f32 %v589, %v749
    %v751 = vpop.f32.mrb[0].mxu0
    %v752 = vadd.f32 %v591, %v751
    %753 = vmatprep.mubr.bf16.mxu0 0
    %754 = vmatmul.mubr.bf16.gmra.mrb[0].mxu0 %v230
    %v755 = vpop.f32.mrb[0].mxu0
    %v756 = vadd.f32 %v595, %v755
    %v757 = vpop.f32.mrb[0].mxu0
    %v758 = vadd.f32 %v597, %v757
    %v759 = vpop.f32.mrb[0].mxu0
    %v760 = vadd.f32 %v599, %v759
    %v761 = vpop.f32.mrb[0].mxu0
    %v762 = vadd.f32 %v601, %v761
    %763 = vmatprep.mubr.bf16.mxu0 0
    %764 = vmatmul.mubr.bf16.gmra.mrb[0].mxu0 %v233
    %v765 = vpop.f32.mrb[0].mxu0
    %v766 = vadd.f32 %v605, %v765
    %v767 = vpop.f32.mrb[0].mxu0
    %v768 = vadd.f32 %v607, %v767
    %v769 = vpop.f32.mrb[0].mxu0
    %v770 = vadd.f32 %v609, %v769
    %v771 = vpop.f32.mrb[0].mxu0
    %v772 = vadd.f32 %v611, %v771
    %773 = vmatprep.mubr.bf16.mxu0 0
    %774 = vmatmul.mubr.bf16.gmra.mrb[0].mxu0 %v236
    %v775 = vpop.f32.mrb[0].mxu0
    %v776 = vadd.f32 %v615, %v775
    %v777 = vpop.f32.mrb[0].mxu0
    %v778 = vadd.f32 %v617, %v777
    %v779 = vpop.f32.mrb[0].mxu0
    %v780 = vadd.f32 %v619, %v779
    %v781 = vpop.f32.mrb[0].mxu0
    %v782 = vadd.f32 %v621, %v781
    %783 = vmatprep.mubr.bf16.mxu0 0
    %784 = vmatmul.mubr.bf16.gmra.mrb[0].mxu0 %v239
    %v785 = vpop.f32.mrb[0].mxu0
    %v786 = vadd.f32 %v625, %v785
    %v787 = vpop.f32.mrb[0].mxu0
    %v788 = vadd.f32 %v627, %v787
    %v789 = vpop.f32.mrb[0].mxu0
    %v790 = vadd.f32 %v629, %v789
    %v791 = vpop.f32.mrb[0].mxu0
    %v792 = vadd.f32 %v631, %v791
    %793 = vmatprep.mubr.bf16.mxu0 0
    %794 = vmatmul.mubr.bf16.gmra.mrb[0].mxu0 %v242
    %v795 = vpop.f32.mrb[0].mxu0
    %v796 = vadd.f32 %v635, %v795
    %v797 = vpop.f32.mrb[0].mxu0
    %v798 = vadd.f32 %v637, %v797
    %v799 = vpop.f32.mrb[0].mxu0
    %v800 = vadd.f32 %v639, %v799
    %v801 = vpop.f32.mrb[0].mxu0
    %v802 = vadd.f32 %v641, %v801
    %803 = vmatprep.mubr.bf16.mxu0 0
    %804 = vmatmul.mubr.bf16.gmra.mrb[0].mxu0 %v245
    %v805 = vpop.f32.mrb[0].mxu0
    %v806 = vadd.f32 %v645, %v805
    %v807 = vpop.f32.mrb[0].mxu0
    %v808 = vadd.f32 %v647, %v807
    %v809 = vpop.f32.mrb[0].mxu0
    %v810 = vadd.f32 %v649, %v809
    %v811 = vpop.f32.mrb[0].mxu0
    %v812 = vadd.f32 %v651, %v811
    %813 = vmatprep.mubr.bf16.mxu0 0
    %814 = vmatmul.mubr.bf16.gmra.mrb[0].mxu0 %v248
    %v815 = vpop.f32.mrb[0].mxu0
    %v816 = vadd.f32 %v655, %v815
    %v817 = vpop.f32.mrb[0].mxu0
    %v818 = vadd.f32 %v657, %v817
    %v819 = vpop.f32.mrb[0].mxu0
    %v820 = vpop.f32.mrb[0].mxu0
    %821 = vdwg.mxu0
    %v822 = vmax.f32 %v696, 0.0
    %v823 = vmax.f32 %v698, 0.0
    %v824 = vmax.f32 %v700, 0.0
    %v825 = vmax.f32 %v702, 0.0
    %v826 = vmax.f32 %v706, 0.0
    %v827 = vmax.f32 %v708, 0.0
    %v828 = vmax.f32 %v710, 0.0
    %v829 = vmax.f32 %v712, 0.0
    %v830 = vmax.f32 %v716, 0.0
    %v831 = vmax.f32 %v718, 0.0
    %v832 = vmax.f32 %v720, 0.0
    %v833 = vmax.f32 %v722, 0.0
    %v834 = vmax.f32 %v726, 0.0
    %v835 = vmax.f32 %v728, 0.0
    %v836 = vmax.f32 %v730, 0.0
    %v837 = vmax.f32 %v732, 0.0
    %v838 = vmax.f32 %v736, 0.0
    %v839 = vmax.f32 %v738, 0.0
    %v840 = vmax.f32 %v740, 0.0
    %v841 = vmax.f32 %v742, 0.0
    %v842 = vmax.f32 %v746, 0.0
    %v843 = vmax.f32 %v748, 0.0
    %v844 = vmax.f32 %v750, 0.0
    %v845 = vmax.f32 %v752, 0.0
    %v846 = vmax.f32 %v756, 0.0
    %v847 = vmax.f32 %v758, 0.0
    %v848 = vmax.f32 %v760, 0.0
    %v849 = vmax.f32 %v762, 0.0
    %v850 = vmax.f32 %v766, 0.0
    %v851 = vmax.f32 %v768, 0.0
    %v852 = vmax.f32 %v770, 0.0
    %v853 = vmax.f32 %v772, 0.0
    %v854 = vmax.f32 %v776, 0.0
    %v855 = vmax.f32 %v778, 0.0
    %v856 = vmax.f32 %v780, 0.0
    %v857 = vmax.f32 %v782, 0.0
    %v858 = vmax.f32 %v786, 0.0
    %v859 = vmax.f32 %v788, 0.0
    %v860 = vmax.f32 %v790, 0.0
    %v861 = vmax.f32 %v792, 0.0
    %v862 = vmax.f32 %v796, 0.0
    %v863 = vmax.f32 %v798, 0.0
    %v864 = vmax.f32 %v800, 0.0
    %v865 = vmax.f32 %v802, 0.0
    %v866 = vmax.f32 %v806, 0.0
    %v867 = vmax.f32 %v808, 0.0
    %v868 = vmax.f32 %v810, 0.0
    %v869 = vmax.f32 %v812, 0.0
    %v870 = vmax.f32 %v816, 0.0
    %v871 = vmax.f32 %v818, 0.0
    %v872 = vld [vmem:[#allocation5 + $0x240] sm:$0xf]
    %v873 = vld [vmem:[#allocation5 + $0x24c] sm:$0xf]
    %v874 = vld [vmem:[#allocation5 + $0x258] sm:$0xf]
    %v875 = vld [vmem:[#allocation5 + $0x264] sm:$0xf]
    %v876 = vld [vmem:[#allocation5 + $0x270] sm:$0xf]
    %v877 = vld [vmem:[#allocation5 + $0x27c] sm:$0xf]
    %v878 = vld [vmem:[#allocation5 + $0x288] sm:$0xf]
    %v879 = vld [vmem:[#allocation5 + $0x294] sm:$0xf]
    %v880 = vld [vmem:[#allocation5 + $0x2a0] sm:$0xf]
    %v881 = vld [vmem:[#allocation5 + $0x2ac] sm:$0xf]
    %v882 = vld [vmem:[#allocation5 + $0x2b8] sm:$0xf]
    %v883 = vld [vmem:[#allocation5 + $0x2c4] sm:$0xf]
    %v884 = vld [vmem:[#allocation5 + $0x2d0] sm:$0xf]
    %v885 = vld [vmem:[#allocation5 + $0x2dc] sm:$0xf]
    %v886 = vld [vmem:[#allocation5 + $0x2e8] sm:$0xf]
    %v887 = vld [vmem:[#allocation5 + $0x2f4] sm:$0xf]
    %v888 = vld [vmem:[#allocation5 + $0x300] sm:$0xf]
    %v889 = vld [vmem:[#allocation5 + $0x30c] sm:$0xf]
    %v890 = vld [vmem:[#allocation5 + $0x318] sm:$0xf]
    %v891 = vld [vmem:[#allocation5 + $0x324] sm:$0xf]
    %v892 = vld [vmem:[#allocation5 + $0x330] sm:$0xf]
    %v893 = vld [vmem:[#allocation5 + $0x33c] sm:$0xf]
    %v894 = vld [vmem:[#allocation5 + $0x348] sm:$0xf]
    %v895 = vld [vmem:[#allocation5 + $0x354] sm:$0xf]
    %v896 = vld [vmem:[#allocation5 + $0x360] sm:$0xf]
    %v897 = vld [vmem:[#allocation5 + $0x36c] sm:$0xf]
    %v898 = vld [vmem:[#allocation5 + $0x378] sm:$0xf]
    %v899 = vld [vmem:[#allocation5 + $0x384] sm:$0xf]
    %v900 = vld [vmem:[#allocation5 + $0x390] sm:$0xf]
    %v901 = vld [vmem:[#allocation5 + $0x39c] sm:$0xf]
    %v902 = vld [vmem:[#allocation5 + $0x3a8] sm:$0xf]
    %v903 = vld [vmem:[#allocation5 + $0x3b4] sm:$0xf]
    %v904 = vld [vmem:[#allocation7 + $0x1] ss:$0 sm:$0xff]
    %v905 = vpack.c.bf16 %v824, %v822
    %v906 = vpack.c.bf16 %v825, %v823
    %v907 = vpack.c.bf16 %v828, %v826
    %v908 = vpack.c.bf16 %v829, %v827
    %v909 = vpack.c.bf16 %v832, %v830
    %v910 = vpack.c.bf16 %v833, %v831
    %v911 = vpack.c.bf16 %v836, %v834
    %v912 = vpack.c.bf16 %v837, %v835
    %v913 = vpack.c.bf16 %v840, %v838
    %v914 = vpack.c.bf16 %v841, %v839
    %v915 = vpack.c.bf16 %v844, %v842
    %v916 = vpack.c.bf16 %v845, %v843
    %v917 = vpack.c.bf16 %v848, %v846
    %v918 = vpack.c.bf16 %v849, %v847
    %v919 = vpack.c.bf16 %v852, %v850
    %v920 = vpack.c.bf16 %v853, %v851
    %v921 = vpack.c.bf16 %v856, %v854
    %v922 = vpack.c.bf16 %v857, %v855
    %v923 = vpack.c.bf16 %v860, %v858
    %v924 = vpack.c.bf16 %v861, %v859
    %v925 = vpack.c.bf16 %v864, %v862
    %v926 = vpack.c.bf16 %v865, %v863
    %v927 = vpack.c.bf16 %v868, %v866
    %v928 = vpack.c.bf16 %v869, %v867
    %v929 = vpack.c.bf16 %v870, %v870
    %v930 = vpack.c.bf16 %v871, %v871
    %v963 = vunpack.c.l.b16 %v872
    %v964 = vunpack.c.l.b16 %v873
    %v965 = vunpack.c.l.b16 %v874
    %v966 = vunpack.c.l.b16 %v875
    %v967 = vunpack.c.l.b16 %v876
    %v968 = vunpack.c.l.b16 %v877
    %v969 = vunpack.c.l.b16 %v878
    %v970 = vunpack.c.l.b16 %v879
    %v971 = vunpack.c.l.b16 %v880
    %v972 = vunpack.c.l.b16 %v881
    %v973 = vunpack.c.l.b16 %v882
    %v974 = vunpack.c.l.b16 %v883
    %v975 = vunpack.c.l.b16 %v884
    %v976 = vunpack.c.l.b16 %v885
    %v977 = vunpack.c.l.b16 %v886
    %v978 = vunpack.c.l.b16 %v887
    %v979 = vunpack.c.l.b16 %v888
    %v980 = vunpack.c.l.b16 %v889
    %v981 = vunpack.c.l.b16 %v890
    %v982 = vunpack.c.l.b16 %v891
    %v983 = vunpack.c.l.b16 %v892
    %v984 = vunpack.c.l.b16 %v893
    %v985 = vunpack.c.l.b16 %v894
    %v986 = vunpack.c.l.b16 %v895
    %v987 = vunpack.c.l.b16 %v896
    %v988 = vunpack.c.l.b16 %v897
    %v989 = vunpack.c.l.b16 %v898
    %v990 = vunpack.c.l.b16 %v899
    %v991 = vunpack.c.l.b16 %v900
    %v992 = vunpack.c.l.b16 %v901
    %v993 = vunpack.c.l.b16 %v902
    %v994 = vunpack.c.l.b16 %v903
    %v995 = vpack.c.b16 %v964, %v963
    %v996 = vpack.c.b16 %v966, %v965
    %v997 = vpack.c.b16 %v968, %v967
    %v998 = vpack.c.b16 %v970, %v969
    %v999 = vpack.c.b16 %v972, %v971
    %v1000 = vpack.c.b16 %v974, %v973
    %v1001 = vpack.c.b16 %v976, %v975
    %v1002 = vpack.c.b16 %v978, %v977
    %v1003 = vpack.c.b16 %v980, %v979
    %v1004 = vpack.c.b16 %v982, %v981
    %v1005 = vpack.c.b16 %v984, %v983
    %v1006 = vpack.c.b16 %v986, %v985
    %v1007 = vpack.c.b16 %v988, %v987
    %v1008 = vpack.c.b16 %v990, %v989
    %v1009 = vpack.c.b16 %v992, %v991
    %v1010 = vpack.c.b16 %v994, %v993
    %1027 = vmatprep.subr.bf16.mxu0 0
    %1028 = vmatpush1.bf16.msra.mxu0 %v995
    %1029 = vmatprep.subr.bf16.mxu0 0
    %1030 = vmatpush1.bf16.msra.mxu0 %v996
    %1031 = vmatprep.subr.bf16.mxu0 0
    %1032 = vmatpush1.bf16.msra.mxu0 %v997
    %1033 = vmatprep.subr.bf16.mxu0 0
    %1034 = vmatpush1.bf16.msra.mxu0 %v998
    %1035 = vmatprep.subr.bf16.mxu0 0
    %1036 = vmatpush1.bf16.msra.mxu0 %v999
    %1037 = vmatprep.subr.bf16.mxu0 0
    %1038 = vmatpush1.bf16.msra.mxu0 %v1000
    %1039 = vmatprep.subr.bf16.mxu0 0
    %1040 = vmatpush1.bf16.msra.mxu0 %v1001
    %1041 = vmatprep.subr.bf16.mxu0 0
    %1042 = vmatpush1.bf16.msra.mxu0 %v1002
    %1043 = vmatprep.subr.bf16.mxu0 0
    %1044 = vmatpush1.bf16.msra.mxu0 %v1003
    %1045 = vmatprep.subr.bf16.mxu0 0
    %1046 = vmatpush1.bf16.msra.mxu0 %v1004
    %1047 = vmatprep.subr.bf16.mxu0 0
    %1048 = vmatpush1.bf16.msra.mxu0 %v1005
    %1049 = vmatprep.subr.bf16.mxu0 0
    %1050 = vmatpush1.bf16.msra.mxu0 %v1006
    %1051 = vmatprep.subr.bf16.mxu0 0
    %1052 = vmatpush1.bf16.msra.mxu0 %v1007
    %1053 = vmatprep.subr.bf16.mxu0 0
    %1054 = vmatpush1.bf16.msra.mxu0 %v1008
    %1055 = vmatprep.subr.bf16.mxu0 0
    %1056 = vmatpush1.bf16.msra.mxu0 %v1009
    %1057 = vmatprep.subr.bf16.mxu0 0
    %1058 = vmatpush1.bf16.msra.mxu0 %v1010
    %1059 = vmatprep.mubr.bf16.mxu0 %v906
    %1060 = vmatmul.mubr.bf16.gmra.mrb[0].mxu0 %v905
    %v1061 = vpop.f32.mrb[0].mxu0
    %v1062 = vadd.f32 %v904, %v1061
    %v1063 = vpop.f32.mrb[0].mxu0
    %v1064 = vpop.f32.mrb[0].mxu0
    %v1065 = vadd.f32 %v904, %v1064
    %v1066 = vpop.f32.mrb[0].mxu0
    %1067 = vmatprep.mubr.bf16.mxu0 %v908
    %1068 = vmatmul.mubr.bf16.gmra.mrb[0].mxu0 %v907
    %v1069 = vpop.f32.mrb[0].mxu0
    %v1070 = vadd.f32 %v904, %v1069
    %v1071 = vpop.f32.mrb[0].mxu0
    %v1072 = vpop.f32.mrb[0].mxu0
    %v1073 = vadd.f32 %v904, %v1072
    %v1074 = vpop.f32.mrb[0].mxu0
    %1075 = vmatprep.mubr.bf16.mxu0 %v910
    %1076 = vmatmul.mubr.bf16.gmra.mrb[0].mxu0 %v909
    %v1077 = vpop.f32.mrb[0].mxu0
    %v1078 = vadd.f32 %v904, %v1077
    %v1079 = vpop.f32.mrb[0].mxu0
    %v1080 = vpop.f32.mrb[0].mxu0
    %v1081 = vadd.f32 %v904, %v1080
    %v1082 = vpop.f32.mrb[0].mxu0
    %1083 = vmatprep.mubr.bf16.mxu0 %v912
    %1084 = vmatmul.mubr.bf16.gmra.mrb[0].mxu0 %v911
    %v1085 = vpop.f32.mrb[0].mxu0
    %v1086 = vadd.f32 %v904, %v1085
    %v1087 = vpop.f32.mrb[0].mxu0
    %v1088 = vpop.f32.mrb[0].mxu0
    %v1089 = vadd.f32 %v904, %v1088
    %v1090 = vpop.f32.mrb[0].mxu0
    %1091 = vmatprep.mubr.bf16.mxu0 %v914
    %1092 = vmatmul.mubr.bf16.gmra.mrb[0].mxu0 %v913
    %v1093 = vpop.f32.mrb[0].mxu0
    %v1094 = vadd.f32 %v904, %v1093
    %v1095 = vpop.f32.mrb[0].mxu0
    %v1096 = vpop.f32.mrb[0].mxu0
    %v1097 = vadd.f32 %v904, %v1096
    %v1098 = vpop.f32.mrb[0].mxu0
    %1099 = vmatprep.mubr.bf16.mxu0 %v916
    %1100 = vmatmul.mubr.bf16.gmra.mrb[0].mxu0 %v915
    %v1101 = vpop.f32.mrb[0].mxu0
    %v1102 = vadd.f32 %v904, %v1101
    %v1103 = vpop.f32.mrb[0].mxu0
    %v1104 = vpop.f32.mrb[0].mxu0
    %v1105 = vadd.f32 %v904, %v1104
    %v1106 = vpop.f32.mrb[0].mxu0
    %1107 = vmatprep.mubr.bf16.mxu0 %v918
    %1108 = vmatmul.mubr.bf16.gmra.mrb[0].mxu0 %v917
    %v1109 = vpop.f32.mrb[0].mxu0
    %v1110 = vadd.f32 %v904, %v1109
    %v1111 = vpop.f32.mrb[0].mxu0
    %v1112 = vpop.f32.mrb[0].mxu0
    %v1113 = vadd.f32 %v904, %v1112
    %v1114 = vpop.f32.mrb[0].mxu0
    %1115 = vmatprep.mubr.bf16.mxu0 %v920
    %1116 = vmatmul.mubr.bf16.gmra.mrb[0].mxu0 %v919
    %v1117 = vpop.f32.mrb[0].mxu0
    %v1118 = vadd.f32 %v904, %v1117
    %v1119 = vpop.f32.mrb[0].mxu0
    %v1120 = vpop.f32.mrb[0].mxu0
    %v1121 = vadd.f32 %v904, %v1120
    %v1122 = vpop.f32.mrb[0].mxu0
    %1123 = vmatprep.mubr.bf16.mxu0 %v922
    %1124 = vmatmul.mubr.bf16.gmra.mrb[0].mxu0 %v921
    %v1125 = vpop.f32.mrb[0].mxu0
    %v1126 = vadd.f32 %v904, %v1125
    %v1127 = vpop.f32.mrb[0].mxu0
    %v1128 = vpop.f32.mrb[0].mxu0
    %v1129 = vadd.f32 %v904, %v1128
    %v1130 = vpop.f32.mrb[0].mxu0
    %1131 = vmatprep.mubr.bf16.mxu0 %v924
    %1132 = vmatmul.mubr.bf16.gmra.mrb[0].mxu0 %v923
    %v1133 = vpop.f32.mrb[0].mxu0
    %v1134 = vadd.f32 %v904, %v1133
    %v1135 = vpop.f32.mrb[0].mxu0
    %v1136 = vpop.f32.mrb[0].mxu0
    %v1137 = vadd.f32 %v904, %v1136
    %v1138 = vpop.f32.mrb[0].mxu0
    %1139 = vmatprep.mubr.bf16.mxu0 %v926
    %1140 = vmatmul.mubr.bf16.gmra.mrb[0].mxu0 %v925
    %v1141 = vpop.f32.mrb[0].mxu0
    %v1142 = vadd.f32 %v904, %v1141
    %v1143 = vpop.f32.mrb[0].mxu0
    %v1144 = vpop.f32.mrb[0].mxu0
    %v1145 = vadd.f32 %v904, %v1144
    %v1146 = vpop.f32.mrb[0].mxu0
    %1147 = vmatprep.mubr.bf16.mxu0 %v928
    %1148 = vmatmul.mubr.bf16.gmra.mrb[0].mxu0 %v927
    %v1149 = vpop.f32.mrb[0].mxu0
    %v1150 = vadd.f32 %v904, %v1149
    %v1151 = vpop.f32.mrb[0].mxu0
    %v1152 = vpop.f32.mrb[0].mxu0
    %v1153 = vadd.f32 %v904, %v1152
    %v1154 = vpop.f32.mrb[0].mxu0
    %1155 = vmatprep.mubr.bf16.mxu0 %v930
    %1156 = vmatmul.mubr.bf16.gmra.mrb[0].mxu0 %v929
    %v1157 = vpop.f32.mrb[0].mxu0
    %v1158 = vadd.f32 %v904, %v1157
    %v1159 = vpop.f32.mrb[0].mxu0
    %v1160 = vpop.f32.mrb[0].mxu0
    %v1161 = vpop.f32.mrb[0].mxu0
    %1162 = vdwg.mxu0
    %v1163 = vmax.f32 %v1062, 0.0
    %v1164 = vmax.f32 %v1065, 0.0
    %v1165 = vmax.f32 %v1070, 0.0
    %v1166 = vmax.f32 %v1073, 0.0
    %v1167 = vmax.f32 %v1078, 0.0
    %v1168 = vmax.f32 %v1081, 0.0
    %v1169 = vmax.f32 %v1086, 0.0
    %v1170 = vmax.f32 %v1089, 0.0
    %v1171 = vmax.f32 %v1094, 0.0
    %v1172 = vmax.f32 %v1097, 0.0
    %v1173 = vmax.f32 %v1102, 0.0
    %v1174 = vmax.f32 %v1105, 0.0
    %v1175 = vmax.f32 %v1110, 0.0
    %v1176 = vmax.f32 %v1113, 0.0
    %v1177 = vmax.f32 %v1118, 0.0
    %v1178 = vmax.f32 %v1121, 0.0
    %v1179 = vmax.f32 %v1126, 0.0
    %v1180 = vmax.f32 %v1129, 0.0
    %v1181 = vmax.f32 %v1134, 0.0
    %v1182 = vmax.f32 %v1137, 0.0
    %v1183 = vmax.f32 %v1142, 0.0
    %v1184 = vmax.f32 %v1145, 0.0
    %v1185 = vmax.f32 %v1150, 0.0
    %v1186 = vmax.f32 %v1153, 0.0
    %v1187 = vmax.f32 %v1158, 0.0
    %v1188 = vld [vmem:[#allocation5 + $0x3c0] sm:$0xf]
    %v1189 = vld [vmem:[#allocation5 + $0x3cc] sm:$0xf]
    %v1190 = vld [vmem:[#allocation5 + $0x3d8] sm:$0xf]
    %v1191 = vld [vmem:[#allocation5 + $0x3e4] sm:$0xf]
    %v1192 = vld [vmem:[#allocation5 + $0x3f0] sm:$0xf]
    %v1193 = vld [vmem:[#allocation5 + $0x3fc] sm:$0xf]
    %v1194 = vld [vmem:[#allocation5 + $0x408] sm:$0xf]
    %v1195 = vld [vmem:[#allocation5 + $0x414] sm:$0xf]
    %v1196 = vld [vmem:[#allocation5 + $0x420] sm:$0xf]
    %v1197 = vld [vmem:[#allocation5 + $0x42c] sm:$0xf]
    %v1198 = vld [vmem:[#allocation5 + $0x438] sm:$0xf]
    %v1199 = vld [vmem:[#allocation5 + $0x444] sm:$0xf]
    %v1200 = vld [vmem:[#allocation5 + $0x450] sm:$0xf]
    %v1201 = vld [vmem:[#allocation5 + $0x45c] sm:$0xf]
    %v1202 = vld [vmem:[#allocation5 + $0x468] sm:$0xf]
    %v1203 = vld [vmem:[#allocation5 + $0x474] sm:$0xf]
    %v1204 = vld [vmem:[#allocation7 + $0x2] ss:$0 sm:$0xff]
    %v1205 = vpack.c.bf16 %v1164, %v1163
    %v1206 = vpack.c.bf16 %v1166, %v1165
    %v1207 = vpack.c.bf16 %v1168, %v1167
    %v1208 = vpack.c.bf16 %v1170, %v1169
    %v1209 = vpack.c.bf16 %v1172, %v1171
    %v1210 = vpack.c.bf16 %v1174, %v1173
    %v1211 = vpack.c.bf16 %v1176, %v1175
    %v1212 = vpack.c.bf16 %v1178, %v1177
    %v1213 = vpack.c.bf16 %v1180, %v1179
    %v1214 = vpack.c.bf16 %v1182, %v1181
    %v1215 = vpack.c.bf16 %v1184, %v1183
    %v1216 = vpack.c.bf16 %v1186, %v1185
    %v1217 = vpack.c.bf16 %v1187, %v1187
    %v1234 = vunpack.c.l.b16 %v1188
    %v1235 = vunpack.c.l.b16 %v1189
    %v1236 = vunpack.c.l.b16 %v1190
    %v1237 = vunpack.c.l.b16 %v1191
    %v1238 = vunpack.c.l.b16 %v1192
    %v1239 = vunpack.c.l.b16 %v1193
    %v1240 = vunpack.c.l.b16 %v1194
    %v1241 = vunpack.c.l.b16 %v1195
    %v1242 = vunpack.c.l.b16 %v1196
    %v1243 = vunpack.c.l.b16 %v1197
    %v1244 = vunpack.c.l.b16 %v1198
    %v1245 = vunpack.c.l.b16 %v1199
    %v1246 = vunpack.c.l.b16 %v1200
    %v1247 = vunpack.c.l.b16 %v1201
    %v1248 = vunpack.c.l.b16 %v1202
    %v1249 = vunpack.c.l.b16 %v1203
    %v1250 = vpack.c.b16 %v1235, %v1234
    %v1251 = vpack.c.b16 %v1237, %v1236
    %v1252 = vpack.c.b16 %v1239, %v1238
    %v1253 = vpack.c.b16 %v1241, %v1240
    %v1254 = vpack.c.b16 %v1243, %v1242
    %v1255 = vpack.c.b16 %v1245, %v1244
    %v1256 = vpack.c.b16 %v1247, %v1246
    %v1257 = vpack.c.b16 %v1249, %v1248
    %1266 = vmatprep.subr.bf16.mxu0 0
    %1267 = vmatpush1.bf16.msra.mxu0 %v1250
    %1268 = vmatprep.subr.bf16.mxu0 0
    %1269 = vmatpush1.bf16.msra.mxu0 %v1251
    %1270 = vmatprep.subr.bf16.mxu0 0
    %1271 = vmatpush1.bf16.msra.mxu0 %v1252
    %1272 = vmatprep.subr.bf16.mxu0 0
    %1273 = vmatpush1.bf16.msra.mxu0 %v1253
    %1274 = vmatprep.subr.bf16.mxu0 0
    %1275 = vmatpush1.bf16.msra.mxu0 %v1254
    %1276 = vmatprep.subr.bf16.mxu0 0
    %1277 = vmatpush1.bf16.msra.mxu0 %v1255
    %1278 = vmatprep.subr.bf16.mxu0 0
    %1279 = vmatpush1.bf16.msra.mxu0 %v1256
    %1280 = vmatprep.subr.bf16.mxu0 0
    %1281 = vmatpush1.bf16.msra.mxu0 %v1257
    %1282 = vmatprep.subr.bf16.mxu0 0
    %1283 = vmatpush1.bf16.msra.mxu0 0
    %1284 = vmatprep.subr.bf16.mxu0 0
    %1285 = vmatpush1.bf16.msra.mxu0 0
    %1286 = vmatprep.subr.bf16.mxu0 0
    %1287 = vmatpush1.bf16.msra.mxu0 0
    %1288 = vmatprep.subr.bf16.mxu0 0
    %1289 = vmatpush1.bf16.msra.mxu0 0
    %1290 = vmatprep.subr.bf16.mxu0 0
    %1291 = vmatpush1.bf16.msra.mxu0 0
    %1292 = vmatprep.subr.bf16.mxu0 0
    %1293 = vmatpush1.bf16.msra.mxu0 0
    %1294 = vmatprep.subr.bf16.mxu0 0
    %1295 = vmatpush1.bf16.msra.mxu0 0
    %1296 = vmatprep.subr.bf16.mxu0 0
    %1297 = vmatpush1.bf16.msra.mxu0 0
    %1298 = vmatprep.mubr.bf16.mxu0 0
    %1299 = vmatmul.mubr.bf16.gmra.mrb[0].mxu0 %v1205
    %v1300 = vpop.f32.mrb[0].mxu0
    %v1301 = vadd.f32 %v1204, %v1300
    %v1302 = vpop.f32.mrb[0].mxu0
    %v1303 = vpop.f32.mrb[0].mxu0
    %v1304 = vadd.f32 %v1204, %v1303
    %v1305 = vpop.f32.mrb[0].mxu0
    %1306 = vmatprep.mubr.bf16.mxu0 0
    %1307 = vmatmul.mubr.bf16.gmra.mrb[0].mxu0 %v1206
    %v1308 = vpop.f32.mrb[0].mxu0
    %v1309 = vadd.f32 %v1204, %v1308
    %v1310 = vpop.f32.mrb[0].mxu0
    %v1311 = vpop.f32.mrb[0].mxu0
    %v1312 = vadd.f32 %v1204, %v1311
    %v1313 = vpop.f32.mrb[0].mxu0
    %1314 = vmatprep.mubr.bf16.mxu0 0
    %1315 = vmatmul.mubr.bf16.gmra.mrb[0].mxu0 %v1207
    %v1316 = vpop.f32.mrb[0].mxu0
    %v1317 = vadd.f32 %v1204, %v1316
    %v1318 = vpop.f32.mrb[0].mxu0
    %v1319 = vpop.f32.mrb[0].mxu0
    %v1320 = vadd.f32 %v1204, %v1319
    %v1321 = vpop.f32.mrb[0].mxu0
    %1322 = vmatprep.mubr.bf16.mxu0 0
    %1323 = vmatmul.mubr.bf16.gmra.mrb[0].mxu0 %v1208
    %v1324 = vpop.f32.mrb[0].mxu0
    %v1325 = vadd.f32 %v1204, %v1324
    %v1326 = vpop.f32.mrb[0].mxu0
    %v1327 = vpop.f32.mrb[0].mxu0
    %v1328 = vadd.f32 %v1204, %v1327
    %v1329 = vpop.f32.mrb[0].mxu0
    %1330 = vmatprep.mubr.bf16.mxu0 0
    %1331 = vmatmul.mubr.bf16.gmra.mrb[0].mxu0 %v1209
    %v1332 = vpop.f32.mrb[0].mxu0
    %v1333 = vadd.f32 %v1204, %v1332
    %v1334 = vpop.f32.mrb[0].mxu0
    %v1335 = vpop.f32.mrb[0].mxu0
    %v1336 = vadd.f32 %v1204, %v1335
    %v1337 = vpop.f32.mrb[0].mxu0
    %1338 = vmatprep.mubr.bf16.mxu0 0
    %1339 = vmatmul.mubr.bf16.gmra.mrb[0].mxu0 %v1210
    %v1340 = vpop.f32.mrb[0].mxu0
    %v1341 = vadd.f32 %v1204, %v1340
    %v1342 = vpop.f32.mrb[0].mxu0
    %v1343 = vpop.f32.mrb[0].mxu0
    %v1344 = vadd.f32 %v1204, %v1343
    %v1345 = vpop.f32.mrb[0].mxu0
    %1346 = vmatprep.mubr.bf16.mxu0 0
    %1347 = vmatmul.mubr.bf16.gmra.mrb[0].mxu0 %v1211
    %v1348 = vpop.f32.mrb[0].mxu0
    %v1349 = vadd.f32 %v1204, %v1348
    %v1350 = vpop.f32.mrb[0].mxu0
    %v1351 = vpop.f32.mrb[0].mxu0
    %v1352 = vadd.f32 %v1204, %v1351
    %v1353 = vpop.f32.mrb[0].mxu0
    %1354 = vmatprep.mubr.bf16.mxu0 0
    %1355 = vmatmul.mubr.bf16.gmra.mrb[0].mxu0 %v1212
    %v1356 = vpop.f32.mrb[0].mxu0
    %v1357 = vadd.f32 %v1204, %v1356
    %v1358 = vpop.f32.mrb[0].mxu0
    %v1359 = vpop.f32.mrb[0].mxu0
    %v1360 = vadd.f32 %v1204, %v1359
    %v1361 = vpop.f32.mrb[0].mxu0
    %1362 = vmatprep.mubr.bf16.mxu0 0
    %1363 = vmatmul.mubr.bf16.gmra.mrb[0].mxu0 %v1213
    %v1364 = vpop.f32.mrb[0].mxu0
    %v1365 = vadd.f32 %v1204, %v1364
    %v1366 = vpop.f32.mrb[0].mxu0
    %v1367 = vpop.f32.mrb[0].mxu0
    %v1368 = vadd.f32 %v1204, %v1367
    %v1369 = vpop.f32.mrb[0].mxu0
    %1370 = vmatprep.mubr.bf16.mxu0 0
    %1371 = vmatmul.mubr.bf16.gmra.mrb[0].mxu0 %v1214
    %v1372 = vpop.f32.mrb[0].mxu0
    %v1373 = vadd.f32 %v1204, %v1372
    %v1374 = vpop.f32.mrb[0].mxu0
    %v1375 = vpop.f32.mrb[0].mxu0
    %v1376 = vadd.f32 %v1204, %v1375
    %v1377 = vpop.f32.mrb[0].mxu0
    %1378 = vmatprep.mubr.bf16.mxu0 0
    %1379 = vmatmul.mubr.bf16.gmra.mrb[0].mxu0 %v1215
    %v1380 = vpop.f32.mrb[0].mxu0
    %v1381 = vadd.f32 %v1204, %v1380
    %v1382 = vpop.f32.mrb[0].mxu0
    %v1383 = vpop.f32.mrb[0].mxu0
    %v1384 = vadd.f32 %v1204, %v1383
    %v1385 = vpop.f32.mrb[0].mxu0
    %1386 = vmatprep.mubr.bf16.mxu0 0
    %1387 = vmatmul.mubr.bf16.gmra.mrb[0].mxu0 %v1216
    %v1388 = vpop.f32.mrb[0].mxu0
    %v1389 = vadd.f32 %v1204, %v1388
    %v1390 = vpop.f32.mrb[0].mxu0
    %v1391 = vpop.f32.mrb[0].mxu0
    %v1392 = vadd.f32 %v1204, %v1391
    %v1393 = vpop.f32.mrb[0].mxu0
    %1394 = vmatprep.mubr.bf16.mxu0 0
    %1395 = vmatmul.mubr.bf16.gmra.mrb[0].mxu0 %v1217
    %v1396 = vpop.f32.mrb[0].mxu0
    %v1397 = vadd.f32 %v1204, %v1396
    %v1398 = vpop.f32.mrb[0].mxu0
    %v1399 = vpop.f32.mrb[0].mxu0
    %v1400 = vpop.f32.mrb[0].mxu0
    %1401 = vdwg.mxu0
    %v1402 = vmax.f32 %v1301, 0.0
    %v1403 = vmax.f32 %v1304, 0.0
    %v1404 = vmax.f32 %v1309, 0.0
    %v1405 = vmax.f32 %v1312, 0.0
    %v1406 = vmax.f32 %v1317, 0.0
    %v1407 = vmax.f32 %v1320, 0.0
    %v1408 = vmax.f32 %v1325, 0.0
    %v1409 = vmax.f32 %v1328, 0.0
    %v1410 = vmax.f32 %v1333, 0.0
    %v1411 = vmax.f32 %v1336, 0.0
    %v1412 = vmax.f32 %v1341, 0.0
    %v1413 = vmax.f32 %v1344, 0.0
    %v1414 = vmax.f32 %v1349, 0.0
    %v1415 = vmax.f32 %v1352, 0.0
    %v1416 = vmax.f32 %v1357, 0.0
    %v1417 = vmax.f32 %v1360, 0.0
    %v1418 = vmax.f32 %v1365, 0.0
    %v1419 = vmax.f32 %v1368, 0.0
    %v1420 = vmax.f32 %v1373, 0.0
    %v1421 = vmax.f32 %v1376, 0.0
    %v1422 = vmax.f32 %v1381, 0.0
    %v1423 = vmax.f32 %v1384, 0.0
    %v1424 = vmax.f32 %v1389, 0.0
    %v1425 = vmax.f32 %v1392, 0.0
    %v1426 = vmax.f32 %v1397, 0.0
    %v1427 = vld [vmem:[#allocation5 + $0x480] sm:$0xf]
    %v1428 = vld [vmem:[#allocation5 + $0x48c] sm:$0xf]
    %v1429 = vld [vmem:[#allocation5 + $0x498] sm:$0xf]
    %v1430 = vld [vmem:[#allocation5 + $0x4a4] sm:$0xf]
    %v1431 = vld [vmem:[#allocation5 + $0x4b0] sm:$0xf]
    %v1432 = vld [vmem:[#allocation5 + $0x4bc] sm:$0xf]
    %v1433 = vld [vmem:[#allocation5 + $0x4c8] sm:$0xf]
    %v1434 = vld [vmem:[#allocation5 + $0x4d4] sm:$0xf]
    %v1435 = vld [vmem:[#allocation5 + $0x4e0] sm:$0xf]
    %v1436 = vld [vmem:[#allocation5 + $0x4ec] sm:$0xf]
    %v1437 = vld [vmem:[#allocation5 + $0x4f8] sm:$0xf]
    %v1438 = vld [vmem:[#allocation5 + $0x504] sm:$0xf]
    %v1439 = vld [vmem:[#allocation5 + $0x510] sm:$0xf]
    %v1440 = vld [vmem:[#allocation5 + $0x51c] sm:$0xf]
    %v1441 = vld [vmem:[#allocation5 + $0x528] sm:$0xf]
    %v1442 = vld [vmem:[#allocation5 + $0x534] sm:$0xf]
    %v1443 = vld [vmem:[#allocation7 + $0x3] ss:$0 sm:$0xff]
    %v1444 = vpack.c.bf16 %v1403, %v1402
    %v1445 = vpack.c.bf16 %v1405, %v1404
    %v1446 = vpack.c.bf16 %v1407, %v1406
    %v1447 = vpack.c.bf16 %v1409, %v1408
    %v1448 = vpack.c.bf16 %v1411, %v1410
    %v1449 = vpack.c.bf16 %v1413, %v1412
    %v1450 = vpack.c.bf16 %v1415, %v1414
    %v1451 = vpack.c.bf16 %v1417, %v1416
    %v1452 = vpack.c.bf16 %v1419, %v1418
    %v1453 = vpack.c.bf16 %v1421, %v1420
    %v1454 = vpack.c.bf16 %v1423, %v1422
    %v1455 = vpack.c.bf16 %v1425, %v1424
    %v1456 = vpack.c.bf16 %v1426, %v1426
    %v1473 = vunpack.c.l.b16 %v1427
    %v1474 = vunpack.c.l.b16 %v1428
    %v1475 = vunpack.c.l.b16 %v1429
    %v1476 = vunpack.c.l.b16 %v1430
    %v1477 = vunpack.c.l.b16 %v1431
    %v1478 = vunpack.c.l.b16 %v1432
    %v1479 = vunpack.c.l.b16 %v1433
    %v1480 = vunpack.c.l.b16 %v1434
    %v1481 = vunpack.c.l.b16 %v1435
    %v1482 = vunpack.c.l.b16 %v1436
    %v1483 = vunpack.c.l.b16 %v1437
    %v1484 = vunpack.c.l.b16 %v1438
    %v1485 = vunpack.c.l.b16 %v1439
    %v1486 = vunpack.c.l.b16 %v1440
    %v1487 = vunpack.c.l.b16 %v1441
    %v1488 = vunpack.c.l.b16 %v1442
    %v1489 = vpack.c.b16 %v1474, %v1473
    %v1490 = vpack.c.b16 %v1476, %v1475
    %v1491 = vpack.c.b16 %v1478, %v1477
    %v1492 = vpack.c.b16 %v1480, %v1479
    %v1493 = vpack.c.b16 %v1482, %v1481
    %v1494 = vpack.c.b16 %v1484, %v1483
    %v1495 = vpack.c.b16 %v1486, %v1485
    %v1496 = vpack.c.b16 %v1488, %v1487
    %1505 = vmatprep.subr.bf16.mxu0 0
    %1506 = vmatpush1.bf16.msra.mxu0 %v1489
    %1507 = vmatprep.subr.bf16.mxu0 0
    %1508 = vmatpush1.bf16.msra.mxu0 %v1490
    %1509 = vmatprep.subr.bf16.mxu0 0
    %1510 = vmatpush1.bf16.msra.mxu0 %v1491
    %1511 = vmatprep.subr.bf16.mxu0 0
    %1512 = vmatpush1.bf16.msra.mxu0 %v1492
    %1513 = vmatprep.subr.bf16.mxu0 0
    %1514 = vmatpush1.bf16.msra.mxu0 %v1493
    %1515 = vmatprep.subr.bf16.mxu0 0
    %1516 = vmatpush1.bf16.msra.mxu0 %v1494
    %1517 = vmatprep.subr.bf16.mxu0 0
    %1518 = vmatpush1.bf16.msra.mxu0 %v1495
    %1519 = vmatprep.subr.bf16.mxu0 0
    %1520 = vmatpush1.bf16.msra.mxu0 %v1496
    %1521 = vmatprep.subr.bf16.mxu0 0
    %1522 = vmatpush1.bf16.msra.mxu0 0
    %1523 = vmatprep.subr.bf16.mxu0 0
    %1524 = vmatpush1.bf16.msra.mxu0 0
    %1525 = vmatprep.subr.bf16.mxu0 0
    %1526 = vmatpush1.bf16.msra.mxu0 0
    %1527 = vmatprep.subr.bf16.mxu0 0
    %1528 = vmatpush1.bf16.msra.mxu0 0
    %1529 = vmatprep.subr.bf16.mxu0 0
    %1530 = vmatpush1.bf16.msra.mxu0 0
    %1531 = vmatprep.subr.bf16.mxu0 0
    %1532 = vmatpush1.bf16.msra.mxu0 0
    %1533 = vmatprep.subr.bf16.mxu0 0
    %1534 = vmatpush1.bf16.msra.mxu0 0
    %1535 = vmatprep.subr.bf16.mxu0 0
    %1536 = vmatpush1.bf16.msra.mxu0 0
    %1537 = vmatprep.mubr.bf16.mxu0 0
    %1538 = vmatmul.mubr.bf16.gmra.mrb[0].mxu0 %v1444
    %v1539 = vpop.f32.mrb[0].mxu0
    %v1540 = vadd.f32 %v1443, %v1539
    %v1541 = vpop.f32.mrb[0].mxu0
    %v1542 = vpop.f32.mrb[0].mxu0
    %v1543 = vadd.f32 %v1443, %v1542
    %v1544 = vpop.f32.mrb[0].mxu0
    %1545 = vmatprep.mubr.bf16.mxu0 0
    %1546 = vmatmul.mubr.bf16.gmra.mrb[0].mxu0 %v1445
    %v1547 = vpop.f32.mrb[0].mxu0
    %v1548 = vadd.f32 %v1443, %v1547
    %v1549 = vpop.f32.mrb[0].mxu0
    %v1550 = vpop.f32.mrb[0].mxu0
    %v1551 = vadd.f32 %v1443, %v1550
    %v1552 = vpop.f32.mrb[0].mxu0
    %1553 = vmatprep.mubr.bf16.mxu0 0
    %1554 = vmatmul.mubr.bf16.gmra.mrb[0].mxu0 %v1446
    %v1555 = vpop.f32.mrb[0].mxu0
    %v1556 = vadd.f32 %v1443, %v1555
    %v1557 = vpop.f32.mrb[0].mxu0
    %v1558 = vpop.f32.mrb[0].mxu0
    %v1559 = vadd.f32 %v1443, %v1558
    %v1560 = vpop.f32.mrb[0].mxu0
    %1561 = vmatprep.mubr.bf16.mxu0 0
    %1562 = vmatmul.mubr.bf16.gmra.mrb[0].mxu0 %v1447
    %v1563 = vpop.f32.mrb[0].mxu0
    %v1564 = vadd.f32 %v1443, %v1563
    %v1565 = vpop.f32.mrb[0].mxu0
    %v1566 = vpop.f32.mrb[0].mxu0
    %v1567 = vadd.f32 %v1443, %v1566
    %v1568 = vpop.f32.mrb[0].mxu0
    %1569 = vmatprep.mubr.bf16.mxu0 0
    %1570 = vmatmul.mubr.bf16.gmra.mrb[0].mxu0 %v1448
    %v1571 = vpop.f32.mrb[0].mxu0
    %v1572 = vadd.f32 %v1443, %v1571
    %v1573 = vpop.f32.mrb[0].mxu0
    %v1574 = vpop.f32.mrb[0].mxu0
    %v1575 = vadd.f32 %v1443, %v1574
    %v1576 = vpop.f32.mrb[0].mxu0
    %1577 = vmatprep.mubr.bf16.mxu0 0
    %1578 = vmatmul.mubr.bf16.gmra.mrb[0].mxu0 %v1449
    %v1579 = vpop.f32.mrb[0].mxu0
    %v1580 = vadd.f32 %v1443, %v1579
    %v1581 = vpop.f32.mrb[0].mxu0
    %v1582 = vpop.f32.mrb[0].mxu0
    %v1583 = vadd.f32 %v1443, %v1582
    %v1584 = vpop.f32.mrb[0].mxu0
    %1585 = vmatprep.mubr.bf16.mxu0 0
    %1586 = vmatmul.mubr.bf16.gmra.mrb[0].mxu0 %v1450
    %v1587 = vpop.f32.mrb[0].mxu0
    %v1588 = vadd.f32 %v1443, %v1587
    %v1589 = vpop.f32.mrb[0].mxu0
    %v1590 = vpop.f32.mrb[0].mxu0
    %v1591 = vadd.f32 %v1443, %v1590
    %v1592 = vpop.f32.mrb[0].mxu0
    %1593 = vmatprep.mubr.bf16.mxu0 0
    %1594 = vmatmul.mubr.bf16.gmra.mrb[0].mxu0 %v1451
    %v1595 = vpop.f32.mrb[0].mxu0
    %v1596 = vadd.f32 %v1443, %v1595
    %v1597 = vpop.f32.mrb[0].mxu0
    %v1598 = vpop.f32.mrb[0].mxu0
    %v1599 = vadd.f32 %v1443, %v1598
    %v1600 = vpop.f32.mrb[0].mxu0
    %1601 = vmatprep.mubr.bf16.mxu0 0
    %1602 = vmatmul.mubr.bf16.gmra.mrb[0].mxu0 %v1452
    %v1603 = vpop.f32.mrb[0].mxu0
    %v1604 = vadd.f32 %v1443, %v1603
    %v1605 = vpop.f32.mrb[0].mxu0
    %v1606 = vpop.f32.mrb[0].mxu0
    %v1607 = vadd.f32 %v1443, %v1606
    %v1608 = vpop.f32.mrb[0].mxu0
    %1609 = vmatprep.mubr.bf16.mxu0 0
    %1610 = vmatmul.mubr.bf16.gmra.mrb[0].mxu0 %v1453
    %v1611 = vpop.f32.mrb[0].mxu0
    %v1612 = vadd.f32 %v1443, %v1611
    %v1613 = vpop.f32.mrb[0].mxu0
    %v1614 = vpop.f32.mrb[0].mxu0
    %v1615 = vadd.f32 %v1443, %v1614
    %v1616 = vpop.f32.mrb[0].mxu0
    %1617 = vmatprep.mubr.bf16.mxu0 0
    %1618 = vmatmul.mubr.bf16.gmra.mrb[0].mxu0 %v1454
    %v1619 = vpop.f32.mrb[0].mxu0
    %v1620 = vadd.f32 %v1443, %v1619
    %v1621 = vpop.f32.mrb[0].mxu0
    %v1622 = vpop.f32.mrb[0].mxu0
    %v1623 = vadd.f32 %v1443, %v1622
    %v1624 = vpop.f32.mrb[0].mxu0
    %1625 = vmatprep.mubr.bf16.mxu0 0
    %1626 = vmatmul.mubr.bf16.gmra.mrb[0].mxu0 %v1455
    %v1627 = vpop.f32.mrb[0].mxu0
    %v1628 = vadd.f32 %v1443, %v1627
    %v1629 = vpop.f32.mrb[0].mxu0
    %v1630 = vpop.f32.mrb[0].mxu0
    %v1631 = vadd.f32 %v1443, %v1630
    %v1632 = vpop.f32.mrb[0].mxu0
    %1633 = vmatprep.mubr.bf16.mxu0 0
    %1634 = vmatmul.mubr.bf16.gmra.mrb[0].mxu0 %v1456
    %v1635 = vpop.f32.mrb[0].mxu0
    %v1636 = vadd.f32 %v1443, %v1635
    %v1637 = vpop.f32.mrb[0].mxu0
    %v1638 = vpop.f32.mrb[0].mxu0
    %v1639 = vpop.f32.mrb[0].mxu0
    %1640 = vdwg.mxu0
    %v1641 = vmax.f32 %v1540, 0.0
    %v1642 = vmax.f32 %v1543, 0.0
    %v1643 = vmax.f32 %v1548, 0.0
    %v1644 = vmax.f32 %v1551, 0.0
    %v1645 = vmax.f32 %v1556, 0.0
    %v1646 = vmax.f32 %v1559, 0.0
    %v1647 = vmax.f32 %v1564, 0.0
    %v1648 = vmax.f32 %v1567, 0.0
    %v1649 = vmax.f32 %v1572, 0.0
    %v1650 = vmax.f32 %v1575, 0.0
    %v1651 = vmax.f32 %v1580, 0.0
    %v1652 = vmax.f32 %v1583, 0.0
    %v1653 = vmax.f32 %v1588, 0.0
    %v1654 = vmax.f32 %v1591, 0.0
    %v1655 = vmax.f32 %v1596, 0.0
    %v1656 = vmax.f32 %v1599, 0.0
    %v1657 = vmax.f32 %v1604, 0.0
    %v1658 = vmax.f32 %v1607, 0.0
    %v1659 = vmax.f32 %v1612, 0.0
    %v1660 = vmax.f32 %v1615, 0.0
    %v1661 = vmax.f32 %v1620, 0.0
    %v1662 = vmax.f32 %v1623, 0.0
    %v1663 = vmax.f32 %v1628, 0.0
    %v1664 = vmax.f32 %v1631, 0.0
    %v1665 = vmax.f32 %v1636, 0.0
    %v1666 = vld [vmem:[#allocation5 + $0x540] sm:$0xf]
    %v1667 = vld [vmem:[#allocation5 + $0x54c] sm:$0xf]
    %v1668 = vld [vmem:[#allocation5 + $0x558] sm:$0xf]
    %v1669 = vld [vmem:[#allocation5 + $0x564] sm:$0xf]
    %v1670 = vld [vmem:[#allocation5 + $0x570] sm:$0xf]
    %v1671 = vld [vmem:[#allocation5 + $0x57c] sm:$0xf]
    %v1672 = vld [vmem:[#allocation5 + $0x588] sm:$0xf]
    %v1673 = vld [vmem:[#allocation5 + $0x594] sm:$0xf]
    %v1674 = vld [vmem:[#allocation5 + $0x5a0] sm:$0xf]
    %v1675 = vld [vmem:[#allocation5 + $0x5ac] sm:$0xf]
    %v1676 = vld [vmem:[#allocation5 + $0x5b8] sm:$0xf]
    %v1677 = vld [vmem:[#allocation5 + $0x5c4] sm:$0xf]
    %v1678 = vld [vmem:[#allocation5 + $0x5d0] sm:$0xf]
    %v1679 = vld [vmem:[#allocation5 + $0x5dc] sm:$0xf]
    %v1680 = vld [vmem:[#allocation5 + $0x5e8] sm:$0xf]
    %v1681 = vld [vmem:[#allocation5 + $0x5f4] sm:$0xf]
    %v1682 = vld [vmem:[#allocation7 + $0x4] ss:$0 sm:$0xff]
    %v1683 = vpack.c.bf16 %v1642, %v1641
    %v1684 = vpack.c.bf16 %v1644, %v1643
    %v1685 = vpack.c.bf16 %v1646, %v1645
    %v1686 = vpack.c.bf16 %v1648, %v1647
    %v1687 = vpack.c.bf16 %v1650, %v1649
    %v1688 = vpack.c.bf16 %v1652, %v1651
    %v1689 = vpack.c.bf16 %v1654, %v1653
    %v1690 = vpack.c.bf16 %v1656, %v1655
    %v1691 = vpack.c.bf16 %v1658, %v1657
    %v1692 = vpack.c.bf16 %v1660, %v1659
    %v1693 = vpack.c.bf16 %v1662, %v1661
    %v1694 = vpack.c.bf16 %v1664, %v1663
    %v1695 = vpack.c.bf16 %v1665, %v1665
    %v1712 = vunpack.c.l.b16 %v1666
    %v1713 = vunpack.c.l.b16 %v1667
    %v1714 = vunpack.c.l.b16 %v1668
    %v1715 = vunpack.c.l.b16 %v1669
    %v1716 = vunpack.c.l.b16 %v1670
    %v1717 = vunpack.c.l.b16 %v1671
    %v1718 = vunpack.c.l.b16 %v1672
    %v1719 = vunpack.c.l.b16 %v1673
    %v1720 = vunpack.c.l.b16 %v1674
    %v1721 = vunpack.c.l.b16 %v1675
    %v1722 = vunpack.c.l.b16 %v1676
    %v1723 = vunpack.c.l.b16 %v1677
    %v1724 = vunpack.c.l.b16 %v1678
    %v1725 = vunpack.c.l.b16 %v1679
    %v1726 = vunpack.c.l.b16 %v1680
    %v1727 = vunpack.c.l.b16 %v1681
    %v1728 = vpack.c.b16 %v1713, %v1712
    %v1729 = vpack.c.b16 %v1715, %v1714
    %v1730 = vpack.c.b16 %v1717, %v1716
    %v1731 = vpack.c.b16 %v1719, %v1718
    %v1732 = vpack.c.b16 %v1721, %v1720
    %v1733 = vpack.c.b16 %v1723, %v1722
    %v1734 = vpack.c.b16 %v1725, %v1724
    %v1735 = vpack.c.b16 %v1727, %v1726
    %1744 = vmatprep.subr.bf16.mxu0 0
    %1745 = vmatpush1.bf16.msra.mxu0 %v1728
    %1746 = vmatprep.subr.bf16.mxu0 0
    %1747 = vmatpush1.bf16.msra.mxu0 %v1729
    %1748 = vmatprep.subr.bf16.mxu0 0
    %1749 = vmatpush1.bf16.msra.mxu0 %v1730
    %1750 = vmatprep.subr.bf16.mxu0 0
    %1751 = vmatpush1.bf16.msra.mxu0 %v1731
    %1752 = vmatprep.subr.bf16.mxu0 0
    %1753 = vmatpush1.bf16.msra.mxu0 %v1732
    %1754 = vmatprep.subr.bf16.mxu0 0
    %1755 = vmatpush1.bf16.msra.mxu0 %v1733
    %1756 = vmatprep.subr.bf16.mxu0 0
    %1757 = vmatpush1.bf16.msra.mxu0 %v1734
    %1758 = vmatprep.subr.bf16.mxu0 0
    %1759 = vmatpush1.bf16.msra.mxu0 %v1735
    %1760 = vmatprep.subr.bf16.mxu0 0
    %1761 = vmatpush1.bf16.msra.mxu0 0
    %1762 = vmatprep.subr.bf16.mxu0 0
    %1763 = vmatpush1.bf16.msra.mxu0 0
    %1764 = vmatprep.subr.bf16.mxu0 0
    %1765 = vmatpush1.bf16.msra.mxu0 0
    %1766 = vmatprep.subr.bf16.mxu0 0
    %1767 = vmatpush1.bf16.msra.mxu0 0
    %1768 = vmatprep.subr.bf16.mxu0 0
    %1769 = vmatpush1.bf16.msra.mxu0 0
    %1770 = vmatprep.subr.bf16.mxu0 0
    %1771 = vmatpush1.bf16.msra.mxu0 0
    %1772 = vmatprep.subr.bf16.mxu0 0
    %1773 = vmatpush1.bf16.msra.mxu0 0
    %1774 = vmatprep.subr.bf16.mxu0 0
    %1775 = vmatpush1.bf16.msra.mxu0 0
    %1776 = vmatprep.mubr.bf16.mxu0 0
    %1777 = vmatmul.mubr.bf16.gmra.mrb[0].mxu0 %v1683
    %v1778 = vpop.f32.mrb[0].mxu0
    %v1779 = vadd.f32 %v1682, %v1778
    %v1780 = vpop.f32.mrb[0].mxu0
    %v1781 = vpop.f32.mrb[0].mxu0
    %v1782 = vadd.f32 %v1682, %v1781
    %v1783 = vpop.f32.mrb[0].mxu0
    %1784 = vmatprep.mubr.bf16.mxu0 0
    %1785 = vmatmul.mubr.bf16.gmra.mrb[0].mxu0 %v1684
    %v1786 = vpop.f32.mrb[0].mxu0
    %v1787 = vadd.f32 %v1682, %v1786
    %v1788 = vpop.f32.mrb[0].mxu0
    %v1789 = vpop.f32.mrb[0].mxu0
    %v1790 = vadd.f32 %v1682, %v1789
    %v1791 = vpop.f32.mrb[0].mxu0
    %1792 = vmatprep.mubr.bf16.mxu0 0
    %1793 = vmatmul.mubr.bf16.gmra.mrb[0].mxu0 %v1685
    %v1794 = vpop.f32.mrb[0].mxu0
    %v1795 = vadd.f32 %v1682, %v1794
    %v1796 = vpop.f32.mrb[0].mxu0
    %v1797 = vpop.f32.mrb[0].mxu0
    %v1798 = vadd.f32 %v1682, %v1797
    %v1799 = vpop.f32.mrb[0].mxu0
    %1800 = vmatprep.mubr.bf16.mxu0 0
    %1801 = vmatmul.mubr.bf16.gmra.mrb[0].mxu0 %v1686
    %v1802 = vpop.f32.mrb[0].mxu0
    %v1803 = vadd.f32 %v1682, %v1802
    %v1804 = vpop.f32.mrb[0].mxu0
    %v1805 = vpop.f32.mrb[0].mxu0
    %v1806 = vadd.f32 %v1682, %v1805
    %v1807 = vpop.f32.mrb[0].mxu0
    %1808 = vmatprep.mubr.bf16.mxu0 0
    %1809 = vmatmul.mubr.bf16.gmra.mrb[0].mxu0 %v1687
    %v1810 = vpop.f32.mrb[0].mxu0
    %v1811 = vadd.f32 %v1682, %v1810
    %v1812 = vpop.f32.mrb[0].mxu0
    %v1813 = vpop.f32.mrb[0].mxu0
    %v1814 = vadd.f32 %v1682, %v1813
    %v1815 = vpop.f32.mrb[0].mxu0
    %1816 = vmatprep.mubr.bf16.mxu0 0
    %1817 = vmatmul.mubr.bf16.gmra.mrb[0].mxu0 %v1688
    %v1818 = vpop.f32.mrb[0].mxu0
    %v1819 = vadd.f32 %v1682, %v1818
    %v1820 = vpop.f32.mrb[0].mxu0
    %v1821 = vpop.f32.mrb[0].mxu0
    %v1822 = vadd.f32 %v1682, %v1821
    %v1823 = vpop.f32.mrb[0].mxu0
    %1824 = vmatprep.mubr.bf16.mxu0 0
    %1825 = vmatmul.mubr.bf16.gmra.mrb[0].mxu0 %v1689
    %v1826 = vpop.f32.mrb[0].mxu0
    %v1827 = vadd.f32 %v1682, %v1826
    %v1828 = vpop.f32.mrb[0].mxu0
    %v1829 = vpop.f32.mrb[0].mxu0
    %v1830 = vadd.f32 %v1682, %v1829
    %v1831 = vpop.f32.mrb[0].mxu0
    %1832 = vmatprep.mubr.bf16.mxu0 0
    %1833 = vmatmul.mubr.bf16.gmra.mrb[0].mxu0 %v1690
    %v1834 = vpop.f32.mrb[0].mxu0
    %v1835 = vadd.f32 %v1682, %v1834
    %v1836 = vpop.f32.mrb[0].mxu0
    %v1837 = vpop.f32.mrb[0].mxu0
    %v1838 = vadd.f32 %v1682, %v1837
    %v1839 = vpop.f32.mrb[0].mxu0
    %1840 = vmatprep.mubr.bf16.mxu0 0
    %1841 = vmatmul.mubr.bf16.gmra.mrb[0].mxu0 %v1691
    %v1842 = vpop.f32.mrb[0].mxu0
    %v1843 = vadd.f32 %v1682, %v1842
    %v1844 = vpop.f32.mrb[0].mxu0
    %v1845 = vpop.f32.mrb[0].mxu0
    %v1846 = vadd.f32 %v1682, %v1845
    %v1847 = vpop.f32.mrb[0].mxu0
    %1848 = vmatprep.mubr.bf16.mxu0 0
    %1849 = vmatmul.mubr.bf16.gmra.mrb[0].mxu0 %v1692
    %v1850 = vpop.f32.mrb[0].mxu0
    %v1851 = vadd.f32 %v1682, %v1850
    %v1852 = vpop.f32.mrb[0].mxu0
    %v1853 = vpop.f32.mrb[0].mxu0
    %v1854 = vadd.f32 %v1682, %v1853
    %v1855 = vpop.f32.mrb[0].mxu0
    %1856 = vmatprep.mubr.bf16.mxu0 0
    %1857 = vmatmul.mubr.bf16.gmra.mrb[0].mxu0 %v1693
    %v1858 = vpop.f32.mrb[0].mxu0
    %v1859 = vadd.f32 %v1682, %v1858
    %v1860 = vpop.f32.mrb[0].mxu0
    %v1861 = vpop.f32.mrb[0].mxu0
    %v1862 = vadd.f32 %v1682, %v1861
    %v1863 = vpop.f32.mrb[0].mxu0
    %1864 = vmatprep.mubr.bf16.mxu0 0
    %1865 = vmatmul.mubr.bf16.gmra.mrb[0].mxu0 %v1694
    %v1866 = vpop.f32.mrb[0].mxu0
    %v1867 = vadd.f32 %v1682, %v1866
    %v1868 = vpop.f32.mrb[0].mxu0
    %v1869 = vpop.f32.mrb[0].mxu0
    %v1870 = vadd.f32 %v1682, %v1869
    %v1871 = vpop.f32.mrb[0].mxu0
    %1872 = vmatprep.mubr.bf16.mxu0 0
    %1873 = vmatmul.mubr.bf16.gmra.mrb[0].mxu0 %v1695
    %v1874 = vpop.f32.mrb[0].mxu0
    %v1875 = vadd.f32 %v1682, %v1874
    %v1876 = vpop.f32.mrb[0].mxu0
    %v1877 = vpop.f32.mrb[0].mxu0
    %v1878 = vpop.f32.mrb[0].mxu0
    %1879 = vdwg.mxu0
    %v1880 = vmax.f32 %v1779, 0.0
    %v1881 = vmax.f32 %v1782, 0.0
    %v1882 = vmax.f32 %v1787, 0.0
    %v1883 = vmax.f32 %v1790, 0.0
    %v1884 = vmax.f32 %v1795, 0.0
    %v1885 = vmax.f32 %v1798, 0.0
    %v1886 = vmax.f32 %v1803, 0.0
    %v1887 = vmax.f32 %v1806, 0.0
    %v1888 = vmax.f32 %v1811, 0.0
    %v1889 = vmax.f32 %v1814, 0.0
    %v1890 = vmax.f32 %v1819, 0.0
    %v1891 = vmax.f32 %v1822, 0.0
    %v1892 = vmax.f32 %v1827, 0.0
    %v1893 = vmax.f32 %v1830, 0.0
    %v1894 = vmax.f32 %v1835, 0.0
    %v1895 = vmax.f32 %v1838, 0.0
    %v1896 = vmax.f32 %v1843, 0.0
    %v1897 = vmax.f32 %v1846, 0.0
    %v1898 = vmax.f32 %v1851, 0.0
    %v1899 = vmax.f32 %v1854, 0.0
    %v1900 = vmax.f32 %v1859, 0.0
    %v1901 = vmax.f32 %v1862, 0.0
    %v1902 = vmax.f32 %v1867, 0.0
    %v1903 = vmax.f32 %v1870, 0.0
    %v1904 = vmax.f32 %v1875, 0.0
    %v1905 = vld [vmem:[#allocation5 + $0x600] sm:$0xf]
    %v1906 = vld [vmem:[#allocation5 + $0x60c] sm:$0xf]
    %v1907 = vld [vmem:[#allocation5 + $0x618] sm:$0xf]
    %v1908 = vld [vmem:[#allocation5 + $0x624] sm:$0xf]
    %v1909 = vld [vmem:[#allocation5 + $0x630] sm:$0xf]
    %v1910 = vld [vmem:[#allocation5 + $0x63c] sm:$0xf]
    %v1911 = vld [vmem:[#allocation5 + $0x648] sm:$0xf]
    %v1912 = vld [vmem:[#allocation5 + $0x654] sm:$0xf]
    %v1913 = vld [vmem:[#allocation5 + $0x660] sm:$0xf]
    %v1914 = vld [vmem:[#allocation5 + $0x66c] sm:$0xf]
    %v1915 = vld [vmem:[#allocation5 + $0x678] sm:$0xf]
    %v1916 = vld [vmem:[#allocation5 + $0x684] sm:$0xf]
    %v1917 = vld [vmem:[#allocation5 + $0x690] sm:$0xf]
    %v1918 = vld [vmem:[#allocation5 + $0x69c] sm:$0xf]
    %v1919 = vld [vmem:[#allocation5 + $0x6a8] sm:$0xf]
    %v1920 = vld [vmem:[#allocation5 + $0x6b4] sm:$0xf]
    %v1921 = vld [vmem:[#allocation7 + $0x5] ss:$0 sm:$0xff]
    %v1922 = vpack.c.bf16 %v1881, %v1880
    %v1923 = vpack.c.bf16 %v1883, %v1882
    %v1924 = vpack.c.bf16 %v1885, %v1884
    %v1925 = vpack.c.bf16 %v1887, %v1886
    %v1926 = vpack.c.bf16 %v1889, %v1888
    %v1927 = vpack.c.bf16 %v1891, %v1890
    %v1928 = vpack.c.bf16 %v1893, %v1892
    %v1929 = vpack.c.bf16 %v1895, %v1894
    %v1930 = vpack.c.bf16 %v1897, %v1896
    %v1931 = vpack.c.bf16 %v1899, %v1898
    %v1932 = vpack.c.bf16 %v1901, %v1900
    %v1933 = vpack.c.bf16 %v1903, %v1902
    %v1934 = vpack.c.bf16 %v1904, %v1904
    %v1951 = vunpack.c.l.b16 %v1905
    %v1952 = vunpack.c.l.b16 %v1906
    %v1953 = vunpack.c.l.b16 %v1907
    %v1954 = vunpack.c.l.b16 %v1908
    %v1955 = vunpack.c.l.b16 %v1909
    %v1956 = vunpack.c.l.b16 %v1910
    %v1957 = vunpack.c.l.b16 %v1911
    %v1958 = vunpack.c.l.b16 %v1912
    %v1959 = vunpack.c.l.b16 %v1913
    %v1960 = vunpack.c.l.b16 %v1914
    %v1961 = vunpack.c.l.b16 %v1915
    %v1962 = vunpack.c.l.b16 %v1916
    %v1963 = vunpack.c.l.b16 %v1917
    %v1964 = vunpack.c.l.b16 %v1918
    %v1965 = vunpack.c.l.b16 %v1919
    %v1966 = vunpack.c.l.b16 %v1920
    %v1967 = vpack.c.b16 %v1952, %v1951
    %v1968 = vpack.c.b16 %v1954, %v1953
    %v1969 = vpack.c.b16 %v1956, %v1955
    %v1970 = vpack.c.b16 %v1958, %v1957
    %v1971 = vpack.c.b16 %v1960, %v1959
    %v1972 = vpack.c.b16 %v1962, %v1961
    %v1973 = vpack.c.b16 %v1964, %v1963
    %v1974 = vpack.c.b16 %v1966, %v1965
    %1983 = vmatprep.subr.bf16.mxu0 0
    %1984 = vmatpush1.bf16.msra.mxu0 %v1967
    %1985 = vmatprep.subr.bf16.mxu0 0
    %1986 = vmatpush1.bf16.msra.mxu0 %v1968
    %1987 = vmatprep.subr.bf16.mxu0 0
    %1988 = vmatpush1.bf16.msra.mxu0 %v1969
    %1989 = vmatprep.subr.bf16.mxu0 0
    %1990 = vmatpush1.bf16.msra.mxu0 %v1970
    %1991 = vmatprep.subr.bf16.mxu0 0
    %1992 = vmatpush1.bf16.msra.mxu0 %v1971
    %1993 = vmatprep.subr.bf16.mxu0 0
    %1994 = vmatpush1.bf16.msra.mxu0 %v1972
    %1995 = vmatprep.subr.bf16.mxu0 0
    %1996 = vmatpush1.bf16.msra.mxu0 %v1973
    %1997 = vmatprep.subr.bf16.mxu0 0
    %1998 = vmatpush1.bf16.msra.mxu0 %v1974
    %1999 = vmatprep.subr.bf16.mxu0 0
    %2000 = vmatpush1.bf16.msra.mxu0 0
    %2001 = vmatprep.subr.bf16.mxu0 0
    %2002 = vmatpush1.bf16.msra.mxu0 0
    %2003 = vmatprep.subr.bf16.mxu0 0
    %2004 = vmatpush1.bf16.msra.mxu0 0
    %2005 = vmatprep.subr.bf16.mxu0 0
    %2006 = vmatpush1.bf16.msra.mxu0 0
    %2007 = vmatprep.subr.bf16.mxu0 0
    %2008 = vmatpush1.bf16.msra.mxu0 0
    %2009 = vmatprep.subr.bf16.mxu0 0
    %2010 = vmatpush1.bf16.msra.mxu0 0
    %2011 = vmatprep.subr.bf16.mxu0 0
    %2012 = vmatpush1.bf16.msra.mxu0 0
    %2013 = vmatprep.subr.bf16.mxu0 0
    %2014 = vmatpush1.bf16.msra.mxu0 0
    %2015 = vmatprep.mubr.bf16.mxu0 0
    %2016 = vmatmul.mubr.bf16.gmra.mrb[0].mxu0 %v1922
    %v2017 = vpop.f32.mrb[0].mxu0
    %v2018 = vadd.f32 %v1921, %v2017
    %v2019 = vpop.f32.mrb[0].mxu0
    %v2020 = vpop.f32.mrb[0].mxu0
    %v2021 = vadd.f32 %v1921, %v2020
    %v2022 = vpop.f32.mrb[0].mxu0
    %2023 = vmatprep.mubr.bf16.mxu0 0
    %2024 = vmatmul.mubr.bf16.gmra.mrb[0].mxu0 %v1923
    %v2025 = vpop.f32.mrb[0].mxu0
    %v2026 = vadd.f32 %v1921, %v2025
    %v2027 = vpop.f32.mrb[0].mxu0
    %v2028 = vpop.f32.mrb[0].mxu0
    %v2029 = vadd.f32 %v1921, %v2028
    %v2030 = vpop.f32.mrb[0].mxu0
    %2031 = vmatprep.mubr.bf16.mxu0 0
    %2032 = vmatmul.mubr.bf16.gmra.mrb[0].mxu0 %v1924
    %v2033 = vpop.f32.mrb[0].mxu0
    %v2034 = vadd.f32 %v1921, %v2033
    %v2035 = vpop.f32.mrb[0].mxu0
    %v2036 = vpop.f32.mrb[0].mxu0
    %v2037 = vadd.f32 %v1921, %v2036
    %v2038 = vpop.f32.mrb[0].mxu0
    %2039 = vmatprep.mubr.bf16.mxu0 0
    %2040 = vmatmul.mubr.bf16.gmra.mrb[0].mxu0 %v1925
    %v2041 = vpop.f32.mrb[0].mxu0
    %v2042 = vadd.f32 %v1921, %v2041
    %v2043 = vpop.f32.mrb[0].mxu0
    %v2044 = vpop.f32.mrb[0].mxu0
    %v2045 = vadd.f32 %v1921, %v2044
    %v2046 = vpop.f32.mrb[0].mxu0
    %2047 = vmatprep.mubr.bf16.mxu0 0
    %2048 = vmatmul.mubr.bf16.gmra.mrb[0].mxu0 %v1926
    %v2049 = vpop.f32.mrb[0].mxu0
    %v2050 = vadd.f32 %v1921, %v2049
    %v2051 = vpop.f32.mrb[0].mxu0
    %v2052 = vpop.f32.mrb[0].mxu0
    %v2053 = vadd.f32 %v1921, %v2052
    %v2054 = vpop.f32.mrb[0].mxu0
    %2055 = vmatprep.mubr.bf16.mxu0 0
    %2056 = vmatmul.mubr.bf16.gmra.mrb[0].mxu0 %v1927
    %v2057 = vpop.f32.mrb[0].mxu0
    %v2058 = vadd.f32 %v1921, %v2057
    %v2059 = vpop.f32.mrb[0].mxu0
    %v2060 = vpop.f32.mrb[0].mxu0
    %v2061 = vadd.f32 %v1921, %v2060
    %v2062 = vpop.f32.mrb[0].mxu0
    %2063 = vmatprep.mubr.bf16.mxu0 0
    %2064 = vmatmul.mubr.bf16.gmra.mrb[0].mxu0 %v1928
    %v2065 = vpop.f32.mrb[0].mxu0
    %v2066 = vadd.f32 %v1921, %v2065
    %v2067 = vpop.f32.mrb[0].mxu0
    %v2068 = vpop.f32.mrb[0].mxu0
    %v2069 = vadd.f32 %v1921, %v2068
    %v2070 = vpop.f32.mrb[0].mxu0
    %2071 = vmatprep.mubr.bf16.mxu0 0
    %2072 = vmatmul.mubr.bf16.gmra.mrb[0].mxu0 %v1929
    %v2073 = vpop.f32.mrb[0].mxu0
    %v2074 = vadd.f32 %v1921, %v2073
    %v2075 = vpop.f32.mrb[0].mxu0
    %v2076 = vpop.f32.mrb[0].mxu0
    %v2077 = vadd.f32 %v1921, %v2076
    %v2078 = vpop.f32.mrb[0].mxu0
    %2079 = vmatprep.mubr.bf16.mxu0 0
    %2080 = vmatmul.mubr.bf16.gmra.mrb[0].mxu0 %v1930
    %v2081 = vpop.f32.mrb[0].mxu0
    %v2082 = vadd.f32 %v1921, %v2081
    %v2083 = vpop.f32.mrb[0].mxu0
    %v2084 = vpop.f32.mrb[0].mxu0
    %v2085 = vadd.f32 %v1921, %v2084
    %v2086 = vpop.f32.mrb[0].mxu0
    %2087 = vmatprep.mubr.bf16.mxu0 0
    %2088 = vmatmul.mubr.bf16.gmra.mrb[0].mxu0 %v1931
    %v2089 = vpop.f32.mrb[0].mxu0
    %v2090 = vadd.f32 %v1921, %v2089
    %v2091 = vpop.f32.mrb[0].mxu0
    %v2092 = vpop.f32.mrb[0].mxu0
    %v2093 = vadd.f32 %v1921, %v2092
    %v2094 = vpop.f32.mrb[0].mxu0
    %2095 = vmatprep.mubr.bf16.mxu0 0
    %2096 = vmatmul.mubr.bf16.gmra.mrb[0].mxu0 %v1932
    %v2097 = vpop.f32.mrb[0].mxu0
    %v2098 = vadd.f32 %v1921, %v2097
    %v2099 = vpop.f32.mrb[0].mxu0
    %v2100 = vpop.f32.mrb[0].mxu0
    %v2101 = vadd.f32 %v1921, %v2100
    %v2102 = vpop.f32.mrb[0].mxu0
    %2103 = vmatprep.mubr.bf16.mxu0 0
    %2104 = vmatmul.mubr.bf16.gmra.mrb[0].mxu0 %v1933
    %v2105 = vpop.f32.mrb[0].mxu0
    %v2106 = vadd.f32 %v1921, %v2105
    %v2107 = vpop.f32.mrb[0].mxu0
    %v2108 = vpop.f32.mrb[0].mxu0
    %v2109 = vadd.f32 %v1921, %v2108
    %v2110 = vpop.f32.mrb[0].mxu0
    %2111 = vmatprep.mubr.bf16.mxu0 0
    %2112 = vmatmul.mubr.bf16.gmra.mrb[0].mxu0 %v1934
    %v2113 = vpop.f32.mrb[0].mxu0
    %v2114 = vadd.f32 %v1921, %v2113
    %v2115 = vpop.f32.mrb[0].mxu0
    %v2116 = vpop.f32.mrb[0].mxu0
    %v2117 = vpop.f32.mrb[0].mxu0
    %2118 = vdwg.mxu0
    %v2119 = vxor.u32 %v2018, 2147483648
    %v2120 = vxor.u32 %v2021, 2147483648
    %v2121 = vxor.u32 %v2026, 2147483648
    %v2122 = vxor.u32 %v2029, 2147483648
    %v2123 = vxor.u32 %v2034, 2147483648
    %v2124 = vxor.u32 %v2037, 2147483648
    %v2125 = vxor.u32 %v2042, 2147483648
    %v2126 = vxor.u32 %v2045, 2147483648
    %v2127 = vxor.u32 %v2050, 2147483648
    %v2128 = vxor.u32 %v2053, 2147483648
    %v2129 = vxor.u32 %v2058, 2147483648
    %v2130 = vxor.u32 %v2061, 2147483648
    %v2131 = vxor.u32 %v2066, 2147483648
    %v2132 = vxor.u32 %v2069, 2147483648
    %v2133 = vxor.u32 %v2074, 2147483648
    %v2134 = vxor.u32 %v2077, 2147483648
    %v2135 = vxor.u32 %v2082, 2147483648
    %v2136 = vxor.u32 %v2085, 2147483648
    %v2137 = vxor.u32 %v2090, 2147483648
    %v2138 = vxor.u32 %v2093, 2147483648
    %v2139 = vxor.u32 %v2098, 2147483648
    %v2140 = vxor.u32 %v2101, 2147483648
    %v2141 = vxor.u32 %v2106, 2147483648
    %v2142 = vxor.u32 %v2109, 2147483648
    %v2143 = vxor.u32 %v2114, 2147483648
    %v2144 = vmul.f32 %v2119, 1.442695
    %v2145 = vpow.pop %v2144
    %v2146 = vmul.f32 %v2120, 1.442695
    %v2147 = vpow.pop %v2146
    %v2148 = vmul.f32 %v2121, 1.442695
    %v2149 = vpow.pop %v2148
    %v2150 = vmul.f32 %v2122, 1.442695
    %v2151 = vpow.pop %v2150
    %v2152 = vmul.f32 %v2123, 1.442695
    %v2153 = vpow.pop %v2152
    %v2154 = vmul.f32 %v2124, 1.442695
    %v2155 = vpow.pop %v2154
    %v2156 = vmul.f32 %v2125, 1.442695
    %v2157 = vpow.pop %v2156
    %v2158 = vmul.f32 %v2126, 1.442695
    %v2159 = vpow.pop %v2158
    %v2160 = vmul.f32 %v2127, 1.442695
    %v2161 = vpow.pop %v2160
    %v2162 = vmul.f32 %v2128, 1.442695
    %v2163 = vpow.pop %v2162
    %v2164 = vmul.f32 %v2129, 1.442695
    %v2165 = vpow.pop %v2164
    %v2166 = vmul.f32 %v2130, 1.442695
    %v2167 = vpow.pop %v2166
    %v2168 = vmul.f32 %v2131, 1.442695
    %v2169 = vpow.pop %v2168
    %v2170 = vmul.f32 %v2132, 1.442695
    %v2171 = vpow.pop %v2170
    %v2172 = vmul.f32 %v2133, 1.442695
    %v2173 = vpow.pop %v2172
    %v2174 = vmul.f32 %v2134, 1.442695
    %v2175 = vpow.pop %v2174
    %v2176 = vmul.f32 %v2135, 1.442695
    %v2177 = vpow.pop %v2176
    %v2178 = vmul.f32 %v2136, 1.442695
    %v2179 = vpow.pop %v2178
    %v2180 = vmul.f32 %v2137, 1.442695
    %v2181 = vpow.pop %v2180
    %v2182 = vmul.f32 %v2138, 1.442695
    %v2183 = vpow.pop %v2182
    %v2184 = vmul.f32 %v2139, 1.442695
    %v2185 = vpow.pop %v2184
    %v2186 = vmul.f32 %v2140, 1.442695
    %v2187 = vpow.pop %v2186
    %v2188 = vmul.f32 %v2141, 1.442695
    %v2189 = vpow.pop %v2188
    %v2190 = vmul.f32 %v2142, 1.442695
    %v2191 = vpow.pop %v2190
    %v2192 = vmul.f32 %v2143, 1.442695
    %v2193 = vpow.pop %v2192
    %v2194 = vadd.f32 %v2145, 1.0
    %v2195 = vadd.f32 %v2147, 1.0
    %v2196 = vadd.f32 %v2149, 1.0
    %v2197 = vadd.f32 %v2151, 1.0
    %v2198 = vadd.f32 %v2153, 1.0
    %v2199 = vadd.f32 %v2155, 1.0
    %v2200 = vadd.f32 %v2157, 1.0
    %v2201 = vadd.f32 %v2159, 1.0
    %v2202 = vadd.f32 %v2161, 1.0
    %v2203 = vadd.f32 %v2163, 1.0
    %v2204 = vadd.f32 %v2165, 1.0
    %v2205 = vadd.f32 %v2167, 1.0
    %v2206 = vadd.f32 %v2169, 1.0
    %v2207 = vadd.f32 %v2171, 1.0
    %v2208 = vadd.f32 %v2173, 1.0
    %v2209 = vadd.f32 %v2175, 1.0
    %v2210 = vadd.f32 %v2177, 1.0
    %v2211 = vadd.f32 %v2179, 1.0
    %v2212 = vadd.f32 %v2181, 1.0
    %v2213 = vadd.f32 %v2183, 1.0
    %v2214 = vadd.f32 %v2185, 1.0
    %v2215 = vadd.f32 %v2187, 1.0
    %v2216 = vadd.f32 %v2189, 1.0
    %v2217 = vadd.f32 %v2191, 1.0
    %v2218 = vadd.f32 %v2193, 1.0
    %v2219 = vrcp.pop %v2194
    %v2220 = vmul.f32 1.0, %v2219
    %v2221 = vrcp.pop %v2195
    %v2222 = vmul.f32 1.0, %v2221
    %v2223 = vrcp.pop %v2196
    %v2224 = vmul.f32 1.0, %v2223
    %v2225 = vrcp.pop %v2197
    %v2226 = vmul.f32 1.0, %v2225
    %v2227 = vrcp.pop %v2198
    %v2228 = vmul.f32 1.0, %v2227
    %v2229 = vrcp.pop %v2199
    %v2230 = vmul.f32 1.0, %v2229
    %v2231 = vrcp.pop %v2200
    %v2232 = vmul.f32 1.0, %v2231
    %v2233 = vrcp.pop %v2201
    %v2234 = vmul.f32 1.0, %v2233
    %v2235 = vrcp.pop %v2202
    %v2236 = vmul.f32 1.0, %v2235
    %v2237 = vrcp.pop %v2203
    %v2238 = vmul.f32 1.0, %v2237
    %v2239 = vrcp.pop %v2204
    %v2240 = vmul.f32 1.0, %v2239
    %v2241 = vrcp.pop %v2205
    %v2242 = vmul.f32 1.0, %v2241
    %v2243 = vrcp.pop %v2206
    %v2244 = vmul.f32 1.0, %v2243
    %v2245 = vrcp.pop %v2207
    %v2246 = vmul.f32 1.0, %v2245
    %v2247 = vrcp.pop %v2208
    %v2248 = vmul.f32 1.0, %v2247
    %v2249 = vrcp.pop %v2209
    %v2250 = vmul.f32 1.0, %v2249
    %v2251 = vrcp.pop %v2210
    %v2252 = vmul.f32 1.0, %v2251
    %v2253 = vrcp.pop %v2211
    %v2254 = vmul.f32 1.0, %v2253
    %v2255 = vrcp.pop %v2212
    %v2256 = vmul.f32 1.0, %v2255
    %v2257 = vrcp.pop %v2213
    %v2258 = vmul.f32 1.0, %v2257
    %v2259 = vrcp.pop %v2214
    %v2260 = vmul.f32 1.0, %v2259
    %v2261 = vrcp.pop %v2215
    %v2262 = vmul.f32 1.0, %v2261
    %v2263 = vrcp.pop %v2216
    %v2264 = vmul.f32 1.0, %v2263
    %v2265 = vrcp.pop %v2217
    %v2266 = vmul.f32 1.0, %v2265
    %v2267 = vrcp.pop %v2218
    %v2268 = vmul.f32 1.0, %v2267
    %v2269 = vld [vmem:[#allocation5 + $0x6c0] sm:$0xf]
    %v2270 = vld [vmem:[#allocation5 + $0x6cc] sm:$0xf]
    %v2271 = vld [vmem:[#allocation5 + $0x6d8] sm:$0xf]
    %v2272 = vld [vmem:[#allocation5 + $0x6e4] sm:$0xf]
    %v2273 = vld [vmem:[#allocation5 + $0x6f0] sm:$0xf]
    %v2274 = vld [vmem:[#allocation5 + $0x6fc] sm:$0xf]
    %v2275 = vld [vmem:[#allocation5 + $0x708] sm:$0xf]
    %v2276 = vld [vmem:[#allocation5 + $0x714] sm:$0xf]
    %v2277 = vld [vmem:[#allocation5 + $0x720] sm:$0xf]
    %v2278 = vld [vmem:[#allocation5 + $0x72c] sm:$0xf]
    %v2279 = vld [vmem:[#allocation5 + $0x738] sm:$0xf]
    %v2280 = vld [vmem:[#allocation5 + $0x744] sm:$0xf]
    %v2281 = vld [vmem:[#allocation5 + $0x750] sm:$0xf]
    %v2282 = vld [vmem:[#allocation5 + $0x75c] sm:$0xf]
    %v2283 = vld [vmem:[#allocation5 + $0x768] sm:$0xf]
    %v2284 = vld [vmem:[#allocation5 + $0x774] sm:$0xf]
    %v2285 = vld [vmem:[#allocation7 + $0x6] ss:$0 sm:$0xff]
    %v2286 = vpack.c.bf16 %v2222, %v2220
    %v2287 = vpack.c.bf16 %v2226, %v2224
    %v2288 = vpack.c.bf16 %v2230, %v2228
    %v2289 = vpack.c.bf16 %v2234, %v2232
    %v2290 = vpack.c.bf16 %v2238, %v2236
    %v2291 = vpack.c.bf16 %v2242, %v2240
    %v2292 = vpack.c.bf16 %v2246, %v2244
    %v2293 = vpack.c.bf16 %v2250, %v2248
    %v2294 = vpack.c.bf16 %v2254, %v2252
    %v2295 = vpack.c.bf16 %v2258, %v2256
    %v2296 = vpack.c.bf16 %v2262, %v2260
    %v2297 = vpack.c.bf16 %v2266, %v2264
    %v2298 = vpack.c.bf16 %v2268, %v2268
    %v2315 = vunpack.c.l.b16 %v2269
    %v2316 = vunpack.c.l.b16 %v2270
    %v2317 = vunpack.c.l.b16 %v2271
    %v2318 = vunpack.c.l.b16 %v2272
    %v2319 = vunpack.c.l.b16 %v2273
    %v2320 = vunpack.c.l.b16 %v2274
    %v2321 = vunpack.c.l.b16 %v2275
    %v2322 = vunpack.c.l.b16 %v2276
    %v2323 = vunpack.c.l.b16 %v2277
    %v2324 = vunpack.c.l.b16 %v2278
    %v2325 = vunpack.c.l.b16 %v2279
    %v2326 = vunpack.c.l.b16 %v2280
    %v2327 = vunpack.c.l.b16 %v2281
    %v2328 = vunpack.c.l.b16 %v2282
    %v2329 = vunpack.c.l.b16 %v2283
    %v2330 = vunpack.c.l.b16 %v2284
    %v2331 = vpack.c.b16 %v2316, %v2315
    %v2332 = vpack.c.b16 %v2318, %v2317
    %v2333 = vpack.c.b16 %v2320, %v2319
    %v2334 = vpack.c.b16 %v2322, %v2321
    %v2335 = vpack.c.b16 %v2324, %v2323
    %v2336 = vpack.c.b16 %v2326, %v2325
    %v2337 = vpack.c.b16 %v2328, %v2327
    %v2338 = vpack.c.b16 %v2330, %v2329
    %2347 = vmatprep.subr.bf16.mxu0 0
    %2348 = vmatpush1.bf16.msra.mxu0 %v2331
    %2349 = vmatprep.subr.bf16.mxu0 0
    %2350 = vmatpush1.bf16.msra.mxu0 %v2332
    %2351 = vmatprep.subr.bf16.mxu0 0
    %2352 = vmatpush1.bf16.msra.mxu0 %v2333
    %2353 = vmatprep.subr.bf16.mxu0 0
    %2354 = vmatpush1.bf16.msra.mxu0 %v2334
    %2355 = vmatprep.subr.bf16.mxu0 0
    %2356 = vmatpush1.bf16.msra.mxu0 %v2335
    %2357 = vmatprep.subr.bf16.mxu0 0
    %2358 = vmatpush1.bf16.msra.mxu0 %v2336
    %2359 = vmatprep.subr.bf16.mxu0 0
    %2360 = vmatpush1.bf16.msra.mxu0 %v2337
    %2361 = vmatprep.subr.bf16.mxu0 0
    %2362 = vmatpush1.bf16.msra.mxu0 %v2338
    %2363 = vmatprep.subr.bf16.mxu0 0
    %2364 = vmatpush1.bf16.msra.mxu0 0
    %2365 = vmatprep.subr.bf16.mxu0 0
    %2366 = vmatpush1.bf16.msra.mxu0 0
    %2367 = vmatprep.subr.bf16.mxu0 0
    %2368 = vmatpush1.bf16.msra.mxu0 0
    %2369 = vmatprep.subr.bf16.mxu0 0
    %2370 = vmatpush1.bf16.msra.mxu0 0
    %2371 = vmatprep.subr.bf16.mxu0 0
    %2372 = vmatpush1.bf16.msra.mxu0 0
    %2373 = vmatprep.subr.bf16.mxu0 0
    %2374 = vmatpush1.bf16.msra.mxu0 0
    %2375 = vmatprep.subr.bf16.mxu0 0
    %2376 = vmatpush1.bf16.msra.mxu0 0
    %2377 = vmatprep.subr.bf16.mxu0 0
    %2378 = vmatpush1.bf16.msra.mxu0 0
    %2379 = vmatprep.mubr.bf16.mxu0 0
    %2380 = vmatmul.mubr.bf16.gmra.mrb[0].mxu0 %v2286
    %v2381 = vpop.f32.mrb[0].mxu0
    %v2382 = vadd.f32 %v2285, %v2381
    %v2383 = vpop.f32.mrb[0].mxu0
    %v2384 = vpop.f32.mrb[0].mxu0
    %v2385 = vadd.f32 %v2285, %v2384
    %v2386 = vpop.f32.mrb[0].mxu0
    %2387 = vmatprep.mubr.bf16.mxu0 0
    %2388 = vmatmul.mubr.bf16.gmra.mrb[0].mxu0 %v2287
    %v2389 = vpop.f32.mrb[0].mxu0
    %v2390 = vadd.f32 %v2285, %v2389
    %v2391 = vpop.f32.mrb[0].mxu0
    %v2392 = vpop.f32.mrb[0].mxu0
    %v2393 = vadd.f32 %v2285, %v2392
    %v2394 = vpop.f32.mrb[0].mxu0
    %2395 = vmatprep.mubr.bf16.mxu0 0
    %2396 = vmatmul.mubr.bf16.gmra.mrb[0].mxu0 %v2288
    %v2397 = vpop.f32.mrb[0].mxu0
    %v2398 = vadd.f32 %v2285, %v2397
    %v2399 = vpop.f32.mrb[0].mxu0
    %v2400 = vpop.f32.mrb[0].mxu0
    %v2401 = vadd.f32 %v2285, %v2400
    %v2402 = vpop.f32.mrb[0].mxu0
    %2403 = vmatprep.mubr.bf16.mxu0 0
    %2404 = vmatmul.mubr.bf16.gmra.mrb[0].mxu0 %v2289
    %v2405 = vpop.f32.mrb[0].mxu0
    %v2406 = vadd.f32 %v2285, %v2405
    %v2407 = vpop.f32.mrb[0].mxu0
    %v2408 = vpop.f32.mrb[0].mxu0
    %v2409 = vadd.f32 %v2285, %v2408
    %v2410 = vpop.f32.mrb[0].mxu0
    %2411 = vmatprep.mubr.bf16.mxu0 0
    %2412 = vmatmul.mubr.bf16.gmra.mrb[0].mxu0 %v2290
    %v2413 = vpop.f32.mrb[0].mxu0
    %v2414 = vadd.f32 %v2285, %v2413
    %v2415 = vpop.f32.mrb[0].mxu0
    %v2416 = vpop.f32.mrb[0].mxu0
    %v2417 = vadd.f32 %v2285, %v2416
    %v2418 = vpop.f32.mrb[0].mxu0
    %2419 = vmatprep.mubr.bf16.mxu0 0
    %2420 = vmatmul.mubr.bf16.gmra.mrb[0].mxu0 %v2291
    %v2421 = vpop.f32.mrb[0].mxu0
    %v2422 = vadd.f32 %v2285, %v2421
    %v2423 = vpop.f32.mrb[0].mxu0
    %v2424 = vpop.f32.mrb[0].mxu0
    %v2425 = vadd.f32 %v2285, %v2424
    %v2426 = vpop.f32.mrb[0].mxu0
    %2427 = vmatprep.mubr.bf16.mxu0 0
    %2428 = vmatmul.mubr.bf16.gmra.mrb[0].mxu0 %v2292
    %v2429 = vpop.f32.mrb[0].mxu0
    %v2430 = vadd.f32 %v2285, %v2429
    %v2431 = vpop.f32.mrb[0].mxu0
    %v2432 = vpop.f32.mrb[0].mxu0
    %v2433 = vadd.f32 %v2285, %v2432
    %v2434 = vpop.f32.mrb[0].mxu0
    %2435 = vmatprep.mubr.bf16.mxu0 0
    %2436 = vmatmul.mubr.bf16.gmra.mrb[0].mxu0 %v2293
    %v2437 = vpop.f32.mrb[0].mxu0
    %v2438 = vadd.f32 %v2285, %v2437
    %v2439 = vpop.f32.mrb[0].mxu0
    %v2440 = vpop.f32.mrb[0].mxu0
    %v2441 = vadd.f32 %v2285, %v2440
    %v2442 = vpop.f32.mrb[0].mxu0
    %2443 = vmatprep.mubr.bf16.mxu0 0
    %2444 = vmatmul.mubr.bf16.gmra.mrb[0].mxu0 %v2294
    %v2445 = vpop.f32.mrb[0].mxu0
    %v2446 = vadd.f32 %v2285, %v2445
    %v2447 = vpop.f32.mrb[0].mxu0
    %v2448 = vpop.f32.mrb[0].mxu0
    %v2449 = vadd.f32 %v2285, %v2448
    %v2450 = vpop.f32.mrb[0].mxu0
    %2451 = vmatprep.mubr.bf16.mxu0 0
    %2452 = vmatmul.mubr.bf16.gmra.mrb[0].mxu0 %v2295
    %v2453 = vpop.f32.mrb[0].mxu0
    %v2454 = vadd.f32 %v2285, %v2453
    %v2455 = vpop.f32.mrb[0].mxu0
    %v2456 = vpop.f32.mrb[0].mxu0
    %v2457 = vadd.f32 %v2285, %v2456
    %v2458 = vpop.f32.mrb[0].mxu0
    %2459 = vmatprep.mubr.bf16.mxu0 0
    %2460 = vmatmul.mubr.bf16.gmra.mrb[0].mxu0 %v2296
    %v2461 = vpop.f32.mrb[0].mxu0
    %v2462 = vadd.f32 %v2285, %v2461
    %v2463 = vpop.f32.mrb[0].mxu0
    %v2464 = vpop.f32.mrb[0].mxu0
    %v2465 = vadd.f32 %v2285, %v2464
    %v2466 = vpop.f32.mrb[0].mxu0
    %2467 = vmatprep.mubr.bf16.mxu0 0
    %2468 = vmatmul.mubr.bf16.gmra.mrb[0].mxu0 %v2297
    %v2469 = vpop.f32.mrb[0].mxu0
    %v2470 = vadd.f32 %v2285, %v2469
    %v2471 = vpop.f32.mrb[0].mxu0
    %v2472 = vpop.f32.mrb[0].mxu0
    %v2473 = vadd.f32 %v2285, %v2472
    %v2474 = vpop.f32.mrb[0].mxu0
    %2475 = vmatprep.mubr.bf16.mxu0 0
    %2476 = vmatmul.mubr.bf16.gmra.mrb[0].mxu0 %v2298
    %v2477 = vpop.f32.mrb[0].mxu0
    %v2478 = vadd.f32 %v2285, %v2477
    %v2479 = vpop.f32.mrb[0].mxu0
    %v2480 = vpop.f32.mrb[0].mxu0
    %v2481 = vpop.f32.mrb[0].mxu0
    %2482 = vdwg.mxu0
    %2483 = vst [vmem:[#allocation9] sm:$0xff] %v2382
    %2484 = vst [vmem:[#allocation9 + $0x8] sm:$0xff] %v2385
    %2485 = vst [vmem:[#allocation9 + $0x10] sm:$0xff] %v2390
    %2486 = vst [vmem:[#allocation9 + $0x18] sm:$0xff] %v2393
    %2487 = vst [vmem:[#allocation9 + $0x20] sm:$0xff] %v2398
    %2488 = vst [vmem:[#allocation9 + $0x28] sm:$0xff] %v2401
    %2489 = vst [vmem:[#allocation9 + $0x30] sm:$0xff] %v2406
    %2490 = vst [vmem:[#allocation9 + $0x38] sm:$0xff] %v2409
    %2491 = vst [vmem:[#allocation9 + $0x40] sm:$0xff] %v2414
    %2492 = vst [vmem:[#allocation9 + $0x48] sm:$0xff] %v2417
    %2493 = vst [vmem:[#allocation9 + $0x50] sm:$0xff] %v2422
    %2494 = vst [vmem:[#allocation9 + $0x58] sm:$0xff] %v2425
    %2495 = vst [vmem:[#allocation9 + $0x60] sm:$0xff] %v2430
    %2496 = vst [vmem:[#allocation9 + $0x68] sm:$0xff] %v2433
    %2497 = vst [vmem:[#allocation9 + $0x70] sm:$0xff] %v2438
    %2498 = vst [vmem:[#allocation9 + $0x78] sm:$0xff] %v2441
    %2499 = vst [vmem:[#allocation9 + $0x80] sm:$0xff] %v2446
    %2500 = vst [vmem:[#allocation9 + $0x88] sm:$0xff] %v2449
    %2501 = vst [vmem:[#allocation9 + $0x90] sm:$0xff] %v2454
    %2502 = vst [vmem:[#allocation9 + $0x98] sm:$0xff] %v2457
    %2503 = vst [vmem:[#allocation9 + $0xa0] sm:$0xff] %v2462
    %2504 = vst [vmem:[#allocation9 + $0xa8] sm:$0xff] %v2465
    %2505 = vst [vmem:[#allocation9 + $0xb0] sm:$0xff] %v2470
    %2506 = vst [vmem:[#allocation9 + $0xb8] sm:$0xff] %v2473
    %2507 = vst [vmem:[#allocation9 + $0xc0] sm:$0xff] %v2478
    %v2508 = vld [vmem:[#allocation5 + $0x780] sm:$0xf]
    %v2509 = vld [vmem:[#allocation5 + $0x78c] sm:$0xf]
    %v2510 = vld [vmem:[#allocation5 + $0x798] sm:$0xf]
    %v2511 = vld [vmem:[#allocation5 + $0x7a4] sm:$0xf]
    %v2512 = vld [vmem:[#allocation5 + $0x7b0] sm:$0xf]
    %v2513 = vld [vmem:[#allocation5 + $0x7bc] sm:$0xf]
    %v2514 = vld [vmem:[#allocation5 + $0x7c8] sm:$0xf]
    %v2515 = vld [vmem:[#allocation5 + $0x7d4] sm:$0xf]
    %v2516 = vld [vmem:[#allocation5 + $0x7e0] sm:$0xf]
    %v2517 = vld [vmem:[#allocation5 + $0x7ec] sm:$0xf]
    %v2518 = vld [vmem:[#allocation5 + $0x7f8] sm:$0xf]
    %v2519 = vld [vmem:[#allocation5 + $0x804] sm:$0xf]
    %v2520 = vld [vmem:[#allocation5 + $0x810] sm:$0xf]
    %v2521 = vld [vmem:[#allocation5 + $0x81c] sm:$0xf]
    %v2522 = vld [vmem:[#allocation5 + $0x828] sm:$0xf]
    %v2523 = vld [vmem:[#allocation5 + $0x834] sm:$0xf]
    %v2524 = vld [vmem:[#allocation7 + $0x7] ss:$0 sm:$0xff]
    %v2525 = vpack.c.bf16 %v2385, %v2382
    %v2526 = vpack.c.bf16 %v2393, %v2390
    %v2527 = vpack.c.bf16 %v2401, %v2398
    %v2528 = vpack.c.bf16 %v2409, %v2406
    %v2529 = vpack.c.bf16 %v2417, %v2414
    %v2530 = vpack.c.bf16 %v2425, %v2422
    %v2531 = vpack.c.bf16 %v2433, %v2430
    %v2532 = vpack.c.bf16 %v2441, %v2438
    %v2533 = vpack.c.bf16 %v2449, %v2446
    %v2534 = vpack.c.bf16 %v2457, %v2454
    %v2535 = vpack.c.bf16 %v2465, %v2462
    %v2536 = vpack.c.bf16 %v2473, %v2470
    %v2537 = vpack.c.bf16 %v2478, %v2478
    %v2554 = vunpack.c.l.b16 %v2508
    %v2555 = vunpack.c.l.b16 %v2509
    %v2556 = vunpack.c.l.b16 %v2510
    %v2557 = vunpack.c.l.b16 %v2511
    %v2558 = vunpack.c.l.b16 %v2512
    %v2559 = vunpack.c.l.b16 %v2513
    %v2560 = vunpack.c.l.b16 %v2514
    %v2561 = vunpack.c.l.b16 %v2515
    %v2562 = vunpack.c.l.b16 %v2516
    %v2563 = vunpack.c.l.b16 %v2517
    %v2564 = vunpack.c.l.b16 %v2518
    %v2565 = vunpack.c.l.b16 %v2519
    %v2566 = vunpack.c.l.b16 %v2520
    %v2567 = vunpack.c.l.b16 %v2521
    %v2568 = vunpack.c.l.b16 %v2522
    %v2569 = vunpack.c.l.b16 %v2523
    %v2570 = vpack.c.b16 %v2555, %v2554
    %v2571 = vpack.c.b16 %v2557, %v2556
    %v2572 = vpack.c.b16 %v2559, %v2558
    %v2573 = vpack.c.b16 %v2561, %v2560
    %v2574 = vpack.c.b16 %v2563, %v2562
    %v2575 = vpack.c.b16 %v2565, %v2564
    %v2576 = vpack.c.b16 %v2567, %v2566
    %v2577 = vpack.c.b16 %v2569, %v2568
    %2586 = vmatprep.subr.bf16.mxu0 0
    %2587 = vmatpush1.bf16.msra.mxu0 %v2570
    %2588 = vmatprep.subr.bf16.mxu0 0
    %2589 = vmatpush1.bf16.msra.mxu0 %v2571
    %2590 = vmatprep.subr.bf16.mxu0 0
    %2591 = vmatpush1.bf16.msra.mxu0 %v2572
    %2592 = vmatprep.subr.bf16.mxu0 0
    %2593 = vmatpush1.bf16.msra.mxu0 %v2573
    %2594 = vmatprep.subr.bf16.mxu0 0
    %2595 = vmatpush1.bf16.msra.mxu0 %v2574
    %2596 = vmatprep.subr.bf16.mxu0 0
    %2597 = vmatpush1.bf16.msra.mxu0 %v2575
    %2598 = vmatprep.subr.bf16.mxu0 0
    %2599 = vmatpush1.bf16.msra.mxu0 %v2576
    %2600 = vmatprep.subr.bf16.mxu0 0
    %2601 = vmatpush1.bf16.msra.mxu0 %v2577
    %2602 = vmatprep.subr.bf16.mxu0 0
    %2603 = vmatpush1.bf16.msra.mxu0 0
    %2604 = vmatprep.subr.bf16.mxu0 0
    %2605 = vmatpush1.bf16.msra.mxu0 0
    %2606 = vmatprep.subr.bf16.mxu0 0
    %2607 = vmatpush1.bf16.msra.mxu0 0
    %2608 = vmatprep.subr.bf16.mxu0 0
    %2609 = vmatpush1.bf16.msra.mxu0 0
    %2610 = vmatprep.subr.bf16.mxu0 0
    %2611 = vmatpush1.bf16.msra.mxu0 0
    %2612 = vmatprep.subr.bf16.mxu0 0
    %2613 = vmatpush1.bf16.msra.mxu0 0
    %2614 = vmatprep.subr.bf16.mxu0 0
    %2615 = vmatpush1.bf16.msra.mxu0 0
    %2616 = vmatprep.subr.bf16.mxu0 0
    %2617 = vmatpush1.bf16.msra.mxu0 0
    %2618 = vmatprep.mubr.bf16.mxu0 0
    %2619 = vmatmul.mubr.bf16.gmra.mrb[0].mxu0 %v2525
    %v2620 = vpop.f32.mrb[0].mxu0
    %v2621 = vadd.f32 %v2524, %v2620
    %v2622 = vpop.f32.mrb[0].mxu0
    %v2623 = vpop.f32.mrb[0].mxu0
    %v2624 = vadd.f32 %v2524, %v2623
    %v2625 = vpop.f32.mrb[0].mxu0
    %2626 = vmatprep.mubr.bf16.mxu0 0
    %2627 = vmatmul.mubr.bf16.gmra.mrb[0].mxu0 %v2526
    %v2628 = vpop.f32.mrb[0].mxu0
    %v2629 = vadd.f32 %v2524, %v2628
    %v2630 = vpop.f32.mrb[0].mxu0
    %v2631 = vpop.f32.mrb[0].mxu0
    %v2632 = vadd.f32 %v2524, %v2631
    %v2633 = vpop.f32.mrb[0].mxu0
    %2634 = vmatprep.mubr.bf16.mxu0 0
    %2635 = vmatmul.mubr.bf16.gmra.mrb[0].mxu0 %v2527
    %v2636 = vpop.f32.mrb[0].mxu0
    %v2637 = vadd.f32 %v2524, %v2636
    %v2638 = vpop.f32.mrb[0].mxu0
    %v2639 = vpop.f32.mrb[0].mxu0
    %v2640 = vadd.f32 %v2524, %v2639
    %v2641 = vpop.f32.mrb[0].mxu0
    %2642 = vmatprep.mubr.bf16.mxu0 0
    %2643 = vmatmul.mubr.bf16.gmra.mrb[0].mxu0 %v2528
    %v2644 = vpop.f32.mrb[0].mxu0
    %v2645 = vadd.f32 %v2524, %v2644
    %v2646 = vpop.f32.mrb[0].mxu0
    %v2647 = vpop.f32.mrb[0].mxu0
    %v2648 = vadd.f32 %v2524, %v2647
    %v2649 = vpop.f32.mrb[0].mxu0
    %2650 = vmatprep.mubr.bf16.mxu0 0
    %2651 = vmatmul.mubr.bf16.gmra.mrb[0].mxu0 %v2529
    %v2652 = vpop.f32.mrb[0].mxu0
    %v2653 = vadd.f32 %v2524, %v2652
    %v2654 = vpop.f32.mrb[0].mxu0
    %v2655 = vpop.f32.mrb[0].mxu0
    %v2656 = vadd.f32 %v2524, %v2655
    %v2657 = vpop.f32.mrb[0].mxu0
    %2658 = vmatprep.mubr.bf16.mxu0 0
    %2659 = vmatmul.mubr.bf16.gmra.mrb[0].mxu0 %v2530
    %v2660 = vpop.f32.mrb[0].mxu0
    %v2661 = vadd.f32 %v2524, %v2660
    %v2662 = vpop.f32.mrb[0].mxu0
    %v2663 = vpop.f32.mrb[0].mxu0
    %v2664 = vadd.f32 %v2524, %v2663
    %v2665 = vpop.f32.mrb[0].mxu0
    %2666 = vmatprep.mubr.bf16.mxu0 0
    %2667 = vmatmul.mubr.bf16.gmra.mrb[0].mxu0 %v2531
    %v2668 = vpop.f32.mrb[0].mxu0
    %v2669 = vadd.f32 %v2524, %v2668
    %v2670 = vpop.f32.mrb[0].mxu0
    %v2671 = vpop.f32.mrb[0].mxu0
    %v2672 = vadd.f32 %v2524, %v2671
    %v2673 = vpop.f32.mrb[0].mxu0
    %2674 = vmatprep.mubr.bf16.mxu0 0
    %2675 = vmatmul.mubr.bf16.gmra.mrb[0].mxu0 %v2532
    %v2676 = vpop.f32.mrb[0].mxu0
    %v2677 = vadd.f32 %v2524, %v2676
    %v2678 = vpop.f32.mrb[0].mxu0
    %v2679 = vpop.f32.mrb[0].mxu0
    %v2680 = vadd.f32 %v2524, %v2679
    %v2681 = vpop.f32.mrb[0].mxu0
    %2682 = vmatprep.mubr.bf16.mxu0 0
    %2683 = vmatmul.mubr.bf16.gmra.mrb[0].mxu0 %v2533
    %v2684 = vpop.f32.mrb[0].mxu0
    %v2685 = vadd.f32 %v2524, %v2684
    %v2686 = vpop.f32.mrb[0].mxu0
    %v2687 = vpop.f32.mrb[0].mxu0
    %v2688 = vadd.f32 %v2524, %v2687
    %v2689 = vpop.f32.mrb[0].mxu0
    %2690 = vmatprep.mubr.bf16.mxu0 0
    %2691 = vmatmul.mubr.bf16.gmra.mrb[0].mxu0 %v2534
    %v2692 = vpop.f32.mrb[0].mxu0
    %v2693 = vadd.f32 %v2524, %v2692
    %v2694 = vpop.f32.mrb[0].mxu0
    %v2695 = vpop.f32.mrb[0].mxu0
    %v2696 = vadd.f32 %v2524, %v2695
    %v2697 = vpop.f32.mrb[0].mxu0
    %2698 = vmatprep.mubr.bf16.mxu0 0
    %2699 = vmatmul.mubr.bf16.gmra.mrb[0].mxu0 %v2535
    %v2700 = vpop.f32.mrb[0].mxu0
    %v2701 = vadd.f32 %v2524, %v2700
    %v2702 = vpop.f32.mrb[0].mxu0
    %v2703 = vpop.f32.mrb[0].mxu0
    %v2704 = vadd.f32 %v2524, %v2703
    %v2705 = vpop.f32.mrb[0].mxu0
    %2706 = vmatprep.mubr.bf16.mxu0 0
    %2707 = vmatmul.mubr.bf16.gmra.mrb[0].mxu0 %v2536
    %v2708 = vpop.f32.mrb[0].mxu0
    %v2709 = vadd.f32 %v2524, %v2708
    %v2710 = vpop.f32.mrb[0].mxu0
    %v2711 = vpop.f32.mrb[0].mxu0
    %v2712 = vadd.f32 %v2524, %v2711
    %v2713 = vpop.f32.mrb[0].mxu0
    %2714 = vmatprep.mubr.bf16.mxu0 0
    %2715 = vmatmul.mubr.bf16.gmra.mrb[0].mxu0 %v2537
    %v2716 = vpop.f32.mrb[0].mxu0
    %v2717 = vadd.f32 %v2524, %v2716
    %v2718 = vpop.f32.mrb[0].mxu0
    %v2719 = vpop.f32.mrb[0].mxu0
    %v2720 = vpop.f32.mrb[0].mxu0
    %2721 = vdwg.mxu0
    %v2722 = vmax.f32 %v2621, 0.0
    %v2723 = vmax.f32 %v2624, 0.0
    %v2724 = vmax.f32 %v2629, 0.0
    %v2725 = vmax.f32 %v2632, 0.0
    %v2726 = vmax.f32 %v2637, 0.0
    %v2727 = vmax.f32 %v2640, 0.0
    %v2728 = vmax.f32 %v2645, 0.0
    %v2729 = vmax.f32 %v2648, 0.0
    %v2730 = vmax.f32 %v2653, 0.0
    %v2731 = vmax.f32 %v2656, 0.0
    %v2732 = vmax.f32 %v2661, 0.0
    %v2733 = vmax.f32 %v2664, 0.0
    %v2734 = vmax.f32 %v2669, 0.0
    %v2735 = vmax.f32 %v2672, 0.0
    %v2736 = vmax.f32 %v2677, 0.0
    %v2737 = vmax.f32 %v2680, 0.0
    %v2738 = vmax.f32 %v2685, 0.0
    %v2739 = vmax.f32 %v2688, 0.0
    %v2740 = vmax.f32 %v2693, 0.0
    %v2741 = vmax.f32 %v2696, 0.0
    %v2742 = vmax.f32 %v2701, 0.0
    %v2743 = vmax.f32 %v2704, 0.0
    %v2744 = vmax.f32 %v2709, 0.0
    %v2745 = vmax.f32 %v2712, 0.0
    %v2746 = vmax.f32 %v2717, 0.0
    %v2747 = vld [vmem:[#allocation5 + $0x840] sm:$0xf]
    %v2748 = vld [vmem:[#allocation5 + $0x84c] sm:$0xf]
    %v2749 = vld [vmem:[#allocation5 + $0x858] sm:$0xf]
    %v2750 = vld [vmem:[#allocation5 + $0x864] sm:$0xf]
    %v2751 = vld [vmem:[#allocation5 + $0x870] sm:$0xf]
    %v2752 = vld [vmem:[#allocation5 + $0x87c] sm:$0xf]
    %v2753 = vld [vmem:[#allocation5 + $0x888] sm:$0xf]
    %v2754 = vld [vmem:[#allocation5 + $0x894] sm:$0xf]
    %v2755 = vld [vmem:[#allocation5 + $0x8a0] sm:$0xf]
    %v2756 = vld [vmem:[#allocation5 + $0x8ac] sm:$0xf]
    %v2757 = vld [vmem:[#allocation5 + $0x8b8] sm:$0xf]
    %v2758 = vld [vmem:[#allocation5 + $0x8c4] sm:$0xf]
    %v2759 = vld [vmem:[#allocation5 + $0x8d0] sm:$0xf]
    %v2760 = vld [vmem:[#allocation5 + $0x8dc] sm:$0xf]
    %v2761 = vld [vmem:[#allocation5 + $0x8e8] sm:$0xf]
    %v2762 = vld [vmem:[#allocation5 + $0x8f4] sm:$0xf]
    %v2763 = vld [vmem:[#allocation7 + $0x18] ss:$0 sm:$0xff]
    %v2764 = vpack.c.bf16 %v2723, %v2722
    %v2765 = vpack.c.bf16 %v2725, %v2724
    %v2766 = vpack.c.bf16 %v2727, %v2726
    %v2767 = vpack.c.bf16 %v2729, %v2728
    %v2768 = vpack.c.bf16 %v2731, %v2730
    %v2769 = vpack.c.bf16 %v2733, %v2732
    %v2770 = vpack.c.bf16 %v2735, %v2734
    %v2771 = vpack.c.bf16 %v2737, %v2736
    %v2772 = vpack.c.bf16 %v2739, %v2738
    %v2773 = vpack.c.bf16 %v2741, %v2740
    %v2774 = vpack.c.bf16 %v2743, %v2742
    %v2775 = vpack.c.bf16 %v2745, %v2744
    %v2776 = vpack.c.bf16 %v2746, %v2746
    %v2793 = vunpack.c.l.b16 %v2747
    %v2794 = vunpack.c.l.b16 %v2748
    %v2795 = vunpack.c.l.b16 %v2749
    %v2796 = vunpack.c.l.b16 %v2750
    %v2797 = vunpack.c.l.b16 %v2751
    %v2798 = vunpack.c.l.b16 %v2752
    %v2799 = vunpack.c.l.b16 %v2753
    %v2800 = vunpack.c.l.b16 %v2754
    %v2801 = vunpack.c.l.b16 %v2755
    %v2802 = vunpack.c.l.b16 %v2756
    %v2803 = vunpack.c.l.b16 %v2757
    %v2804 = vunpack.c.l.b16 %v2758
    %v2805 = vunpack.c.l.b16 %v2759
    %v2806 = vunpack.c.l.b16 %v2760
    %v2807 = vunpack.c.l.b16 %v2761
    %v2808 = vunpack.c.l.b16 %v2762
    %v2809 = vpack.c.b16 %v2794, %v2793
    %v2810 = vpack.c.b16 %v2796, %v2795
    %v2811 = vpack.c.b16 %v2798, %v2797
    %v2812 = vpack.c.b16 %v2800, %v2799
    %v2813 = vpack.c.b16 %v2802, %v2801
    %v2814 = vpack.c.b16 %v2804, %v2803
    %v2815 = vpack.c.b16 %v2806, %v2805
    %v2816 = vpack.c.b16 %v2808, %v2807
    %2825 = vmatprep.subr.bf16.mxu0 0
    %2826 = vmatpush1.bf16.msra.mxu0 %v2809
    %2827 = vmatprep.subr.bf16.mxu0 0
    %2828 = vmatpush1.bf16.msra.mxu0 %v2810
    %2829 = vmatprep.subr.bf16.mxu0 0
    %2830 = vmatpush1.bf16.msra.mxu0 %v2811
    %2831 = vmatprep.subr.bf16.mxu0 0
    %2832 = vmatpush1.bf16.msra.mxu0 %v2812
    %2833 = vmatprep.subr.bf16.mxu0 0
    %2834 = vmatpush1.bf16.msra.mxu0 %v2813
    %2835 = vmatprep.subr.bf16.mxu0 0
    %2836 = vmatpush1.bf16.msra.mxu0 %v2814
    %2837 = vmatprep.subr.bf16.mxu0 0
    %2838 = vmatpush1.bf16.msra.mxu0 %v2815
    %2839 = vmatprep.subr.bf16.mxu0 0
    %2840 = vmatpush1.bf16.msra.mxu0 %v2816
    %2841 = vmatprep.subr.bf16.mxu0 0
    %2842 = vmatpush1.bf16.msra.mxu0 0
    %2843 = vmatprep.subr.bf16.mxu0 0
    %2844 = vmatpush1.bf16.msra.mxu0 0
    %2845 = vmatprep.subr.bf16.mxu0 0
    %2846 = vmatpush1.bf16.msra.mxu0 0
    %2847 = vmatprep.subr.bf16.mxu0 0
    %2848 = vmatpush1.bf16.msra.mxu0 0
    %2849 = vmatprep.subr.bf16.mxu0 0
    %2850 = vmatpush1.bf16.msra.mxu0 0
    %2851 = vmatprep.subr.bf16.mxu0 0
    %2852 = vmatpush1.bf16.msra.mxu0 0
    %2853 = vmatprep.subr.bf16.mxu0 0
    %2854 = vmatpush1.bf16.msra.mxu0 0
    %2855 = vmatprep.subr.bf16.mxu0 0
    %2856 = vmatpush1.bf16.msra.mxu0 0
    %2857 = vmatprep.mubr.bf16.mxu0 0
    %2858 = vmatmul.mubr.bf16.gmra.mrb[0].mxu0 %v2764
    %v2859 = vpop.f32.mrb[0].mxu0
    %v2860 = vadd.f32 %v2763, %v2859
    %v2861 = vpop.f32.mrb[0].mxu0
    %v2862 = vpop.f32.mrb[0].mxu0
    %v2863 = vadd.f32 %v2763, %v2862
    %v2864 = vpop.f32.mrb[0].mxu0
    %2865 = vmatprep.mubr.bf16.mxu0 0
    %2866 = vmatmul.mubr.bf16.gmra.mrb[0].mxu0 %v2765
    %v2867 = vpop.f32.mrb[0].mxu0
    %v2868 = vadd.f32 %v2763, %v2867
    %v2869 = vpop.f32.mrb[0].mxu0
    %v2870 = vpop.f32.mrb[0].mxu0
    %v2871 = vadd.f32 %v2763, %v2870
    %v2872 = vpop.f32.mrb[0].mxu0
    %2873 = vmatprep.mubr.bf16.mxu0 0
    %2874 = vmatmul.mubr.bf16.gmra.mrb[0].mxu0 %v2766
    %v2875 = vpop.f32.mrb[0].mxu0
    %v2876 = vadd.f32 %v2763, %v2875
    %v2877 = vpop.f32.mrb[0].mxu0
    %v2878 = vpop.f32.mrb[0].mxu0
    %v2879 = vadd.f32 %v2763, %v2878
    %v2880 = vpop.f32.mrb[0].mxu0
    %2881 = vmatprep.mubr.bf16.mxu0 0
    %2882 = vmatmul.mubr.bf16.gmra.mrb[0].mxu0 %v2767
    %v2883 = vpop.f32.mrb[0].mxu0
    %v2884 = vadd.f32 %v2763, %v2883
    %v2885 = vpop.f32.mrb[0].mxu0
    %v2886 = vpop.f32.mrb[0].mxu0
    %v2887 = vadd.f32 %v2763, %v2886
    %v2888 = vpop.f32.mrb[0].mxu0
    %2889 = vmatprep.mubr.bf16.mxu0 0
    %2890 = vmatmul.mubr.bf16.gmra.mrb[0].mxu0 %v2768
    %v2891 = vpop.f32.mrb[0].mxu0
    %v2892 = vadd.f32 %v2763, %v2891
    %v2893 = vpop.f32.mrb[0].mxu0
    %v2894 = vpop.f32.mrb[0].mxu0
    %v2895 = vadd.f32 %v2763, %v2894
    %v2896 = vpop.f32.mrb[0].mxu0
    %2897 = vmatprep.mubr.bf16.mxu0 0
    %2898 = vmatmul.mubr.bf16.gmra.mrb[0].mxu0 %v2769
    %v2899 = vpop.f32.mrb[0].mxu0
    %v2900 = vadd.f32 %v2763, %v2899
    %v2901 = vpop.f32.mrb[0].mxu0
    %v2902 = vpop.f32.mrb[0].mxu0
    %v2903 = vadd.f32 %v2763, %v2902
    %v2904 = vpop.f32.mrb[0].mxu0
    %2905 = vmatprep.mubr.bf16.mxu0 0
    %2906 = vmatmul.mubr.bf16.gmra.mrb[0].mxu0 %v2770
    %v2907 = vpop.f32.mrb[0].mxu0
    %v2908 = vadd.f32 %v2763, %v2907
    %v2909 = vpop.f32.mrb[0].mxu0
    %v2910 = vpop.f32.mrb[0].mxu0
    %v2911 = vadd.f32 %v2763, %v2910
    %v2912 = vpop.f32.mrb[0].mxu0
    %2913 = vmatprep.mubr.bf16.mxu0 0
    %2914 = vmatmul.mubr.bf16.gmra.mrb[0].mxu0 %v2771
    %v2915 = vpop.f32.mrb[0].mxu0
    %v2916 = vadd.f32 %v2763, %v2915
    %v2917 = vpop.f32.mrb[0].mxu0
    %v2918 = vpop.f32.mrb[0].mxu0
    %v2919 = vadd.f32 %v2763, %v2918
    %v2920 = vpop.f32.mrb[0].mxu0
    %2921 = vmatprep.mubr.bf16.mxu0 0
    %2922 = vmatmul.mubr.bf16.gmra.mrb[0].mxu0 %v2772
    %v2923 = vpop.f32.mrb[0].mxu0
    %v2924 = vadd.f32 %v2763, %v2923
    %v2925 = vpop.f32.mrb[0].mxu0
    %v2926 = vpop.f32.mrb[0].mxu0
    %v2927 = vadd.f32 %v2763, %v2926
    %v2928 = vpop.f32.mrb[0].mxu0
    %2929 = vmatprep.mubr.bf16.mxu0 0
    %2930 = vmatmul.mubr.bf16.gmra.mrb[0].mxu0 %v2773
    %v2931 = vpop.f32.mrb[0].mxu0
    %v2932 = vadd.f32 %v2763, %v2931
    %v2933 = vpop.f32.mrb[0].mxu0
    %v2934 = vpop.f32.mrb[0].mxu0
    %v2935 = vadd.f32 %v2763, %v2934
    %v2936 = vpop.f32.mrb[0].mxu0
    %2937 = vmatprep.mubr.bf16.mxu0 0
    %2938 = vmatmul.mubr.bf16.gmra.mrb[0].mxu0 %v2774
    %v2939 = vpop.f32.mrb[0].mxu0
    %v2940 = vadd.f32 %v2763, %v2939
    %v2941 = vpop.f32.mrb[0].mxu0
    %v2942 = vpop.f32.mrb[0].mxu0
    %v2943 = vadd.f32 %v2763, %v2942
    %v2944 = vpop.f32.mrb[0].mxu0
    %2945 = vmatprep.mubr.bf16.mxu0 0
    %2946 = vmatmul.mubr.bf16.gmra.mrb[0].mxu0 %v2775
    %v2947 = vpop.f32.mrb[0].mxu0
    %v2948 = vadd.f32 %v2763, %v2947
    %v2949 = vpop.f32.mrb[0].mxu0
    %v2950 = vpop.f32.mrb[0].mxu0
    %v2951 = vadd.f32 %v2763, %v2950
    %v2952 = vpop.f32.mrb[0].mxu0
    %2953 = vmatprep.mubr.bf16.mxu0 0
    %2954 = vmatmul.mubr.bf16.gmra.mrb[0].mxu0 %v2776
    %v2955 = vpop.f32.mrb[0].mxu0
    %v2956 = vadd.f32 %v2763, %v2955
    %v2957 = vpop.f32.mrb[0].mxu0
    %v2958 = vpop.f32.mrb[0].mxu0
    %v2959 = vpop.f32.mrb[0].mxu0
    %2960 = vdwg.mxu0
    %v2961 = vmax.f32 %v2860, 0.0
    %v2962 = vmax.f32 %v2863, 0.0
    %v2963 = vmax.f32 %v2868, 0.0
    %v2964 = vmax.f32 %v2871, 0.0
    %v2965 = vmax.f32 %v2876, 0.0
    %v2966 = vmax.f32 %v2879, 0.0
    %v2967 = vmax.f32 %v2884, 0.0
    %v2968 = vmax.f32 %v2887, 0.0
    %v2969 = vmax.f32 %v2892, 0.0
    %v2970 = vmax.f32 %v2895, 0.0
    %v2971 = vmax.f32 %v2900, 0.0
    %v2972 = vmax.f32 %v2903, 0.0
    %v2973 = vmax.f32 %v2908, 0.0
    %v2974 = vmax.f32 %v2911, 0.0
    %v2975 = vmax.f32 %v2916, 0.0
    %v2976 = vmax.f32 %v2919, 0.0
    %v2977 = vmax.f32 %v2924, 0.0
    %v2978 = vmax.f32 %v2927, 0.0
    %v2979 = vmax.f32 %v2932, 0.0
    %v2980 = vmax.f32 %v2935, 0.0
    %v2981 = vmax.f32 %v2940, 0.0
    %v2982 = vmax.f32 %v2943, 0.0
    %v2983 = vmax.f32 %v2948, 0.0
    %v2984 = vmax.f32 %v2951, 0.0
    %v2985 = vmax.f32 %v2956, 0.0
    %v2986 = vld [vmem:[#allocation5 + $0x900] sm:$0xf]
    %v2987 = vld [vmem:[#allocation5 + $0x90c] sm:$0xf]
    %v2988 = vld [vmem:[#allocation5 + $0x918] sm:$0xf]
    %v2989 = vld [vmem:[#allocation5 + $0x924] sm:$0xf]
    %v2990 = vld [vmem:[#allocation5 + $0x930] sm:$0xf]
    %v2991 = vld [vmem:[#allocation5 + $0x93c] sm:$0xf]
    %v2992 = vld [vmem:[#allocation5 + $0x948] sm:$0xf]
    %v2993 = vld [vmem:[#allocation5 + $0x954] sm:$0xf]
    %v2994 = vld [vmem:[#allocation5 + $0x960] sm:$0xf]
    %v2995 = vld [vmem:[#allocation5 + $0x96c] sm:$0xf]
    %v2996 = vld [vmem:[#allocation5 + $0x978] sm:$0xf]
    %v2997 = vld [vmem:[#allocation5 + $0x984] sm:$0xf]
    %v2998 = vld [vmem:[#allocation5 + $0x990] sm:$0xf]
    %v2999 = vld [vmem:[#allocation5 + $0x99c] sm:$0xf]
    %v3000 = vld [vmem:[#allocation5 + $0x9a8] sm:$0xf]
    %v3001 = vld [vmem:[#allocation5 + $0x9b4] sm:$0xf]
    %v3002 = vld [vmem:[#allocation7 + $0x19] ss:$0 sm:$0xff]
    %v3003 = vpack.c.bf16 %v2962, %v2961
    %v3004 = vpack.c.bf16 %v2964, %v2963
    %v3005 = vpack.c.bf16 %v2966, %v2965
    %v3006 = vpack.c.bf16 %v2968, %v2967
    %v3007 = vpack.c.bf16 %v2970, %v2969
    %v3008 = vpack.c.bf16 %v2972, %v2971
    %v3009 = vpack.c.bf16 %v2974, %v2973
    %v3010 = vpack.c.bf16 %v2976, %v2975
    %v3011 = vpack.c.bf16 %v2978, %v2977
    %v3012 = vpack.c.bf16 %v2980, %v2979
    %v3013 = vpack.c.bf16 %v2982, %v2981
    %v3014 = vpack.c.bf16 %v2984, %v2983
    %v3015 = vpack.c.bf16 %v2985, %v2985
    %v3032 = vunpack.c.l.b16 %v2986
    %v3033 = vunpack.c.l.b16 %v2987
    %v3034 = vunpack.c.l.b16 %v2988
    %v3035 = vunpack.c.l.b16 %v2989
    %v3036 = vunpack.c.l.b16 %v2990
    %v3037 = vunpack.c.l.b16 %v2991
    %v3038 = vunpack.c.l.b16 %v2992
    %v3039 = vunpack.c.l.b16 %v2993
    %v3040 = vunpack.c.l.b16 %v2994
    %v3041 = vunpack.c.l.b16 %v2995
    %v3042 = vunpack.c.l.b16 %v2996
    %v3043 = vunpack.c.l.b16 %v2997
    %v3044 = vunpack.c.l.b16 %v2998
    %v3045 = vunpack.c.l.b16 %v2999
    %v3046 = vunpack.c.l.b16 %v3000
    %v3047 = vunpack.c.l.b16 %v3001
    %v3048 = vpack.c.b16 %v3033, %v3032
    %v3049 = vpack.c.b16 %v3035, %v3034
    %v3050 = vpack.c.b16 %v3037, %v3036
    %v3051 = vpack.c.b16 %v3039, %v3038
    %v3052 = vpack.c.b16 %v3041, %v3040
    %v3053 = vpack.c.b16 %v3043, %v3042
    %v3054 = vpack.c.b16 %v3045, %v3044
    %v3055 = vpack.c.b16 %v3047, %v3046
    %3064 = vmatprep.subr.bf16.mxu0 0
    %3065 = vmatpush1.bf16.msra.mxu0 %v3048
    %3066 = vmatprep.subr.bf16.mxu0 0
    %3067 = vmatpush1.bf16.msra.mxu0 %v3049
    %3068 = vmatprep.subr.bf16.mxu0 0
    %3069 = vmatpush1.bf16.msra.mxu0 %v3050
    %3070 = vmatprep.subr.bf16.mxu0 0
    %3071 = vmatpush1.bf16.msra.mxu0 %v3051
    %3072 = vmatprep.subr.bf16.mxu0 0
    %3073 = vmatpush1.bf16.msra.mxu0 %v3052
    %3074 = vmatprep.subr.bf16.mxu0 0
    %3075 = vmatpush1.bf16.msra.mxu0 %v3053
    %3076 = vmatprep.subr.bf16.mxu0 0
    %3077 = vmatpush1.bf16.msra.mxu0 %v3054
    %3078 = vmatprep.subr.bf16.mxu0 0
    %3079 = vmatpush1.bf16.msra.mxu0 %v3055
    %3080 = vmatprep.subr.bf16.mxu0 0
    %3081 = vmatpush1.bf16.msra.mxu0 0
    %3082 = vmatprep.subr.bf16.mxu0 0
    %3083 = vmatpush1.bf16.msra.mxu0 0
    %3084 = vmatprep.subr.bf16.mxu0 0
    %3085 = vmatpush1.bf16.msra.mxu0 0
    %3086 = vmatprep.subr.bf16.mxu0 0
    %3087 = vmatpush1.bf16.msra.mxu0 0
    %3088 = vmatprep.subr.bf16.mxu0 0
    %3089 = vmatpush1.bf16.msra.mxu0 0
    %3090 = vmatprep.subr.bf16.mxu0 0
    %3091 = vmatpush1.bf16.msra.mxu0 0
    %3092 = vmatprep.subr.bf16.mxu0 0
    %3093 = vmatpush1.bf16.msra.mxu0 0
    %3094 = vmatprep.subr.bf16.mxu0 0
    %3095 = vmatpush1.bf16.msra.mxu0 0
    %3096 = vmatprep.mubr.bf16.mxu0 0
    %3097 = vmatmul.mubr.bf16.gmra.mrb[0].mxu0 %v3003
    %v3098 = vpop.f32.mrb[0].mxu0
    %v3099 = vadd.f32 %v3002, %v3098
    %v3100 = vpop.f32.mrb[0].mxu0
    %v3101 = vpop.f32.mrb[0].mxu0
    %v3102 = vadd.f32 %v3002, %v3101
    %v3103 = vpop.f32.mrb[0].mxu0
    %3104 = vmatprep.mubr.bf16.mxu0 0
    %3105 = vmatmul.mubr.bf16.gmra.mrb[0].mxu0 %v3004
    %v3106 = vpop.f32.mrb[0].mxu0
    %v3107 = vadd.f32 %v3002, %v3106
    %v3108 = vpop.f32.mrb[0].mxu0
    %v3109 = vpop.f32.mrb[0].mxu0
    %v3110 = vadd.f32 %v3002, %v3109
    %v3111 = vpop.f32.mrb[0].mxu0
    %3112 = vmatprep.mubr.bf16.mxu0 0
    %3113 = vmatmul.mubr.bf16.gmra.mrb[0].mxu0 %v3005
    %v3114 = vpop.f32.mrb[0].mxu0
    %v3115 = vadd.f32 %v3002, %v3114
    %v3116 = vpop.f32.mrb[0].mxu0
    %v3117 = vpop.f32.mrb[0].mxu0
    %v3118 = vadd.f32 %v3002, %v3117
    %v3119 = vpop.f32.mrb[0].mxu0
    %3120 = vmatprep.mubr.bf16.mxu0 0
    %3121 = vmatmul.mubr.bf16.gmra.mrb[0].mxu0 %v3006
    %v3122 = vpop.f32.mrb[0].mxu0
    %v3123 = vadd.f32 %v3002, %v3122
    %v3124 = vpop.f32.mrb[0].mxu0
    %v3125 = vpop.f32.mrb[0].mxu0
    %v3126 = vadd.f32 %v3002, %v3125
    %v3127 = vpop.f32.mrb[0].mxu0
    %3128 = vmatprep.mubr.bf16.mxu0 0
    %3129 = vmatmul.mubr.bf16.gmra.mrb[0].mxu0 %v3007
    %v3130 = vpop.f32.mrb[0].mxu0
    %v3131 = vadd.f32 %v3002, %v3130
    %v3132 = vpop.f32.mrb[0].mxu0
    %v3133 = vpop.f32.mrb[0].mxu0
    %v3134 = vadd.f32 %v3002, %v3133
    %v3135 = vpop.f32.mrb[0].mxu0
    %3136 = vmatprep.mubr.bf16.mxu0 0
    %3137 = vmatmul.mubr.bf16.gmra.mrb[0].mxu0 %v3008
    %v3138 = vpop.f32.mrb[0].mxu0
    %v3139 = vadd.f32 %v3002, %v3138
    %v3140 = vpop.f32.mrb[0].mxu0
    %v3141 = vpop.f32.mrb[0].mxu0
    %v3142 = vadd.f32 %v3002, %v3141
    %v3143 = vpop.f32.mrb[0].mxu0
    %3144 = vmatprep.mubr.bf16.mxu0 0
    %3145 = vmatmul.mubr.bf16.gmra.mrb[0].mxu0 %v3009
    %v3146 = vpop.f32.mrb[0].mxu0
    %v3147 = vadd.f32 %v3002, %v3146
    %v3148 = vpop.f32.mrb[0].mxu0
    %v3149 = vpop.f32.mrb[0].mxu0
    %v3150 = vadd.f32 %v3002, %v3149
    %v3151 = vpop.f32.mrb[0].mxu0
    %3152 = vmatprep.mubr.bf16.mxu0 0
    %3153 = vmatmul.mubr.bf16.gmra.mrb[0].mxu0 %v3010
    %v3154 = vpop.f32.mrb[0].mxu0
    %v3155 = vadd.f32 %v3002, %v3154
    %v3156 = vpop.f32.mrb[0].mxu0
    %v3157 = vpop.f32.mrb[0].mxu0
    %v3158 = vadd.f32 %v3002, %v3157
    %v3159 = vpop.f32.mrb[0].mxu0
    %3160 = vmatprep.mubr.bf16.mxu0 0
    %3161 = vmatmul.mubr.bf16.gmra.mrb[0].mxu0 %v3011
    %v3162 = vpop.f32.mrb[0].mxu0
    %v3163 = vadd.f32 %v3002, %v3162
    %v3164 = vpop.f32.mrb[0].mxu0
    %v3165 = vpop.f32.mrb[0].mxu0
    %v3166 = vadd.f32 %v3002, %v3165
    %v3167 = vpop.f32.mrb[0].mxu0
    %3168 = vmatprep.mubr.bf16.mxu0 0
    %3169 = vmatmul.mubr.bf16.gmra.mrb[0].mxu0 %v3012
    %v3170 = vpop.f32.mrb[0].mxu0
    %v3171 = vadd.f32 %v3002, %v3170
    %v3172 = vpop.f32.mrb[0].mxu0
    %v3173 = vpop.f32.mrb[0].mxu0
    %v3174 = vadd.f32 %v3002, %v3173
    %v3175 = vpop.f32.mrb[0].mxu0
    %3176 = vmatprep.mubr.bf16.mxu0 0
    %3177 = vmatmul.mubr.bf16.gmra.mrb[0].mxu0 %v3013
    %v3178 = vpop.f32.mrb[0].mxu0
    %v3179 = vadd.f32 %v3002, %v3178
    %v3180 = vpop.f32.mrb[0].mxu0
    %v3181 = vpop.f32.mrb[0].mxu0
    %v3182 = vadd.f32 %v3002, %v3181
    %v3183 = vpop.f32.mrb[0].mxu0
    %3184 = vmatprep.mubr.bf16.mxu0 0
    %3185 = vmatmul.mubr.bf16.gmra.mrb[0].mxu0 %v3014
    %v3186 = vpop.f32.mrb[0].mxu0
    %v3187 = vadd.f32 %v3002, %v3186
    %v3188 = vpop.f32.mrb[0].mxu0
    %v3189 = vpop.f32.mrb[0].mxu0
    %v3190 = vadd.f32 %v3002, %v3189
    %v3191 = vpop.f32.mrb[0].mxu0
    %3192 = vmatprep.mubr.bf16.mxu0 0
    %3193 = vmatmul.mubr.bf16.gmra.mrb[0].mxu0 %v3015
    %v3194 = vpop.f32.mrb[0].mxu0
    %v3195 = vadd.f32 %v3002, %v3194
    %v3196 = vpop.f32.mrb[0].mxu0
    %v3197 = vpop.f32.mrb[0].mxu0
    %v3198 = vpop.f32.mrb[0].mxu0
    %3199 = vdwg.mxu0
    %v3200 = vmax.f32 %v3099, 0.0
    %v3201 = vmax.f32 %v3102, 0.0
    %v3202 = vmax.f32 %v3107, 0.0
    %v3203 = vmax.f32 %v3110, 0.0
    %v3204 = vmax.f32 %v3115, 0.0
    %v3205 = vmax.f32 %v3118, 0.0
    %v3206 = vmax.f32 %v3123, 0.0
    %v3207 = vmax.f32 %v3126, 0.0
    %v3208 = vmax.f32 %v3131, 0.0
    %v3209 = vmax.f32 %v3134, 0.0
    %v3210 = vmax.f32 %v3139, 0.0
    %v3211 = vmax.f32 %v3142, 0.0
    %v3212 = vmax.f32 %v3147, 0.0
    %v3213 = vmax.f32 %v3150, 0.0
    %v3214 = vmax.f32 %v3155, 0.0
    %v3215 = vmax.f32 %v3158, 0.0
    %v3216 = vmax.f32 %v3163, 0.0
    %v3217 = vmax.f32 %v3166, 0.0
    %v3218 = vmax.f32 %v3171, 0.0
    %v3219 = vmax.f32 %v3174, 0.0
    %v3220 = vmax.f32 %v3179, 0.0
    %v3221 = vmax.f32 %v3182, 0.0
    %v3222 = vmax.f32 %v3187, 0.0
    %v3223 = vmax.f32 %v3190, 0.0
    %v3224 = vmax.f32 %v3195, 0.0
    %v3225 = vld [vmem:[#allocation5 + $0x9c0] sm:$0xf]
    %v3226 = vld [vmem:[#allocation5 + $0x9cc] sm:$0xf]
    %v3227 = vld [vmem:[#allocation5 + $0x9d8] sm:$0xf]
    %v3228 = vld [vmem:[#allocation5 + $0x9e4] sm:$0xf]
    %v3229 = vld [vmem:[#allocation5 + $0x9f0] sm:$0xf]
    %v3230 = vld [vmem:[#allocation5 + $0x9fc] sm:$0xf]
    %v3231 = vld [vmem:[#allocation5 + $0xa08] sm:$0xf]
    %v3232 = vld [vmem:[#allocation5 + $0xa14] sm:$0xf]
    %v3233 = vld [vmem:[#allocation5 + $0xa20] sm:$0xf]
    %v3234 = vld [vmem:[#allocation5 + $0xa2c] sm:$0xf]
    %v3235 = vld [vmem:[#allocation5 + $0xa38] sm:$0xf]
    %v3236 = vld [vmem:[#allocation5 + $0xa44] sm:$0xf]
    %v3237 = vld [vmem:[#allocation5 + $0xa50] sm:$0xf]
    %v3238 = vld [vmem:[#allocation5 + $0xa5c] sm:$0xf]
    %v3239 = vld [vmem:[#allocation5 + $0xa68] sm:$0xf]
    %v3240 = vld [vmem:[#allocation5 + $0xa74] sm:$0xf]
    %v3241 = vld [vmem:[#allocation7 + $0x1a] ss:$0 sm:$0xff]
    %v3242 = vpack.c.bf16 %v3201, %v3200
    %v3243 = vpack.c.bf16 %v3203, %v3202
    %v3244 = vpack.c.bf16 %v3205, %v3204
    %v3245 = vpack.c.bf16 %v3207, %v3206
    %v3246 = vpack.c.bf16 %v3209, %v3208
    %v3247 = vpack.c.bf16 %v3211, %v3210
    %v3248 = vpack.c.bf16 %v3213, %v3212
    %v3249 = vpack.c.bf16 %v3215, %v3214
    %v3250 = vpack.c.bf16 %v3217, %v3216
    %v3251 = vpack.c.bf16 %v3219, %v3218
    %v3252 = vpack.c.bf16 %v3221, %v3220
    %v3253 = vpack.c.bf16 %v3223, %v3222
    %v3254 = vpack.c.bf16 %v3224, %v3224
    %v3271 = vunpack.c.l.b16 %v3225
    %v3272 = vunpack.c.l.b16 %v3226
    %v3273 = vunpack.c.l.b16 %v3227
    %v3274 = vunpack.c.l.b16 %v3228
    %v3275 = vunpack.c.l.b16 %v3229
    %v3276 = vunpack.c.l.b16 %v3230
    %v3277 = vunpack.c.l.b16 %v3231
    %v3278 = vunpack.c.l.b16 %v3232
    %v3279 = vunpack.c.l.b16 %v3233
    %v3280 = vunpack.c.l.b16 %v3234
    %v3281 = vunpack.c.l.b16 %v3235
    %v3282 = vunpack.c.l.b16 %v3236
    %v3283 = vunpack.c.l.b16 %v3237
    %v3284 = vunpack.c.l.b16 %v3238
    %v3285 = vunpack.c.l.b16 %v3239
    %v3286 = vunpack.c.l.b16 %v3240
    %v3287 = vpack.c.b16 %v3272, %v3271
    %v3288 = vpack.c.b16 %v3274, %v3273
    %v3289 = vpack.c.b16 %v3276, %v3275
    %v3290 = vpack.c.b16 %v3278, %v3277
    %v3291 = vpack.c.b16 %v3280, %v3279
    %v3292 = vpack.c.b16 %v3282, %v3281
    %v3293 = vpack.c.b16 %v3284, %v3283
    %v3294 = vpack.c.b16 %v3286, %v3285
    %3303 = vmatprep.subr.bf16.mxu0 0
    %3304 = vmatpush1.bf16.msra.mxu0 %v3287
    %3305 = vmatprep.subr.bf16.mxu0 0
    %3306 = vmatpush1.bf16.msra.mxu0 %v3288
    %3307 = vmatprep.subr.bf16.mxu0 0
    %3308 = vmatpush1.bf16.msra.mxu0 %v3289
    %3309 = vmatprep.subr.bf16.mxu0 0
    %3310 = vmatpush1.bf16.msra.mxu0 %v3290
    %3311 = vmatprep.subr.bf16.mxu0 0
    %3312 = vmatpush1.bf16.msra.mxu0 %v3291
    %3313 = vmatprep.subr.bf16.mxu0 0
    %3314 = vmatpush1.bf16.msra.mxu0 %v3292
    %3315 = vmatprep.subr.bf16.mxu0 0
    %3316 = vmatpush1.bf16.msra.mxu0 %v3293
    %3317 = vmatprep.subr.bf16.mxu0 0
    %3318 = vmatpush1.bf16.msra.mxu0 %v3294
    %3319 = vmatprep.subr.bf16.mxu0 0
    %3320 = vmatpush1.bf16.msra.mxu0 0
    %3321 = vmatprep.subr.bf16.mxu0 0
    %3322 = vmatpush1.bf16.msra.mxu0 0
    %3323 = vmatprep.subr.bf16.mxu0 0
    %3324 = vmatpush1.bf16.msra.mxu0 0
    %3325 = vmatprep.subr.bf16.mxu0 0
    %3326 = vmatpush1.bf16.msra.mxu0 0
    %3327 = vmatprep.subr.bf16.mxu0 0
    %3328 = vmatpush1.bf16.msra.mxu0 0
    %3329 = vmatprep.subr.bf16.mxu0 0
    %3330 = vmatpush1.bf16.msra.mxu0 0
    %3331 = vmatprep.subr.bf16.mxu0 0
    %3332 = vmatpush1.bf16.msra.mxu0 0
    %3333 = vmatprep.subr.bf16.mxu0 0
    %3334 = vmatpush1.bf16.msra.mxu0 0
    %3335 = vmatprep.mubr.bf16.mxu0 0
    %3336 = vmatmul.mubr.bf16.gmra.mrb[0].mxu0 %v3242
    %v3337 = vpop.f32.mrb[0].mxu0
    %v3338 = vadd.f32 %v3241, %v3337
    %v3339 = vpop.f32.mrb[0].mxu0
    %v3340 = vpop.f32.mrb[0].mxu0
    %v3341 = vadd.f32 %v3241, %v3340
    %v3342 = vpop.f32.mrb[0].mxu0
    %3343 = vmatprep.mubr.bf16.mxu0 0
    %3344 = vmatmul.mubr.bf16.gmra.mrb[0].mxu0 %v3243
    %v3345 = vpop.f32.mrb[0].mxu0
    %v3346 = vadd.f32 %v3241, %v3345
    %v3347 = vpop.f32.mrb[0].mxu0
    %v3348 = vpop.f32.mrb[0].mxu0
    %v3349 = vadd.f32 %v3241, %v3348
    %v3350 = vpop.f32.mrb[0].mxu0
    %3351 = vmatprep.mubr.bf16.mxu0 0
    %3352 = vmatmul.mubr.bf16.gmra.mrb[0].mxu0 %v3244
    %v3353 = vpop.f32.mrb[0].mxu0
    %v3354 = vadd.f32 %v3241, %v3353
    %v3355 = vpop.f32.mrb[0].mxu0
    %v3356 = vpop.f32.mrb[0].mxu0
    %v3357 = vadd.f32 %v3241, %v3356
    %v3358 = vpop.f32.mrb[0].mxu0
    %3359 = vmatprep.mubr.bf16.mxu0 0
    %3360 = vmatmul.mubr.bf16.gmra.mrb[0].mxu0 %v3245
    %v3361 = vpop.f32.mrb[0].mxu0
    %v3362 = vadd.f32 %v3241, %v3361
    %v3363 = vpop.f32.mrb[0].mxu0
    %v3364 = vpop.f32.mrb[0].mxu0
    %v3365 = vadd.f32 %v3241, %v3364
    %v3366 = vpop.f32.mrb[0].mxu0
    %3367 = vmatprep.mubr.bf16.mxu0 0
    %3368 = vmatmul.mubr.bf16.gmra.mrb[0].mxu0 %v3246
    %v3369 = vpop.f32.mrb[0].mxu0
    %v3370 = vadd.f32 %v3241, %v3369
    %v3371 = vpop.f32.mrb[0].mxu0
    %v3372 = vpop.f32.mrb[0].mxu0
    %v3373 = vadd.f32 %v3241, %v3372
    %v3374 = vpop.f32.mrb[0].mxu0
    %3375 = vmatprep.mubr.bf16.mxu0 0
    %3376 = vmatmul.mubr.bf16.gmra.mrb[0].mxu0 %v3247
    %v3377 = vpop.f32.mrb[0].mxu0
    %v3378 = vadd.f32 %v3241, %v3377
    %v3379 = vpop.f32.mrb[0].mxu0
    %v3380 = vpop.f32.mrb[0].mxu0
    %v3381 = vadd.f32 %v3241, %v3380
    %v3382 = vpop.f32.mrb[0].mxu0
    %3383 = vmatprep.mubr.bf16.mxu0 0
    %3384 = vmatmul.mubr.bf16.gmra.mrb[0].mxu0 %v3248
    %v3385 = vpop.f32.mrb[0].mxu0
    %v3386 = vadd.f32 %v3241, %v3385
    %v3387 = vpop.f32.mrb[0].mxu0
    %v3388 = vpop.f32.mrb[0].mxu0
    %v3389 = vadd.f32 %v3241, %v3388
    %v3390 = vpop.f32.mrb[0].mxu0
    %3391 = vmatprep.mubr.bf16.mxu0 0
    %3392 = vmatmul.mubr.bf16.gmra.mrb[0].mxu0 %v3249
    %v3393 = vpop.f32.mrb[0].mxu0
    %v3394 = vadd.f32 %v3241, %v3393
    %v3395 = vpop.f32.mrb[0].mxu0
    %v3396 = vpop.f32.mrb[0].mxu0
    %v3397 = vadd.f32 %v3241, %v3396
    %v3398 = vpop.f32.mrb[0].mxu0
    %3399 = vmatprep.mubr.bf16.mxu0 0
    %3400 = vmatmul.mubr.bf16.gmra.mrb[0].mxu0 %v3250
    %v3401 = vpop.f32.mrb[0].mxu0
    %v3402 = vadd.f32 %v3241, %v3401
    %v3403 = vpop.f32.mrb[0].mxu0
    %v3404 = vpop.f32.mrb[0].mxu0
    %v3405 = vadd.f32 %v3241, %v3404
    %v3406 = vpop.f32.mrb[0].mxu0
    %3407 = vmatprep.mubr.bf16.mxu0 0
    %3408 = vmatmul.mubr.bf16.gmra.mrb[0].mxu0 %v3251
    %v3409 = vpop.f32.mrb[0].mxu0
    %v3410 = vadd.f32 %v3241, %v3409
    %v3411 = vpop.f32.mrb[0].mxu0
    %v3412 = vpop.f32.mrb[0].mxu0
    %v3413 = vadd.f32 %v3241, %v3412
    %v3414 = vpop.f32.mrb[0].mxu0
    %3415 = vmatprep.mubr.bf16.mxu0 0
    %3416 = vmatmul.mubr.bf16.gmra.mrb[0].mxu0 %v3252
    %v3417 = vpop.f32.mrb[0].mxu0
    %v3418 = vadd.f32 %v3241, %v3417
    %v3419 = vpop.f32.mrb[0].mxu0
    %v3420 = vpop.f32.mrb[0].mxu0
    %v3421 = vadd.f32 %v3241, %v3420
    %v3422 = vpop.f32.mrb[0].mxu0
    %3423 = vmatprep.mubr.bf16.mxu0 0
    %3424 = vmatmul.mubr.bf16.gmra.mrb[0].mxu0 %v3253
    %v3425 = vpop.f32.mrb[0].mxu0
    %v3426 = vadd.f32 %v3241, %v3425
    %v3427 = vpop.f32.mrb[0].mxu0
    %v3428 = vpop.f32.mrb[0].mxu0
    %v3429 = vadd.f32 %v3241, %v3428
    %v3430 = vpop.f32.mrb[0].mxu0
    %3431 = vmatprep.mubr.bf16.mxu0 0
    %3432 = vmatmul.mubr.bf16.gmra.mrb[0].mxu0 %v3254
    %v3433 = vpop.f32.mrb[0].mxu0
    %v3434 = vadd.f32 %v3241, %v3433
    %v3435 = vpop.f32.mrb[0].mxu0
    %v3436 = vpop.f32.mrb[0].mxu0
    %v3437 = vpop.f32.mrb[0].mxu0
    %3438 = vdwg.mxu0
    %v3439 = vmax.f32 %v3338, 0.0
    %v3440 = vmax.f32 %v3341, 0.0
    %v3441 = vmax.f32 %v3346, 0.0
    %v3442 = vmax.f32 %v3349, 0.0
    %v3443 = vmax.f32 %v3354, 0.0
    %v3444 = vmax.f32 %v3357, 0.0
    %v3445 = vmax.f32 %v3362, 0.0
    %v3446 = vmax.f32 %v3365, 0.0
    %v3447 = vmax.f32 %v3370, 0.0
    %v3448 = vmax.f32 %v3373, 0.0
    %v3449 = vmax.f32 %v3378, 0.0
    %v3450 = vmax.f32 %v3381, 0.0
    %v3451 = vmax.f32 %v3386, 0.0
    %v3452 = vmax.f32 %v3389, 0.0
    %v3453 = vmax.f32 %v3394, 0.0
    %v3454 = vmax.f32 %v3397, 0.0
    %v3455 = vmax.f32 %v3402, 0.0
    %v3456 = vmax.f32 %v3405, 0.0
    %v3457 = vmax.f32 %v3410, 0.0
    %v3458 = vmax.f32 %v3413, 0.0
    %v3459 = vmax.f32 %v3418, 0.0
    %v3460 = vmax.f32 %v3421, 0.0
    %v3461 = vmax.f32 %v3426, 0.0
    %v3462 = vmax.f32 %v3429, 0.0
    %v3463 = vmax.f32 %v3434, 0.0
    %v3464 = vld [vmem:[#allocation5 + $0xa80] sm:$0xf]
    %v3465 = vld [vmem:[#allocation5 + $0xa8c] sm:$0xf]
    %v3466 = vld [vmem:[#allocation5 + $0xa98] sm:$0xf]
    %v3467 = vld [vmem:[#allocation5 + $0xaa4] sm:$0xf]
    %v3468 = vld [vmem:[#allocation5 + $0xab0] sm:$0xf]
    %v3469 = vld [vmem:[#allocation5 + $0xabc] sm:$0xf]
    %v3470 = vld [vmem:[#allocation5 + $0xac8] sm:$0xf]
    %v3471 = vld [vmem:[#allocation5 + $0xad4] sm:$0xf]
    %v3472 = vld [vmem:[#allocation5 + $0xae0] sm:$0xf]
    %v3473 = vld [vmem:[#allocation5 + $0xaec] sm:$0xf]
    %v3474 = vld [vmem:[#allocation5 + $0xaf8] sm:$0xf]
    %v3475 = vld [vmem:[#allocation5 + $0xb04] sm:$0xf]
    %v3476 = vld [vmem:[#allocation5 + $0xb10] sm:$0xf]
    %v3477 = vld [vmem:[#allocation5 + $0xb1c] sm:$0xf]
    %v3478 = vld [vmem:[#allocation5 + $0xb28] sm:$0xf]
    %v3479 = vld [vmem:[#allocation5 + $0xb34] sm:$0xf]
    %v3480 = vld [vmem:[#allocation7 + $0x1b] ss:$0 sm:$0xff]
    %v3481 = vpack.c.bf16 %v3440, %v3439
    %v3482 = vpack.c.bf16 %v3442, %v3441
    %v3483 = vpack.c.bf16 %v3444, %v3443
    %v3484 = vpack.c.bf16 %v3446, %v3445
    %v3485 = vpack.c.bf16 %v3448, %v3447
    %v3486 = vpack.c.bf16 %v3450, %v3449
    %v3487 = vpack.c.bf16 %v3452, %v3451
    %v3488 = vpack.c.bf16 %v3454, %v3453
    %v3489 = vpack.c.bf16 %v3456, %v3455
    %v3490 = vpack.c.bf16 %v3458, %v3457
    %v3491 = vpack.c.bf16 %v3460, %v3459
    %v3492 = vpack.c.bf16 %v3462, %v3461
    %v3493 = vpack.c.bf16 %v3463, %v3463
    %v3510 = vunpack.c.l.b16 %v3464
    %v3511 = vunpack.c.l.b16 %v3465
    %v3512 = vunpack.c.l.b16 %v3466
    %v3513 = vunpack.c.l.b16 %v3467
    %v3514 = vunpack.c.l.b16 %v3468
    %v3515 = vunpack.c.l.b16 %v3469
    %v3516 = vunpack.c.l.b16 %v3470
    %v3517 = vunpack.c.l.b16 %v3471
    %v3518 = vunpack.c.l.b16 %v3472
    %v3519 = vunpack.c.l.b16 %v3473
    %v3520 = vunpack.c.l.b16 %v3474
    %v3521 = vunpack.c.l.b16 %v3475
    %v3522 = vunpack.c.l.b16 %v3476
    %v3523 = vunpack.c.l.b16 %v3477
    %v3524 = vunpack.c.l.b16 %v3478
    %v3525 = vunpack.c.l.b16 %v3479
    %v3526 = vpack.c.b16 %v3511, %v3510
    %v3527 = vpack.c.b16 %v3513, %v3512
    %v3528 = vpack.c.b16 %v3515, %v3514
    %v3529 = vpack.c.b16 %v3517, %v3516
    %v3530 = vpack.c.b16 %v3519, %v3518
    %v3531 = vpack.c.b16 %v3521, %v3520
    %v3532 = vpack.c.b16 %v3523, %v3522
    %v3533 = vpack.c.b16 %v3525, %v3524
    %3542 = vmatprep.subr.bf16.mxu0 0
    %3543 = vmatpush1.bf16.msra.mxu0 %v3526
    %3544 = vmatprep.subr.bf16.mxu0 0
    %3545 = vmatpush1.bf16.msra.mxu0 %v3527
    %3546 = vmatprep.subr.bf16.mxu0 0
    %3547 = vmatpush1.bf16.msra.mxu0 %v3528
    %3548 = vmatprep.subr.bf16.mxu0 0
    %3549 = vmatpush1.bf16.msra.mxu0 %v3529
    %3550 = vmatprep.subr.bf16.mxu0 0
    %3551 = vmatpush1.bf16.msra.mxu0 %v3530
    %3552 = vmatprep.subr.bf16.mxu0 0
    %3553 = vmatpush1.bf16.msra.mxu0 %v3531
    %3554 = vmatprep.subr.bf16.mxu0 0
    %3555 = vmatpush1.bf16.msra.mxu0 %v3532
    %3556 = vmatprep.subr.bf16.mxu0 0
    %3557 = vmatpush1.bf16.msra.mxu0 %v3533
    %3558 = vmatprep.subr.bf16.mxu0 0
    %3559 = vmatpush1.bf16.msra.mxu0 0
    %3560 = vmatprep.subr.bf16.mxu0 0
    %3561 = vmatpush1.bf16.msra.mxu0 0
    %3562 = vmatprep.subr.bf16.mxu0 0
    %3563 = vmatpush1.bf16.msra.mxu0 0
    %3564 = vmatprep.subr.bf16.mxu0 0
    %3565 = vmatpush1.bf16.msra.mxu0 0
    %3566 = vmatprep.subr.bf16.mxu0 0
    %3567 = vmatpush1.bf16.msra.mxu0 0
    %3568 = vmatprep.subr.bf16.mxu0 0
    %3569 = vmatpush1.bf16.msra.mxu0 0
    %3570 = vmatprep.subr.bf16.mxu0 0
    %3571 = vmatpush1.bf16.msra.mxu0 0
    %3572 = vmatprep.subr.bf16.mxu0 0
    %3573 = vmatpush1.bf16.msra.mxu0 0
    %3574 = vmatprep.mubr.bf16.mxu0 0
    %3575 = vmatmul.mubr.bf16.gmra.mrb[0].mxu0 %v3481
    %v3576 = vpop.f32.mrb[0].mxu0
    %v3577 = vadd.f32 %v3480, %v3576
    %v3578 = vpop.f32.mrb[0].mxu0
    %v3579 = vpop.f32.mrb[0].mxu0
    %v3580 = vadd.f32 %v3480, %v3579
    %v3581 = vpop.f32.mrb[0].mxu0
    %3582 = vmatprep.mubr.bf16.mxu0 0
    %3583 = vmatmul.mubr.bf16.gmra.mrb[0].mxu0 %v3482
    %v3584 = vpop.f32.mrb[0].mxu0
    %v3585 = vadd.f32 %v3480, %v3584
    %v3586 = vpop.f32.mrb[0].mxu0
    %v3587 = vpop.f32.mrb[0].mxu0
    %v3588 = vadd.f32 %v3480, %v3587
    %v3589 = vpop.f32.mrb[0].mxu0
    %3590 = vmatprep.mubr.bf16.mxu0 0
    %3591 = vmatmul.mubr.bf16.gmra.mrb[0].mxu0 %v3483
    %v3592 = vpop.f32.mrb[0].mxu0
    %v3593 = vadd.f32 %v3480, %v3592
    %v3594 = vpop.f32.mrb[0].mxu0
    %v3595 = vpop.f32.mrb[0].mxu0
    %v3596 = vadd.f32 %v3480, %v3595
    %v3597 = vpop.f32.mrb[0].mxu0
    %3598 = vmatprep.mubr.bf16.mxu0 0
    %3599 = vmatmul.mubr.bf16.gmra.mrb[0].mxu0 %v3484
    %v3600 = vpop.f32.mrb[0].mxu0
    %v3601 = vadd.f32 %v3480, %v3600
    %v3602 = vpop.f32.mrb[0].mxu0
    %v3603 = vpop.f32.mrb[0].mxu0
    %v3604 = vadd.f32 %v3480, %v3603
    %v3605 = vpop.f32.mrb[0].mxu0
    %3606 = vmatprep.mubr.bf16.mxu0 0
    %3607 = vmatmul.mubr.bf16.gmra.mrb[0].mxu0 %v3485
    %v3608 = vpop.f32.mrb[0].mxu0
    %v3609 = vadd.f32 %v3480, %v3608
    %v3610 = vpop.f32.mrb[0].mxu0
    %v3611 = vpop.f32.mrb[0].mxu0
    %v3612 = vadd.f32 %v3480, %v3611
    %v3613 = vpop.f32.mrb[0].mxu0
    %3614 = vmatprep.mubr.bf16.mxu0 0
    %3615 = vmatmul.mubr.bf16.gmra.mrb[0].mxu0 %v3486
    %v3616 = vpop.f32.mrb[0].mxu0
    %v3617 = vadd.f32 %v3480, %v3616
    %v3618 = vpop.f32.mrb[0].mxu0
    %v3619 = vpop.f32.mrb[0].mxu0
    %v3620 = vadd.f32 %v3480, %v3619
    %v3621 = vpop.f32.mrb[0].mxu0
    %3622 = vmatprep.mubr.bf16.mxu0 0
    %3623 = vmatmul.mubr.bf16.gmra.mrb[0].mxu0 %v3487
    %v3624 = vpop.f32.mrb[0].mxu0
    %v3625 = vadd.f32 %v3480, %v3624
    %v3626 = vpop.f32.mrb[0].mxu0
    %v3627 = vpop.f32.mrb[0].mxu0
    %v3628 = vadd.f32 %v3480, %v3627
    %v3629 = vpop.f32.mrb[0].mxu0
    %3630 = vmatprep.mubr.bf16.mxu0 0
    %3631 = vmatmul.mubr.bf16.gmra.mrb[0].mxu0 %v3488
    %v3632 = vpop.f32.mrb[0].mxu0
    %v3633 = vadd.f32 %v3480, %v3632
    %v3634 = vpop.f32.mrb[0].mxu0
    %v3635 = vpop.f32.mrb[0].mxu0
    %v3636 = vadd.f32 %v3480, %v3635
    %v3637 = vpop.f32.mrb[0].mxu0
    %3638 = vmatprep.mubr.bf16.mxu0 0
    %3639 = vmatmul.mubr.bf16.gmra.mrb[0].mxu0 %v3489
    %v3640 = vpop.f32.mrb[0].mxu0
    %v3641 = vadd.f32 %v3480, %v3640
    %v3642 = vpop.f32.mrb[0].mxu0
    %v3643 = vpop.f32.mrb[0].mxu0
    %v3644 = vadd.f32 %v3480, %v3643
    %v3645 = vpop.f32.mrb[0].mxu0
    %3646 = vmatprep.mubr.bf16.mxu0 0
    %3647 = vmatmul.mubr.bf16.gmra.mrb[0].mxu0 %v3490
    %v3648 = vpop.f32.mrb[0].mxu0
    %v3649 = vadd.f32 %v3480, %v3648
    %v3650 = vpop.f32.mrb[0].mxu0
    %v3651 = vpop.f32.mrb[0].mxu0
    %v3652 = vadd.f32 %v3480, %v3651
    %v3653 = vpop.f32.mrb[0].mxu0
    %3654 = vmatprep.mubr.bf16.mxu0 0
    %3655 = vmatmul.mubr.bf16.gmra.mrb[0].mxu0 %v3491
    %v3656 = vpop.f32.mrb[0].mxu0
    %v3657 = vadd.f32 %v3480, %v3656
    %v3658 = vpop.f32.mrb[0].mxu0
    %v3659 = vpop.f32.mrb[0].mxu0
    %v3660 = vadd.f32 %v3480, %v3659
    %v3661 = vpop.f32.mrb[0].mxu0
    %3662 = vmatprep.mubr.bf16.mxu0 0
    %3663 = vmatmul.mubr.bf16.gmra.mrb[0].mxu0 %v3492
    %v3664 = vpop.f32.mrb[0].mxu0
    %v3665 = vadd.f32 %v3480, %v3664
    %v3666 = vpop.f32.mrb[0].mxu0
    %v3667 = vpop.f32.mrb[0].mxu0
    %v3668 = vadd.f32 %v3480, %v3667
    %v3669 = vpop.f32.mrb[0].mxu0
    %3670 = vmatprep.mubr.bf16.mxu0 0
    %3671 = vmatmul.mubr.bf16.gmra.mrb[0].mxu0 %v3493
    %v3672 = vpop.f32.mrb[0].mxu0
    %v3673 = vadd.f32 %v3480, %v3672
    %v3674 = vpop.f32.mrb[0].mxu0
    %v3675 = vpop.f32.mrb[0].mxu0
    %v3676 = vpop.f32.mrb[0].mxu0
    %3677 = vdwg.mxu0
    %v3678 = vmax.f32 %v3577, 0.0
    %v3679 = vmax.f32 %v3580, 0.0
    %v3680 = vmax.f32 %v3585, 0.0
    %v3681 = vmax.f32 %v3588, 0.0
    %v3682 = vmax.f32 %v3593, 0.0
    %v3683 = vmax.f32 %v3596, 0.0
    %v3684 = vmax.f32 %v3601, 0.0
    %v3685 = vmax.f32 %v3604, 0.0
    %v3686 = vmax.f32 %v3609, 0.0
    %v3687 = vmax.f32 %v3612, 0.0
    %v3688 = vmax.f32 %v3617, 0.0
    %v3689 = vmax.f32 %v3620, 0.0
    %v3690 = vmax.f32 %v3625, 0.0
    %v3691 = vmax.f32 %v3628, 0.0
    %v3692 = vmax.f32 %v3633, 0.0
    %v3693 = vmax.f32 %v3636, 0.0
    %v3694 = vmax.f32 %v3641, 0.0
    %v3695 = vmax.f32 %v3644, 0.0
    %v3696 = vmax.f32 %v3649, 0.0
    %v3697 = vmax.f32 %v3652, 0.0
    %v3698 = vmax.f32 %v3657, 0.0
    %v3699 = vmax.f32 %v3660, 0.0
    %v3700 = vmax.f32 %v3665, 0.0
    %v3701 = vmax.f32 %v3668, 0.0
    %v3702 = vmax.f32 %v3673, 0.0
    %v3703 = vld [vmem:[#allocation5 + $0xb40] sm:$0xf]
    %v3704 = vld [vmem:[#allocation5 + $0xb4c] sm:$0xf]
    %v3705 = vld [vmem:[#allocation5 + $0xb58] sm:$0xf]
    %v3706 = vld [vmem:[#allocation5 + $0xb64] sm:$0xf]
    %v3707 = vld [vmem:[#allocation5 + $0xb70] sm:$0xf]
    %v3708 = vld [vmem:[#allocation5 + $0xb7c] sm:$0xf]
    %v3709 = vld [vmem:[#allocation5 + $0xb88] sm:$0xf]
    %v3710 = vld [vmem:[#allocation5 + $0xb94] sm:$0xf]
    %v3711 = vld [vmem:[#allocation5 + $0xba0] sm:$0xf]
    %v3712 = vld [vmem:[#allocation5 + $0xbac] sm:$0xf]
    %v3713 = vld [vmem:[#allocation5 + $0xbb8] sm:$0xf]
    %v3714 = vld [vmem:[#allocation5 + $0xbc4] sm:$0xf]
    %v3715 = vld [vmem:[#allocation5 + $0xbd0] sm:$0xf]
    %v3716 = vld [vmem:[#allocation5 + $0xbdc] sm:$0xf]
    %v3717 = vld [vmem:[#allocation5 + $0xbe8] sm:$0xf]
    %v3718 = vld [vmem:[#allocation5 + $0xbf4] sm:$0xf]
    %v3719 = vld [vmem:[#allocation7 + $0x1c] ss:$0 sm:$0xff]
    %v3720 = vpack.c.bf16 %v3679, %v3678
    %v3721 = vpack.c.bf16 %v3681, %v3680
    %v3722 = vpack.c.bf16 %v3683, %v3682
    %v3723 = vpack.c.bf16 %v3685, %v3684
    %v3724 = vpack.c.bf16 %v3687, %v3686
    %v3725 = vpack.c.bf16 %v3689, %v3688
    %v3726 = vpack.c.bf16 %v3691, %v3690
    %v3727 = vpack.c.bf16 %v3693, %v3692
    %v3728 = vpack.c.bf16 %v3695, %v3694
    %v3729 = vpack.c.bf16 %v3697, %v3696
    %v3730 = vpack.c.bf16 %v3699, %v3698
    %v3731 = vpack.c.bf16 %v3701, %v3700
    %v3732 = vpack.c.bf16 %v3702, %v3702
    %v3749 = vunpack.c.l.b16 %v3703
    %v3750 = vunpack.c.l.b16 %v3704
    %v3751 = vunpack.c.l.b16 %v3705
    %v3752 = vunpack.c.l.b16 %v3706
    %v3753 = vunpack.c.l.b16 %v3707
    %v3754 = vunpack.c.l.b16 %v3708
    %v3755 = vunpack.c.l.b16 %v3709
    %v3756 = vunpack.c.l.b16 %v3710
    %v3757 = vunpack.c.l.b16 %v3711
    %v3758 = vunpack.c.l.b16 %v3712
    %v3759 = vunpack.c.l.b16 %v3713
    %v3760 = vunpack.c.l.b16 %v3714
    %v3761 = vunpack.c.l.b16 %v3715
    %v3762 = vunpack.c.l.b16 %v3716
    %v3763 = vunpack.c.l.b16 %v3717
    %v3764 = vunpack.c.l.b16 %v3718
    %v3765 = vpack.c.b16 %v3750, %v3749
    %v3766 = vpack.c.b16 %v3752, %v3751
    %v3767 = vpack.c.b16 %v3754, %v3753
    %v3768 = vpack.c.b16 %v3756, %v3755
    %v3769 = vpack.c.b16 %v3758, %v3757
    %v3770 = vpack.c.b16 %v3760, %v3759
    %v3771 = vpack.c.b16 %v3762, %v3761
    %v3772 = vpack.c.b16 %v3764, %v3763
    %3781 = vmatprep.subr.bf16.mxu0 0
    %3782 = vmatpush1.bf16.msra.mxu0 %v3765
    %3783 = vmatprep.subr.bf16.mxu0 0
    %3784 = vmatpush1.bf16.msra.mxu0 %v3766
    %3785 = vmatprep.subr.bf16.mxu0 0
    %3786 = vmatpush1.bf16.msra.mxu0 %v3767
    %3787 = vmatprep.subr.bf16.mxu0 0
    %3788 = vmatpush1.bf16.msra.mxu0 %v3768
    %3789 = vmatprep.subr.bf16.mxu0 0
    %3790 = vmatpush1.bf16.msra.mxu0 %v3769
    %3791 = vmatprep.subr.bf16.mxu0 0
    %3792 = vmatpush1.bf16.msra.mxu0 %v3770
    %3793 = vmatprep.subr.bf16.mxu0 0
    %3794 = vmatpush1.bf16.msra.mxu0 %v3771
    %3795 = vmatprep.subr.bf16.mxu0 0
    %3796 = vmatpush1.bf16.msra.mxu0 %v3772
    %3797 = vmatprep.subr.bf16.mxu0 0
    %3798 = vmatpush1.bf16.msra.mxu0 0
    %3799 = vmatprep.subr.bf16.mxu0 0
    %3800 = vmatpush1.bf16.msra.mxu0 0
    %3801 = vmatprep.subr.bf16.mxu0 0
    %3802 = vmatpush1.bf16.msra.mxu0 0
    %3803 = vmatprep.subr.bf16.mxu0 0
    %3804 = vmatpush1.bf16.msra.mxu0 0
    %3805 = vmatprep.subr.bf16.mxu0 0
    %3806 = vmatpush1.bf16.msra.mxu0 0
    %3807 = vmatprep.subr.bf16.mxu0 0
    %3808 = vmatpush1.bf16.msra.mxu0 0
    %3809 = vmatprep.subr.bf16.mxu0 0
    %3810 = vmatpush1.bf16.msra.mxu0 0
    %3811 = vmatprep.subr.bf16.mxu0 0
    %3812 = vmatpush1.bf16.msra.mxu0 0
    %3813 = vmatprep.mubr.bf16.mxu0 0
    %3814 = vmatmul.mubr.bf16.gmra.mrb[0].mxu0 %v3720
    %v3815 = vpop.f32.mrb[0].mxu0
    %v3816 = vadd.f32 %v3719, %v3815
    %v3817 = vpop.f32.mrb[0].mxu0
    %v3818 = vpop.f32.mrb[0].mxu0
    %v3819 = vadd.f32 %v3719, %v3818
    %v3820 = vpop.f32.mrb[0].mxu0
    %3821 = vmatprep.mubr.bf16.mxu0 0
    %3822 = vmatmul.mubr.bf16.gmra.mrb[0].mxu0 %v3721
    %v3823 = vpop.f32.mrb[0].mxu0
    %v3824 = vadd.f32 %v3719, %v3823
    %v3825 = vpop.f32.mrb[0].mxu0
    %v3826 = vpop.f32.mrb[0].mxu0
    %v3827 = vadd.f32 %v3719, %v3826
    %v3828 = vpop.f32.mrb[0].mxu0
    %3829 = vmatprep.mubr.bf16.mxu0 0
    %3830 = vmatmul.mubr.bf16.gmra.mrb[0].mxu0 %v3722
    %v3831 = vpop.f32.mrb[0].mxu0
    %v3832 = vadd.f32 %v3719, %v3831
    %v3833 = vpop.f32.mrb[0].mxu0
    %v3834 = vpop.f32.mrb[0].mxu0
    %v3835 = vadd.f32 %v3719, %v3834
    %v3836 = vpop.f32.mrb[0].mxu0
    %3837 = vmatprep.mubr.bf16.mxu0 0
    %3838 = vmatmul.mubr.bf16.gmra.mrb[0].mxu0 %v3723
    %v3839 = vpop.f32.mrb[0].mxu0
    %v3840 = vadd.f32 %v3719, %v3839
    %v3841 = vpop.f32.mrb[0].mxu0
    %v3842 = vpop.f32.mrb[0].mxu0
    %v3843 = vadd.f32 %v3719, %v3842
    %v3844 = vpop.f32.mrb[0].mxu0
    %3845 = vmatprep.mubr.bf16.mxu0 0
    %3846 = vmatmul.mubr.bf16.gmra.mrb[0].mxu0 %v3724
    %v3847 = vpop.f32.mrb[0].mxu0
    %v3848 = vadd.f32 %v3719, %v3847
    %v3849 = vpop.f32.mrb[0].mxu0
    %v3850 = vpop.f32.mrb[0].mxu0
    %v3851 = vadd.f32 %v3719, %v3850
    %v3852 = vpop.f32.mrb[0].mxu0
    %3853 = vmatprep.mubr.bf16.mxu0 0
    %3854 = vmatmul.mubr.bf16.gmra.mrb[0].mxu0 %v3725
    %v3855 = vpop.f32.mrb[0].mxu0
    %v3856 = vadd.f32 %v3719, %v3855
    %v3857 = vpop.f32.mrb[0].mxu0
    %v3858 = vpop.f32.mrb[0].mxu0
    %v3859 = vadd.f32 %v3719, %v3858
    %v3860 = vpop.f32.mrb[0].mxu0
    %3861 = vmatprep.mubr.bf16.mxu0 0
    %3862 = vmatmul.mubr.bf16.gmra.mrb[0].mxu0 %v3726
    %v3863 = vpop.f32.mrb[0].mxu0
    %v3864 = vadd.f32 %v3719, %v3863
    %v3865 = vpop.f32.mrb[0].mxu0
    %v3866 = vpop.f32.mrb[0].mxu0
    %v3867 = vadd.f32 %v3719, %v3866
    %v3868 = vpop.f32.mrb[0].mxu0
    %3869 = vmatprep.mubr.bf16.mxu0 0
    %3870 = vmatmul.mubr.bf16.gmra.mrb[0].mxu0 %v3727
    %v3871 = vpop.f32.mrb[0].mxu0
    %v3872 = vadd.f32 %v3719, %v3871
    %v3873 = vpop.f32.mrb[0].mxu0
    %v3874 = vpop.f32.mrb[0].mxu0
    %v3875 = vadd.f32 %v3719, %v3874
    %v3876 = vpop.f32.mrb[0].mxu0
    %3877 = vmatprep.mubr.bf16.mxu0 0
    %3878 = vmatmul.mubr.bf16.gmra.mrb[0].mxu0 %v3728
    %v3879 = vpop.f32.mrb[0].mxu0
    %v3880 = vadd.f32 %v3719, %v3879
    %v3881 = vpop.f32.mrb[0].mxu0
    %v3882 = vpop.f32.mrb[0].mxu0
    %v3883 = vadd.f32 %v3719, %v3882
    %v3884 = vpop.f32.mrb[0].mxu0
    %3885 = vmatprep.mubr.bf16.mxu0 0
    %3886 = vmatmul.mubr.bf16.gmra.mrb[0].mxu0 %v3729
    %v3887 = vpop.f32.mrb[0].mxu0
    %v3888 = vadd.f32 %v3719, %v3887
    %v3889 = vpop.f32.mrb[0].mxu0
    %v3890 = vpop.f32.mrb[0].mxu0
    %v3891 = vadd.f32 %v3719, %v3890
    %v3892 = vpop.f32.mrb[0].mxu0
    %3893 = vmatprep.mubr.bf16.mxu0 0
    %3894 = vmatmul.mubr.bf16.gmra.mrb[0].mxu0 %v3730
    %v3895 = vpop.f32.mrb[0].mxu0
    %v3896 = vadd.f32 %v3719, %v3895
    %v3897 = vpop.f32.mrb[0].mxu0
    %v3898 = vpop.f32.mrb[0].mxu0
    %v3899 = vadd.f32 %v3719, %v3898
    %v3900 = vpop.f32.mrb[0].mxu0
    %3901 = vmatprep.mubr.bf16.mxu0 0
    %3902 = vmatmul.mubr.bf16.gmra.mrb[0].mxu0 %v3731
    %v3903 = vpop.f32.mrb[0].mxu0
    %v3904 = vadd.f32 %v3719, %v3903
    %v3905 = vpop.f32.mrb[0].mxu0
    %v3906 = vpop.f32.mrb[0].mxu0
    %v3907 = vadd.f32 %v3719, %v3906
    %v3908 = vpop.f32.mrb[0].mxu0
    %3909 = vmatprep.mubr.bf16.mxu0 0
    %3910 = vmatmul.mubr.bf16.gmra.mrb[0].mxu0 %v3732
    %v3911 = vpop.f32.mrb[0].mxu0
    %v3912 = vadd.f32 %v3719, %v3911
    %v3913 = vpop.f32.mrb[0].mxu0
    %v3914 = vpop.f32.mrb[0].mxu0
    %v3915 = vpop.f32.mrb[0].mxu0
    %3916 = vdwg.mxu0
    %v3917 = vmax.f32 %v3816, 0.0
    %v3918 = vmax.f32 %v3819, 0.0
    %v3919 = vmax.f32 %v3824, 0.0
    %v3920 = vmax.f32 %v3827, 0.0
    %v3921 = vmax.f32 %v3832, 0.0
    %v3922 = vmax.f32 %v3835, 0.0
    %v3923 = vmax.f32 %v3840, 0.0
    %v3924 = vmax.f32 %v3843, 0.0
    %v3925 = vmax.f32 %v3848, 0.0
    %v3926 = vmax.f32 %v3851, 0.0
    %v3927 = vmax.f32 %v3856, 0.0
    %v3928 = vmax.f32 %v3859, 0.0
    %v3929 = vmax.f32 %v3864, 0.0
    %v3930 = vmax.f32 %v3867, 0.0
    %v3931 = vmax.f32 %v3872, 0.0
    %v3932 = vmax.f32 %v3875, 0.0
    %v3933 = vmax.f32 %v3880, 0.0
    %v3934 = vmax.f32 %v3883, 0.0
    %v3935 = vmax.f32 %v3888, 0.0
    %v3936 = vmax.f32 %v3891, 0.0
    %v3937 = vmax.f32 %v3896, 0.0
    %v3938 = vmax.f32 %v3899, 0.0
    %v3939 = vmax.f32 %v3904, 0.0
    %v3940 = vmax.f32 %v3907, 0.0
    %v3941 = vmax.f32 %v3912, 0.0
    %v3942 = vld [vmem:[#allocation5 + $0xc00] sm:$0xff]
    %v3943 = vld [vmem:[#allocation5 + $0xc0c] sm:$0xff]
    %v3944 = vld [vmem:[#allocation5 + $0xc18] sm:$0xff]
    %v3945 = vld [vmem:[#allocation5 + $0xc24] sm:$0xff]
    %v3946 = vld [vmem:[#allocation5 + $0xc30] sm:$0xff]
    %v3947 = vld [vmem:[#allocation5 + $0xc3c] sm:$0xff]
    %v3948 = vld [vmem:[#allocation5 + $0xc48] sm:$0xff]
    %v3949 = vld [vmem:[#allocation5 + $0xc54] sm:$0xff]
    %v3950 = vld [vmem:[#allocation5 + $0xc60] sm:$0xff]
    %v3951 = vld [vmem:[#allocation5 + $0xc6c] sm:$0xff]
    %v3952 = vld [vmem:[#allocation5 + $0xc78] sm:$0xff]
    %v3953 = vld [vmem:[#allocation5 + $0xc84] sm:$0xff]
    %v3954 = vld [vmem:[#allocation5 + $0xc90] sm:$0xff]
    %v3955 = vld [vmem:[#allocation5 + $0xc9c] sm:$0xff]
    %v3956 = vld [vmem:[#allocation5 + $0xca8] sm:$0xff]
    %v3957 = vld [vmem:[#allocation5 + $0xcb4] sm:$0xff]
    %s3958 = scalar_lea.vmem [#allocation7], 29
    %v3959 = vld [vmem:[%s3958] ss:$8 sm:$0x3]
    %v3960 = vpack.c.bf16 %v3918, %v3917
    %v3961 = vpack.c.bf16 %v3920, %v3919
    %v3962 = vpack.c.bf16 %v3922, %v3921
    %v3963 = vpack.c.bf16 %v3924, %v3923
    %v3964 = vpack.c.bf16 %v3926, %v3925
    %v3965 = vpack.c.bf16 %v3928, %v3927
    %v3966 = vpack.c.bf16 %v3930, %v3929
    %v3967 = vpack.c.bf16 %v3932, %v3931
    %v3968 = vpack.c.bf16 %v3934, %v3933
    %v3969 = vpack.c.bf16 %v3936, %v3935
    %v3970 = vpack.c.bf16 %v3938, %v3937
    %v3971 = vpack.c.bf16 %v3940, %v3939
    %v3972 = vpack.c.bf16 %v3941, %v3941
    %v3974 = vlaneseq
    %v3975 = vshrl.u32 %v3974, 7
    %v3976 = vsub.s32 0, %v3975
    %v3977 = vrot.slane %v3959, %v3976
    %v3978 = vlaneseq
    %v3979 = vshrl.u32 %v3978, 7
    %v3980 = vsub.s32 1, %v3979
    %v3981 = vrot.slane %v3959, %v3980
    %v4000 = vunpack.c.l.b16 %v3942
    %v4001 = vunpack.c.h.b16 %v3942
    %v4002 = vunpack.c.l.b16 %v3943
    %v4003 = vunpack.c.h.b16 %v3943
    %v4004 = vunpack.c.l.b16 %v3944
    %v4005 = vunpack.c.h.b16 %v3944
    %v4006 = vunpack.c.l.b16 %v3945
    %v4007 = vunpack.c.h.b16 %v3945
    %v4008 = vunpack.c.l.b16 %v3946
    %v4009 = vunpack.c.h.b16 %v3946
    %v4010 = vunpack.c.l.b16 %v3947
    %v4011 = vunpack.c.h.b16 %v3947
    %v4012 = vunpack.c.l.b16 %v3948
    %v4013 = vunpack.c.h.b16 %v3948
    %v4014 = vunpack.c.l.b16 %v3949
    %v4015 = vunpack.c.h.b16 %v3949
    %v4016 = vunpack.c.l.b16 %v3950
    %v4017 = vunpack.c.h.b16 %v3950
    %v4018 = vunpack.c.l.b16 %v3951
    %v4019 = vunpack.c.h.b16 %v3951
    %v4020 = vunpack.c.l.b16 %v3952
    %v4021 = vunpack.c.h.b16 %v3952
    %v4022 = vunpack.c.l.b16 %v3953
    %v4023 = vunpack.c.h.b16 %v3953
    %v4024 = vunpack.c.l.b16 %v3954
    %v4025 = vunpack.c.h.b16 %v3954
    %v4026 = vunpack.c.l.b16 %v3955
    %v4027 = vunpack.c.h.b16 %v3955
    %v4028 = vunpack.c.l.b16 %v3956
    %v4029 = vunpack.c.h.b16 %v3956
    %v4030 = vunpack.c.l.b16 %v3957
    %v4031 = vunpack.c.h.b16 %v3957
    %v4032 = vpack.c.b16 %v4002, %v4000
    %v4033 = vpack.c.b16 %v4003, %v4001
    %v4034 = vpack.c.b16 %v4006, %v4004
    %v4035 = vpack.c.b16 %v4007, %v4005
    %v4036 = vpack.c.b16 %v4010, %v4008
    %v4037 = vpack.c.b16 %v4011, %v4009
    %v4038 = vpack.c.b16 %v4014, %v4012
    %v4039 = vpack.c.b16 %v4015, %v4013
    %v4040 = vpack.c.b16 %v4018, %v4016
    %v4041 = vpack.c.b16 %v4019, %v4017
    %v4042 = vpack.c.b16 %v4022, %v4020
    %v4043 = vpack.c.b16 %v4023, %v4021
    %v4044 = vpack.c.b16 %v4026, %v4024
    %v4045 = vpack.c.b16 %v4027, %v4025
    %v4046 = vpack.c.b16 %v4030, %v4028
    %v4047 = vpack.c.b16 %v4031, %v4029
    %4064 = vmatprep.subr.bf16.mxu0 %v4033
    %4065 = vmatpush1.bf16.msra.mxu0 %v4032
    %4066 = vmatprep.subr.bf16.mxu0 %v4035
    %4067 = vmatpush1.bf16.msra.mxu0 %v4034
    %4068 = vmatprep.subr.bf16.mxu0 %v4037
    %4069 = vmatpush1.bf16.msra.mxu0 %v4036
    %4070 = vmatprep.subr.bf16.mxu0 %v4039
    %4071 = vmatpush1.bf16.msra.mxu0 %v4038
    %4072 = vmatprep.subr.bf16.mxu0 %v4041
    %4073 = vmatpush1.bf16.msra.mxu0 %v4040
    %4074 = vmatprep.subr.bf16.mxu0 %v4043
    %4075 = vmatpush1.bf16.msra.mxu0 %v4042
    %4076 = vmatprep.subr.bf16.mxu0 %v4045
    %4077 = vmatpush1.bf16.msra.mxu0 %v4044
    %4078 = vmatprep.subr.bf16.mxu0 %v4047
    %4079 = vmatpush1.bf16.msra.mxu0 %v4046
    %4080 = vmatprep.subr.bf16.mxu0 0
    %4081 = vmatpush1.bf16.msra.mxu0 0
    %4082 = vmatprep.subr.bf16.mxu0 0
    %4083 = vmatpush1.bf16.msra.mxu0 0
    %4084 = vmatprep.subr.bf16.mxu0 0
    %4085 = vmatpush1.bf16.msra.mxu0 0
    %4086 = vmatprep.subr.bf16.mxu0 0
    %4087 = vmatpush1.bf16.msra.mxu0 0
    %4088 = vmatprep.subr.bf16.mxu0 0
    %4089 = vmatpush1.bf16.msra.mxu0 0
    %4090 = vmatprep.subr.bf16.mxu0 0
    %4091 = vmatpush1.bf16.msra.mxu0 0
    %4092 = vmatprep.subr.bf16.mxu0 0
    %4093 = vmatpush1.bf16.msra.mxu0 0
    %4094 = vmatprep.subr.bf16.mxu0 0
    %4095 = vmatpush1.bf16.msra.mxu0 0
    %4096 = vmatprep.mubr.bf16.mxu0 0
    %4097 = vmatmul.mubr.bf16.gmra.mrb[0].mxu0 %v3960
    %v4098 = vpop.f32.mrb[0].mxu0
    %v4099 = vadd.f32 %v3977, %v4098
    %v4100 = vpop.f32.mrb[0].mxu0
    %v4101 = vadd.f32 %v3981, %v4100
    %v4102 = vpop.f32.mrb[0].mxu0
    %v4103 = vadd.f32 %v3977, %v4102
    %v4104 = vpop.f32.mrb[0].mxu0
    %v4105 = vadd.f32 %v3981, %v4104
    %4106 = vmatprep.mubr.bf16.mxu0 0
    %4107 = vmatmul.mubr.bf16.gmra.mrb[0].mxu0 %v3961
    %v4108 = vpop.f32.mrb[0].mxu0
    %v4109 = vadd.f32 %v3977, %v4108
    %v4110 = vpop.f32.mrb[0].mxu0
    %v4111 = vadd.f32 %v3981, %v4110
    %v4112 = vpop.f32.mrb[0].mxu0
    %v4113 = vadd.f32 %v3977, %v4112
    %v4114 = vpop.f32.mrb[0].mxu0
    %v4115 = vadd.f32 %v3981, %v4114
    %4116 = vmatprep.mubr.bf16.mxu0 0
    %4117 = vmatmul.mubr.bf16.gmra.mrb[0].mxu0 %v3962
    %v4118 = vpop.f32.mrb[0].mxu0
    %v4119 = vadd.f32 %v3977, %v4118
    %v4120 = vpop.f32.mrb[0].mxu0
    %v4121 = vadd.f32 %v3981, %v4120
    %v4122 = vpop.f32.mrb[0].mxu0
    %v4123 = vadd.f32 %v3977, %v4122
    %v4124 = vpop.f32.mrb[0].mxu0
    %v4125 = vadd.f32 %v3981, %v4124
    %4126 = vmatprep.mubr.bf16.mxu0 0
    %4127 = vmatmul.mubr.bf16.gmra.mrb[0].mxu0 %v3963
    %v4128 = vpop.f32.mrb[0].mxu0
    %v4129 = vadd.f32 %v3977, %v4128
    %v4130 = vpop.f32.mrb[0].mxu0
    %v4131 = vadd.f32 %v3981, %v4130
    %v4132 = vpop.f32.mrb[0].mxu0
    %v4133 = vadd.f32 %v3977, %v4132
    %v4134 = vpop.f32.mrb[0].mxu0
    %v4135 = vadd.f32 %v3981, %v4134
    %4136 = vmatprep.mubr.bf16.mxu0 0
    %4137 = vmatmul.mubr.bf16.gmra.mrb[0].mxu0 %v3964
    %v4138 = vpop.f32.mrb[0].mxu0
    %v4139 = vadd.f32 %v3977, %v4138
    %v4140 = vpop.f32.mrb[0].mxu0
    %v4141 = vadd.f32 %v3981, %v4140
    %v4142 = vpop.f32.mrb[0].mxu0
    %v4143 = vadd.f32 %v3977, %v4142
    %v4144 = vpop.f32.mrb[0].mxu0
    %v4145 = vadd.f32 %v3981, %v4144
    %4146 = vmatprep.mubr.bf16.mxu0 0
    %4147 = vmatmul.mubr.bf16.gmra.mrb[0].mxu0 %v3965
    %v4148 = vpop.f32.mrb[0].mxu0
    %v4149 = vadd.f32 %v3977, %v4148
    %v4150 = vpop.f32.mrb[0].mxu0
    %v4151 = vadd.f32 %v3981, %v4150
    %v4152 = vpop.f32.mrb[0].mxu0
    %v4153 = vadd.f32 %v3977, %v4152
    %v4154 = vpop.f32.mrb[0].mxu0
    %v4155 = vadd.f32 %v3981, %v4154
    %4156 = vmatprep.mubr.bf16.mxu0 0
    %4157 = vmatmul.mubr.bf16.gmra.mrb[0].mxu0 %v3966
    %v4158 = vpop.f32.mrb[0].mxu0
    %v4159 = vadd.f32 %v3977, %v4158
    %v4160 = vpop.f32.mrb[0].mxu0
    %v4161 = vadd.f32 %v3981, %v4160
    %v4162 = vpop.f32.mrb[0].mxu0
    %v4163 = vadd.f32 %v3977, %v4162
    %v4164 = vpop.f32.mrb[0].mxu0
    %v4165 = vadd.f32 %v3981, %v4164
    %4166 = vmatprep.mubr.bf16.mxu0 0
    %4167 = vmatmul.mubr.bf16.gmra.mrb[0].mxu0 %v3967
    %v4168 = vpop.f32.mrb[0].mxu0
    %v4169 = vadd.f32 %v3977, %v4168
    %v4170 = vpop.f32.mrb[0].mxu0
    %v4171 = vadd.f32 %v3981, %v4170
    %v4172 = vpop.f32.mrb[0].mxu0
    %v4173 = vadd.f32 %v3977, %v4172
    %v4174 = vpop.f32.mrb[0].mxu0
    %v4175 = vadd.f32 %v3981, %v4174
    %4176 = vmatprep.mubr.bf16.mxu0 0
    %4177 = vmatmul.mubr.bf16.gmra.mrb[0].mxu0 %v3968
    %v4178 = vpop.f32.mrb[0].mxu0
    %v4179 = vadd.f32 %v3977, %v4178
    %v4180 = vpop.f32.mrb[0].mxu0
    %v4181 = vadd.f32 %v3981, %v4180
    %v4182 = vpop.f32.mrb[0].mxu0
    %v4183 = vadd.f32 %v3977, %v4182
    %v4184 = vpop.f32.mrb[0].mxu0
    %v4185 = vadd.f32 %v3981, %v4184
    %4186 = vmatprep.mubr.bf16.mxu0 0
    %4187 = vmatmul.mubr.bf16.gmra.mrb[0].mxu0 %v3969
    %v4188 = vpop.f32.mrb[0].mxu0
    %v4189 = vadd.f32 %v3977, %v4188
    %v4190 = vpop.f32.mrb[0].mxu0
    %v4191 = vadd.f32 %v3981, %v4190
    %v4192 = vpop.f32.mrb[0].mxu0
    %v4193 = vadd.f32 %v3977, %v4192
    %v4194 = vpop.f32.mrb[0].mxu0
    %v4195 = vadd.f32 %v3981, %v4194
    %4196 = vmatprep.mubr.bf16.mxu0 0
    %4197 = vmatmul.mubr.bf16.gmra.mrb[0].mxu0 %v3970
    %v4198 = vpop.f32.mrb[0].mxu0
    %v4199 = vadd.f32 %v3977, %v4198
    %v4200 = vpop.f32.mrb[0].mxu0
    %v4201 = vadd.f32 %v3981, %v4200
    %v4202 = vpop.f32.mrb[0].mxu0
    %v4203 = vadd.f32 %v3977, %v4202
    %v4204 = vpop.f32.mrb[0].mxu0
    %v4205 = vadd.f32 %v3981, %v4204
    %4206 = vmatprep.mubr.bf16.mxu0 0
    %4207 = vmatmul.mubr.bf16.gmra.mrb[0].mxu0 %v3971
    %v4208 = vpop.f32.mrb[0].mxu0
    %v4209 = vadd.f32 %v3977, %v4208
    %v4210 = vpop.f32.mrb[0].mxu0
    %v4211 = vadd.f32 %v3981, %v4210
    %v4212 = vpop.f32.mrb[0].mxu0
    %v4213 = vadd.f32 %v3977, %v4212
    %v4214 = vpop.f32.mrb[0].mxu0
    %v4215 = vadd.f32 %v3981, %v4214
    %4216 = vmatprep.mubr.bf16.mxu0 0
    %4217 = vmatmul.mubr.bf16.gmra.mrb[0].mxu0 %v3972
    %v4218 = vpop.f32.mrb[0].mxu0
    %v4219 = vadd.f32 %v3977, %v4218
    %v4220 = vpop.f32.mrb[0].mxu0
    %v4221 = vadd.f32 %v3981, %v4220
    %v4222 = vpop.f32.mrb[0].mxu0
    %v4223 = vpop.f32.mrb[0].mxu0
    %4224 = vdwg.mxu0
    %v4225 = vxor.u32 %v4099, 2147483648
    %v4226 = vxor.u32 %v4101, 2147483648
    %v4227 = vxor.u32 %v4103, 2147483648
    %v4228 = vxor.u32 %v4105, 2147483648
    %v4229 = vxor.u32 %v4109, 2147483648
    %v4230 = vxor.u32 %v4111, 2147483648
    %v4231 = vxor.u32 %v4113, 2147483648
    %v4232 = vxor.u32 %v4115, 2147483648
    %v4233 = vxor.u32 %v4119, 2147483648
    %v4234 = vxor.u32 %v4121, 2147483648
    %v4235 = vxor.u32 %v4123, 2147483648
    %v4236 = vxor.u32 %v4125, 2147483648
    %v4237 = vxor.u32 %v4129, 2147483648
    %v4238 = vxor.u32 %v4131, 2147483648
    %v4239 = vxor.u32 %v4133, 2147483648
    %v4240 = vxor.u32 %v4135, 2147483648
    %v4241 = vxor.u32 %v4139, 2147483648
    %v4242 = vxor.u32 %v4141, 2147483648
    %v4243 = vxor.u32 %v4143, 2147483648
    %v4244 = vxor.u32 %v4145, 2147483648
    %v4245 = vxor.u32 %v4149, 2147483648
    %v4246 = vxor.u32 %v4151, 2147483648
    %v4247 = vxor.u32 %v4153, 2147483648
    %v4248 = vxor.u32 %v4155, 2147483648
    %v4249 = vxor.u32 %v4159, 2147483648
    %v4250 = vxor.u32 %v4161, 2147483648
    %v4251 = vxor.u32 %v4163, 2147483648
    %v4252 = vxor.u32 %v4165, 2147483648
    %v4253 = vxor.u32 %v4169, 2147483648
    %v4254 = vxor.u32 %v4171, 2147483648
    %v4255 = vxor.u32 %v4173, 2147483648
    %v4256 = vxor.u32 %v4175, 2147483648
    %v4257 = vxor.u32 %v4179, 2147483648
    %v4258 = vxor.u32 %v4181, 2147483648
    %v4259 = vxor.u32 %v4183, 2147483648
    %v4260 = vxor.u32 %v4185, 2147483648
    %v4261 = vxor.u32 %v4189, 2147483648
    %v4262 = vxor.u32 %v4191, 2147483648
    %v4263 = vxor.u32 %v4193, 2147483648
    %v4264 = vxor.u32 %v4195, 2147483648
    %v4265 = vxor.u32 %v4199, 2147483648
    %v4266 = vxor.u32 %v4201, 2147483648
    %v4267 = vxor.u32 %v4203, 2147483648
    %v4268 = vxor.u32 %v4205, 2147483648
    %v4269 = vxor.u32 %v4209, 2147483648
    %v4270 = vxor.u32 %v4211, 2147483648
    %v4271 = vxor.u32 %v4213, 2147483648
    %v4272 = vxor.u32 %v4215, 2147483648
    %v4273 = vxor.u32 %v4219, 2147483648
    %v4274 = vxor.u32 %v4221, 2147483648
    %v4275 = vmul.f32 %v4225, 1.442695
    %v4276 = vpow.pop %v4275
    %v4277 = vmul.f32 %v4226, 1.442695
    %v4278 = vpow.pop %v4277
    %v4279 = vmul.f32 %v4227, 1.442695
    %v4280 = vpow.pop %v4279
    %v4281 = vmul.f32 %v4228, 1.442695
    %v4282 = vpow.pop %v4281
    %v4283 = vmul.f32 %v4229, 1.442695
    %v4284 = vpow.pop %v4283
    %v4285 = vmul.f32 %v4230, 1.442695
    %v4286 = vpow.pop %v4285
    %v4287 = vmul.f32 %v4231, 1.442695
    %v4288 = vpow.pop %v4287
    %v4289 = vmul.f32 %v4232, 1.442695
    %v4290 = vpow.pop %v4289
    %v4291 = vmul.f32 %v4233, 1.442695
    %v4292 = vpow.pop %v4291
    %v4293 = vmul.f32 %v4234, 1.442695
    %v4294 = vpow.pop %v4293
    %v4295 = vmul.f32 %v4235, 1.442695
    %v4296 = vpow.pop %v4295
    %v4297 = vmul.f32 %v4236, 1.442695
    %v4298 = vpow.pop %v4297
    %v4299 = vmul.f32 %v4237, 1.442695
    %v4300 = vpow.pop %v4299
    %v4301 = vmul.f32 %v4238, 1.442695
    %v4302 = vpow.pop %v4301
    %v4303 = vmul.f32 %v4239, 1.442695
    %v4304 = vpow.pop %v4303
    %v4305 = vmul.f32 %v4240, 1.442695
    %v4306 = vpow.pop %v4305
    %v4307 = vmul.f32 %v4241, 1.442695
    %v4308 = vpow.pop %v4307
    %v4309 = vmul.f32 %v4242, 1.442695
    %v4310 = vpow.pop %v4309
    %v4311 = vmul.f32 %v4243, 1.442695
    %v4312 = vpow.pop %v4311
    %v4313 = vmul.f32 %v4244, 1.442695
    %v4314 = vpow.pop %v4313
    %v4315 = vmul.f32 %v4245, 1.442695
    %v4316 = vpow.pop %v4315
    %v4317 = vmul.f32 %v4246, 1.442695
    %v4318 = vpow.pop %v4317
    %v4319 = vmul.f32 %v4247, 1.442695
    %v4320 = vpow.pop %v4319
    %v4321 = vmul.f32 %v4248, 1.442695
    %v4322 = vpow.pop %v4321
    %v4323 = vmul.f32 %v4249, 1.442695
    %v4324 = vpow.pop %v4323
    %v4325 = vmul.f32 %v4250, 1.442695
    %v4326 = vpow.pop %v4325
    %v4327 = vmul.f32 %v4251, 1.442695
    %v4328 = vpow.pop %v4327
    %v4329 = vmul.f32 %v4252, 1.442695
    %v4330 = vpow.pop %v4329
    %v4331 = vmul.f32 %v4253, 1.442695
    %v4332 = vpow.pop %v4331
    %v4333 = vmul.f32 %v4254, 1.442695
    %v4334 = vpow.pop %v4333
    %v4335 = vmul.f32 %v4255, 1.442695
    %v4336 = vpow.pop %v4335
    %v4337 = vmul.f32 %v4256, 1.442695
    %v4338 = vpow.pop %v4337
    %v4339 = vmul.f32 %v4257, 1.442695
    %v4340 = vpow.pop %v4339
    %v4341 = vmul.f32 %v4258, 1.442695
    %v4342 = vpow.pop %v4341
    %v4343 = vmul.f32 %v4259, 1.442695
    %v4344 = vpow.pop %v4343
    %v4345 = vmul.f32 %v4260, 1.442695
    %v4346 = vpow.pop %v4345
    %v4347 = vmul.f32 %v4261, 1.442695
    %v4348 = vpow.pop %v4347
    %v4349 = vmul.f32 %v4262, 1.442695
    %v4350 = vpow.pop %v4349
    %v4351 = vmul.f32 %v4263, 1.442695
    %v4352 = vpow.pop %v4351
    %v4353 = vmul.f32 %v4264, 1.442695
    %v4354 = vpow.pop %v4353
    %v4355 = vmul.f32 %v4265, 1.442695
    %v4356 = vpow.pop %v4355
    %v4357 = vmul.f32 %v4266, 1.442695
    %v4358 = vpow.pop %v4357
    %v4359 = vmul.f32 %v4267, 1.442695
    %v4360 = vpow.pop %v4359
    %v4361 = vmul.f32 %v4268, 1.442695
    %v4362 = vpow.pop %v4361
    %v4363 = vmul.f32 %v4269, 1.442695
    %v4364 = vpow.pop %v4363
    %v4365 = vmul.f32 %v4270, 1.442695
    %v4366 = vpow.pop %v4365
    %v4367 = vmul.f32 %v4271, 1.442695
    %v4368 = vpow.pop %v4367
    %v4369 = vmul.f32 %v4272, 1.442695
    %v4370 = vpow.pop %v4369
    %v4371 = vmul.f32 %v4273, 1.442695
    %v4372 = vpow.pop %v4371
    %v4373 = vmul.f32 %v4274, 1.442695
    %v4374 = vpow.pop %v4373
    %v4375 = vadd.f32 %v4276, 1.0
    %v4376 = vadd.f32 %v4278, 1.0
    %v4377 = vadd.f32 %v4280, 1.0
    %v4378 = vadd.f32 %v4282, 1.0
    %v4379 = vadd.f32 %v4284, 1.0
    %v4380 = vadd.f32 %v4286, 1.0
    %v4381 = vadd.f32 %v4288, 1.0
    %v4382 = vadd.f32 %v4290, 1.0
    %v4383 = vadd.f32 %v4292, 1.0
    %v4384 = vadd.f32 %v4294, 1.0
    %v4385 = vadd.f32 %v4296, 1.0
    %v4386 = vadd.f32 %v4298, 1.0
    %v4387 = vadd.f32 %v4300, 1.0
    %v4388 = vadd.f32 %v4302, 1.0
    %v4389 = vadd.f32 %v4304, 1.0
    %v4390 = vadd.f32 %v4306, 1.0
    %v4391 = vadd.f32 %v4308, 1.0
    %v4392 = vadd.f32 %v4310, 1.0
    %v4393 = vadd.f32 %v4312, 1.0
    %v4394 = vadd.f32 %v4314, 1.0
    %v4395 = vadd.f32 %v4316, 1.0
    %v4396 = vadd.f32 %v4318, 1.0
    %v4397 = vadd.f32 %v4320, 1.0
    %v4398 = vadd.f32 %v4322, 1.0
    %v4399 = vadd.f32 %v4324, 1.0
    %v4400 = vadd.f32 %v4326, 1.0
    %v4401 = vadd.f32 %v4328, 1.0
    %v4402 = vadd.f32 %v4330, 1.0
    %v4403 = vadd.f32 %v4332, 1.0
    %v4404 = vadd.f32 %v4334, 1.0
    %v4405 = vadd.f32 %v4336, 1.0
    %v4406 = vadd.f32 %v4338, 1.0
    %v4407 = vadd.f32 %v4340, 1.0
    %v4408 = vadd.f32 %v4342, 1.0
    %v4409 = vadd.f32 %v4344, 1.0
    %v4410 = vadd.f32 %v4346, 1.0
    %v4411 = vadd.f32 %v4348, 1.0
    %v4412 = vadd.f32 %v4350, 1.0
    %v4413 = vadd.f32 %v4352, 1.0
    %v4414 = vadd.f32 %v4354, 1.0
    %v4415 = vadd.f32 %v4356, 1.0
    %v4416 = vadd.f32 %v4358, 1.0
    %v4417 = vadd.f32 %v4360, 1.0
    %v4418 = vadd.f32 %v4362, 1.0
    %v4419 = vadd.f32 %v4364, 1.0
    %v4420 = vadd.f32 %v4366, 1.0
    %v4421 = vadd.f32 %v4368, 1.0
    %v4422 = vadd.f32 %v4370, 1.0
    %v4423 = vadd.f32 %v4372, 1.0
    %v4424 = vadd.f32 %v4374, 1.0
    %v4425 = vrcp.pop %v4375
    %v4426 = vmul.f32 1.0, %v4425
    %v4427 = vrcp.pop %v4376
    %v4428 = vmul.f32 1.0, %v4427
    %v4429 = vrcp.pop %v4377
    %v4430 = vmul.f32 1.0, %v4429
    %v4431 = vrcp.pop %v4378
    %v4432 = vmul.f32 1.0, %v4431
    %v4433 = vrcp.pop %v4379
    %v4434 = vmul.f32 1.0, %v4433
    %v4435 = vrcp.pop %v4380
    %v4436 = vmul.f32 1.0, %v4435
    %v4437 = vrcp.pop %v4381
    %v4438 = vmul.f32 1.0, %v4437
    %v4439 = vrcp.pop %v4382
    %v4440 = vmul.f32 1.0, %v4439
    %v4441 = vrcp.pop %v4383
    %v4442 = vmul.f32 1.0, %v4441
    %v4443 = vrcp.pop %v4384
    %v4444 = vmul.f32 1.0, %v4443
    %v4445 = vrcp.pop %v4385
    %v4446 = vmul.f32 1.0, %v4445
    %v4447 = vrcp.pop %v4386
    %v4448 = vmul.f32 1.0, %v4447
    %v4449 = vrcp.pop %v4387
    %v4450 = vmul.f32 1.0, %v4449
    %v4451 = vrcp.pop %v4388
    %v4452 = vmul.f32 1.0, %v4451
    %v4453 = vrcp.pop %v4389
    %v4454 = vmul.f32 1.0, %v4453
    %v4455 = vrcp.pop %v4390
    %v4456 = vmul.f32 1.0, %v4455
    %v4457 = vrcp.pop %v4391
    %v4458 = vmul.f32 1.0, %v4457
    %v4459 = vrcp.pop %v4392
    %v4460 = vmul.f32 1.0, %v4459
    %v4461 = vrcp.pop %v4393
    %v4462 = vmul.f32 1.0, %v4461
    %v4463 = vrcp.pop %v4394
    %v4464 = vmul.f32 1.0, %v4463
    %v4465 = vrcp.pop %v4395
    %v4466 = vmul.f32 1.0, %v4465
    %v4467 = vrcp.pop %v4396
    %v4468 = vmul.f32 1.0, %v4467
    %v4469 = vrcp.pop %v4397
    %v4470 = vmul.f32 1.0, %v4469
    %v4471 = vrcp.pop %v4398
    %v4472 = vmul.f32 1.0, %v4471
    %v4473 = vrcp.pop %v4399
    %v4474 = vmul.f32 1.0, %v4473
    %v4475 = vrcp.pop %v4400
    %v4476 = vmul.f32 1.0, %v4475
    %v4477 = vrcp.pop %v4401
    %v4478 = vmul.f32 1.0, %v4477
    %v4479 = vrcp.pop %v4402
    %v4480 = vmul.f32 1.0, %v4479
    %v4481 = vrcp.pop %v4403
    %v4482 = vmul.f32 1.0, %v4481
    %v4483 = vrcp.pop %v4404
    %v4484 = vmul.f32 1.0, %v4483
    %v4485 = vrcp.pop %v4405
    %v4486 = vmul.f32 1.0, %v4485
    %v4487 = vrcp.pop %v4406
    %v4488 = vmul.f32 1.0, %v4487
    %v4489 = vrcp.pop %v4407
    %v4490 = vmul.f32 1.0, %v4489
    %v4491 = vrcp.pop %v4408
    %v4492 = vmul.f32 1.0, %v4491
    %v4493 = vrcp.pop %v4409
    %v4494 = vmul.f32 1.0, %v4493
    %v4495 = vrcp.pop %v4410
    %v4496 = vmul.f32 1.0, %v4495
    %v4497 = vrcp.pop %v4411
    %v4498 = vmul.f32 1.0, %v4497
    %v4499 = vrcp.pop %v4412
    %v4500 = vmul.f32 1.0, %v4499
    %v4501 = vrcp.pop %v4413
    %v4502 = vmul.f32 1.0, %v4501
    %v4503 = vrcp.pop %v4414
    %v4504 = vmul.f32 1.0, %v4503
    %v4505 = vrcp.pop %v4415
    %v4506 = vmul.f32 1.0, %v4505
    %v4507 = vrcp.pop %v4416
    %v4508 = vmul.f32 1.0, %v4507
    %v4509 = vrcp.pop %v4417
    %v4510 = vmul.f32 1.0, %v4509
    %v4511 = vrcp.pop %v4418
    %v4512 = vmul.f32 1.0, %v4511
    %v4513 = vrcp.pop %v4419
    %v4514 = vmul.f32 1.0, %v4513
    %v4515 = vrcp.pop %v4420
    %v4516 = vmul.f32 1.0, %v4515
    %v4517 = vrcp.pop %v4421
    %v4518 = vmul.f32 1.0, %v4517
    %v4519 = vrcp.pop %v4422
    %v4520 = vmul.f32 1.0, %v4519
    %v4521 = vrcp.pop %v4423
    %v4522 = vmul.f32 1.0, %v4521
    %v4523 = vrcp.pop %v4424
    %v4524 = vmul.f32 1.0, %v4523
    %v4525 = vld [vmem:[#allocation5 + $0xcc0] sm:$0xff]
    %v4526 = vld [vmem:[#allocation5 + $0xcc8] sm:$0xf]
    %v4527 = vld [vmem:[#allocation5 + $0xccc] sm:$0xff]
    %v4528 = vld [vmem:[#allocation5 + $0xcd4] sm:$0xf]
    %v4529 = vld [vmem:[#allocation5 + $0xcd8] sm:$0xff]
    %v4530 = vld [vmem:[#allocation5 + $0xce0] sm:$0xf]
    %v4531 = vld [vmem:[#allocation5 + $0xce4] sm:$0xff]
    %v4532 = vld [vmem:[#allocation5 + $0xcec] sm:$0xf]
    %v4533 = vld [vmem:[#allocation5 + $0xcf0] sm:$0xff]
    %v4534 = vld [vmem:[#allocation5 + $0xcf8] sm:$0xf]
    %v4535 = vld [vmem:[#allocation5 + $0xcfc] sm:$0xff]
    %v4536 = vld [vmem:[#allocation5 + $0xd04] sm:$0xf]
    %v4537 = vld [vmem:[#allocation5 + $0xd08] sm:$0xff]
    %v4538 = vld [vmem:[#allocation5 + $0xd10] sm:$0xf]
    %v4539 = vld [vmem:[#allocation5 + $0xd14] sm:$0xff]
    %v4540 = vld [vmem:[#allocation5 + $0xd1c] sm:$0xf]
    %v4541 = vld [vmem:[#allocation5 + $0xd20] sm:$0xff]
    %v4542 = vld [vmem:[#allocation5 + $0xd28] sm:$0xf]
    %v4543 = vld [vmem:[#allocation5 + $0xd2c] sm:$0xff]
    %v4544 = vld [vmem:[#allocation5 + $0xd34] sm:$0xf]
    %v4545 = vld [vmem:[#allocation5 + $0xd38] sm:$0xff]
    %v4546 = vld [vmem:[#allocation5 + $0xd40] sm:$0xf]
    %v4547 = vld [vmem:[#allocation5 + $0xd44] sm:$0xff]
    %v4548 = vld [vmem:[#allocation5 + $0xd4c] sm:$0xf]
    %v4549 = vld [vmem:[#allocation5 + $0xd50] sm:$0xff]
    %v4550 = vld [vmem:[#allocation5 + $0xd58] sm:$0xf]
    %v4551 = vld [vmem:[#allocation5 + $0xd5c] sm:$0xff]
    %v4552 = vld [vmem:[#allocation5 + $0xd64] sm:$0xf]
    %v4553 = vld [vmem:[#allocation5 + $0xd68] sm:$0xff]
    %v4554 = vld [vmem:[#allocation5 + $0xd70] sm:$0xf]
    %v4555 = vld [vmem:[#allocation5 + $0xd74] sm:$0xff]
    %v4556 = vld [vmem:[#allocation5 + $0xd7c] sm:$0xf]
    %v4557 = vld [vmem:[#allocation5 + $0xd80] sm:$0xff]
    %v4558 = vld [vmem:[#allocation5 + $0xd88] sm:$0xf]
    %v4559 = vld [vmem:[#allocation5 + $0xd8c] sm:$0xff]
    %v4560 = vld [vmem:[#allocation5 + $0xd94] sm:$0xf]
    %v4561 = vld [vmem:[#allocation5 + $0xd98] sm:$0xff]
    %v4562 = vld [vmem:[#allocation5 + $0xda0] sm:$0xf]
    %v4563 = vld [vmem:[#allocation5 + $0xda4] sm:$0xff]
    %v4564 = vld [vmem:[#allocation5 + $0xdac] sm:$0xf]
    %v4565 = vld [vmem:[#allocation5 + $0xdb0] sm:$0xff]
    %v4566 = vld [vmem:[#allocation5 + $0xdb8] sm:$0xf]
    %v4567 = vld [vmem:[#allocation5 + $0xdbc] sm:$0xff]
    %v4568 = vld [vmem:[#allocation5 + $0xdc4] sm:$0xf]
    %v4569 = vld [vmem:[#allocation5 + $0xdc8] sm:$0xff]
    %v4570 = vld [vmem:[#allocation5 + $0xdd0] sm:$0xf]
    %v4571 = vld [vmem:[#allocation5 + $0xdd4] sm:$0xff]
    %v4572 = vld [vmem:[#allocation5 + $0xddc] sm:$0xf]
    %v4573 = vld [vmem:[#allocation5 + $0xde0] sm:$0xff]
    %v4574 = vld [vmem:[#allocation5 + $0xde8] sm:$0xf]
    %v4575 = vld [vmem:[#allocation5 + $0xdec] sm:$0xff]
    %v4576 = vld [vmem:[#allocation5 + $0xdf4] sm:$0xf]
    %v4577 = vld [vmem:[#allocation5 + $0xdf8] sm:$0xff]
    %v4578 = vld [vmem:[#allocation5 + $0xe00] sm:$0xf]
    %v4579 = vld [vmem:[#allocation5 + $0xe04] sm:$0xff]
    %v4580 = vld [vmem:[#allocation5 + $0xe0c] sm:$0xf]
    %v4581 = vld [vmem:[#allocation5 + $0xe10] sm:$0xff]
    %v4582 = vld [vmem:[#allocation5 + $0xe18] sm:$0xf]
    %v4583 = vld [vmem:[#allocation5 + $0xe1c] sm:$0xff]
    %v4584 = vld [vmem:[#allocation5 + $0xe24] sm:$0xf]
    %v4585 = vld [vmem:[#allocation5 + $0xe28] sm:$0xff]
    %v4586 = vld [vmem:[#allocation5 + $0xe30] sm:$0xf]
    %v4587 = vld [vmem:[#allocation5 + $0xe34] sm:$0xff]
    %v4588 = vld [vmem:[#allocation5 + $0xe3c] sm:$0xf]
    %s4589 = scalar_lea.vmem [#allocation7], 30
    %v4590 = vld [vmem:[%s4589] ss:$8 sm:$0x7]
    %v4591 = vpack.c.bf16 %v4430, %v4426
    %v4592 = vpack.c.bf16 %v4432, %v4428
    %v4593 = vpack.c.bf16 %v4438, %v4434
    %v4594 = vpack.c.bf16 %v4440, %v4436
    %v4595 = vpack.c.bf16 %v4446, %v4442
    %v4596 = vpack.c.bf16 %v4448, %v4444
    %v4597 = vpack.c.bf16 %v4454, %v4450
    %v4598 = vpack.c.bf16 %v4456, %v4452
    %v4599 = vpack.c.bf16 %v4462, %v4458
    %v4600 = vpack.c.bf16 %v4464, %v4460
    %v4601 = vpack.c.bf16 %v4470, %v4466
    %v4602 = vpack.c.bf16 %v4472, %v4468
    %v4603 = vpack.c.bf16 %v4478, %v4474
    %v4604 = vpack.c.bf16 %v4480, %v4476
    %v4605 = vpack.c.bf16 %v4486, %v4482
    %v4606 = vpack.c.bf16 %v4488, %v4484
    %v4607 = vpack.c.bf16 %v4494, %v4490
    %v4608 = vpack.c.bf16 %v4496, %v4492
    %v4609 = vpack.c.bf16 %v4502, %v4498
    %v4610 = vpack.c.bf16 %v4504, %v4500
    %v4611 = vpack.c.bf16 %v4510, %v4506
    %v4612 = vpack.c.bf16 %v4512, %v4508
    %v4613 = vpack.c.bf16 %v4518, %v4514
    %v4614 = vpack.c.bf16 %v4520, %v4516
    %v4615 = vpack.c.bf16 %v4522, %v4522
    %v4616 = vpack.c.bf16 %v4524, %v4524
    %v4618 = vlaneseq
    %v4619 = vshrl.u32 %v4618, 7
    %v4620 = vsub.s32 0, %v4619
    %v4621 = vrot.slane %v4590, %v4620
    %v4622 = vlaneseq
    %v4623 = vshrl.u32 %v4622, 7
    %v4624 = vsub.s32 1, %v4623
    %v4625 = vrot.slane %v4590, %v4624
    %v4626 = vlaneseq
    %v4627 = vshrl.u32 %v4626, 7
    %v4628 = vsub.s32 2, %v4627
    %v4629 = vrot.slane %v4590, %v4628
    %v4697 = vunpack.c.l.b16 %v4525
    %v4698 = vunpack.c.h.b16 %v4525
    %v4699 = vunpack.c.l.b16 %v4526
    %v4700 = vunpack.c.l.b16 %v4527
    %v4701 = vunpack.c.h.b16 %v4527
    %v4702 = vunpack.c.l.b16 %v4528
    %v4703 = vunpack.c.l.b16 %v4529
    %v4704 = vunpack.c.h.b16 %v4529
    %v4705 = vunpack.c.l.b16 %v4530
    %v4706 = vunpack.c.l.b16 %v4531
    %v4707 = vunpack.c.h.b16 %v4531
    %v4708 = vunpack.c.l.b16 %v4532
    %v4709 = vunpack.c.l.b16 %v4533
    %v4710 = vunpack.c.h.b16 %v4533
    %v4711 = vunpack.c.l.b16 %v4534
    %v4712 = vunpack.c.l.b16 %v4535
    %v4713 = vunpack.c.h.b16 %v4535
    %v4714 = vunpack.c.l.b16 %v4536
    %v4715 = vunpack.c.l.b16 %v4537
    %v4716 = vunpack.c.h.b16 %v4537
    %v4717 = vunpack.c.l.b16 %v4538
    %v4718 = vunpack.c.l.b16 %v4539
    %v4719 = vunpack.c.h.b16 %v4539
    %v4720 = vunpack.c.l.b16 %v4540
    %v4721 = vunpack.c.l.b16 %v4541
    %v4722 = vunpack.c.h.b16 %v4541
    %v4723 = vunpack.c.l.b16 %v4542
    %v4724 = vunpack.c.l.b16 %v4543
    %v4725 = vunpack.c.h.b16 %v4543
    %v4726 = vunpack.c.l.b16 %v4544
    %v4727 = vunpack.c.l.b16 %v4545
    %v4728 = vunpack.c.h.b16 %v4545
    %v4729 = vunpack.c.l.b16 %v4546
    %v4730 = vunpack.c.l.b16 %v4547
    %v4731 = vunpack.c.h.b16 %v4547
    %v4732 = vunpack.c.l.b16 %v4548
    %v4733 = vunpack.c.l.b16 %v4549
    %v4734 = vunpack.c.h.b16 %v4549
    %v4735 = vunpack.c.l.b16 %v4550
    %v4736 = vunpack.c.l.b16 %v4551
    %v4737 = vunpack.c.h.b16 %v4551
    %v4738 = vunpack.c.l.b16 %v4552
    %v4739 = vunpack.c.l.b16 %v4553
    %v4740 = vunpack.c.h.b16 %v4553
    %v4741 = vunpack.c.l.b16 %v4554
    %v4742 = vunpack.c.l.b16 %v4555
    %v4743 = vunpack.c.h.b16 %v4555
    %v4744 = vunpack.c.l.b16 %v4556
    %v4745 = vunpack.c.l.b16 %v4557
    %v4746 = vunpack.c.h.b16 %v4557
    %v4747 = vunpack.c.l.b16 %v4558
    %v4748 = vunpack.c.l.b16 %v4559
    %v4749 = vunpack.c.h.b16 %v4559
    %v4750 = vunpack.c.l.b16 %v4560
    %v4751 = vunpack.c.l.b16 %v4561
    %v4752 = vunpack.c.h.b16 %v4561
    %v4753 = vunpack.c.l.b16 %v4562
    %v4754 = vunpack.c.l.b16 %v4563
    %v4755 = vunpack.c.h.b16 %v4563
    %v4756 = vunpack.c.l.b16 %v4564
    %v4757 = vunpack.c.l.b16 %v4565
    %v4758 = vunpack.c.h.b16 %v4565
    %v4759 = vunpack.c.l.b16 %v4566
    %v4760 = vunpack.c.l.b16 %v4567
    %v4761 = vunpack.c.h.b16 %v4567
    %v4762 = vunpack.c.l.b16 %v4568
    %v4763 = vunpack.c.l.b16 %v4569
    %v4764 = vunpack.c.h.b16 %v4569
    %v4765 = vunpack.c.l.b16 %v4570
    %v4766 = vunpack.c.l.b16 %v4571
    %v4767 = vunpack.c.h.b16 %v4571
    %v4768 = vunpack.c.l.b16 %v4572
    %v4769 = vunpack.c.l.b16 %v4573
    %v4770 = vunpack.c.h.b16 %v4573
    %v4771 = vunpack.c.l.b16 %v4574
    %v4772 = vunpack.c.l.b16 %v4575
    %v4773 = vunpack.c.h.b16 %v4575
    %v4774 = vunpack.c.l.b16 %v4576
    %v4775 = vunpack.c.l.b16 %v4577
    %v4776 = vunpack.c.h.b16 %v4577
    %v4777 = vunpack.c.l.b16 %v4578
    %v4778 = vunpack.c.l.b16 %v4579
    %v4779 = vunpack.c.h.b16 %v4579
    %v4780 = vunpack.c.l.b16 %v4580
    %v4781 = vunpack.c.l.b16 %v4581
    %v4782 = vunpack.c.h.b16 %v4581
    %v4783 = vunpack.c.l.b16 %v4582
    %v4784 = vunpack.c.l.b16 %v4583
    %v4785 = vunpack.c.h.b16 %v4583
    %v4786 = vunpack.c.l.b16 %v4584
    %v4787 = vunpack.c.l.b16 %v4585
    %v4788 = vunpack.c.h.b16 %v4585
    %v4789 = vunpack.c.l.b16 %v4586
    %v4790 = vunpack.c.l.b16 %v4587
    %v4791 = vunpack.c.h.b16 %v4587
    %v4792 = vunpack.c.l.b16 %v4588
    %v4793 = vpack.c.b16 %v4700, %v4697
    %v4794 = vpack.c.b16 %v4701, %v4698
    %v4795 = vpack.c.b16 %v4702, %v4699
    %v4796 = vpack.c.b16 %v4706, %v4703
    %v4797 = vpack.c.b16 %v4707, %v4704
    %v4798 = vpack.c.b16 %v4708, %v4705
    %v4799 = vpack.c.b16 %v4712, %v4709
    %v4800 = vpack.c.b16 %v4713, %v4710
    %v4801 = vpack.c.b16 %v4714, %v4711
    %v4802 = vpack.c.b16 %v4718, %v4715
    %v4803 = vpack.c.b16 %v4719, %v4716
    %v4804 = vpack.c.b16 %v4720, %v4717
    %v4805 = vpack.c.b16 %v4724, %v4721
    %v4806 = vpack.c.b16 %v4725, %v4722
    %v4807 = vpack.c.b16 %v4726, %v4723
    %v4808 = vpack.c.b16 %v4730, %v4727
    %v4809 = vpack.c.b16 %v4731, %v4728
    %v4810 = vpack.c.b16 %v4732, %v4729
    %v4811 = vpack.c.b16 %v4736, %v4733
    %v4812 = vpack.c.b16 %v4737, %v4734
    %v4813 = vpack.c.b16 %v4738, %v4735
    %v4814 = vpack.c.b16 %v4742, %v4739
    %v4815 = vpack.c.b16 %v4743, %v4740
    %v4816 = vpack.c.b16 %v4744, %v4741
    %v4817 = vpack.c.b16 %v4748, %v4745
    %v4818 = vpack.c.b16 %v4749, %v4746
    %v4819 = vpack.c.b16 %v4750, %v4747
    %v4820 = vpack.c.b16 %v4754, %v4751
    %v4821 = vpack.c.b16 %v4755, %v4752
    %v4822 = vpack.c.b16 %v4756, %v4753
    %v4823 = vpack.c.b16 %v4760, %v4757
    %v4824 = vpack.c.b16 %v4761, %v4758
    %v4825 = vpack.c.b16 %v4762, %v4759
    %v4826 = vpack.c.b16 %v4766, %v4763
    %v4827 = vpack.c.b16 %v4767, %v4764
    %v4828 = vpack.c.b16 %v4768, %v4765
    %v4829 = vpack.c.b16 %v4772, %v4769
    %v4830 = vpack.c.b16 %v4773, %v4770
    %v4831 = vpack.c.b16 %v4774, %v4771
    %v4832 = vpack.c.b16 %v4778, %v4775
    %v4833 = vpack.c.b16 %v4779, %v4776
    %v4834 = vpack.c.b16 %v4780, %v4777
    %v4835 = vpack.c.b16 %v4784, %v4781
    %v4836 = vpack.c.b16 %v4785, %v4782
    %v4837 = vpack.c.b16 %v4786, %v4783
    %v4838 = vpack.c.b16 %v4790, %v4787
    %v4839 = vpack.c.b16 %v4791, %v4788
    %v4840 = vpack.c.b16 %v4792, %v4789
    %4889 = vmatprep.subr.bf16.mxu0 %v4794
    %4890 = vmatpush1.bf16.msra.mxu0 %v4793
    %4891 = vmatprep.subr.bf16.mxu0 %v4797
    %4892 = vmatpush1.bf16.msra.mxu0 %v4796
    %4893 = vmatprep.subr.bf16.mxu0 %v4800
    %4894 = vmatpush1.bf16.msra.mxu0 %v4799
    %4895 = vmatprep.subr.bf16.mxu0 %v4803
    %4896 = vmatpush1.bf16.msra.mxu0 %v4802
    %4897 = vmatprep.subr.bf16.mxu0 %v4806
    %4898 = vmatpush1.bf16.msra.mxu0 %v4805
    %4899 = vmatprep.subr.bf16.mxu0 %v4809
    %4900 = vmatpush1.bf16.msra.mxu0 %v4808
    %4901 = vmatprep.subr.bf16.mxu0 %v4812
    %4902 = vmatpush1.bf16.msra.mxu0 %v4811
    %4903 = vmatprep.subr.bf16.mxu0 %v4815
    %4904 = vmatpush1.bf16.msra.mxu0 %v4814
    %4905 = vmatprep.subr.bf16.mxu0 %v4818
    %4906 = vmatpush1.bf16.msra.mxu0 %v4817
    %4907 = vmatprep.subr.bf16.mxu0 %v4821
    %4908 = vmatpush1.bf16.msra.mxu0 %v4820
    %4909 = vmatprep.subr.bf16.mxu0 %v4824
    %4910 = vmatpush1.bf16.msra.mxu0 %v4823
    %4911 = vmatprep.subr.bf16.mxu0 %v4827
    %4912 = vmatpush1.bf16.msra.mxu0 %v4826
    %4913 = vmatprep.subr.bf16.mxu0 %v4830
    %4914 = vmatpush1.bf16.msra.mxu0 %v4829
    %4915 = vmatprep.subr.bf16.mxu0 %v4833
    %4916 = vmatpush1.bf16.msra.mxu0 %v4832
    %4917 = vmatprep.subr.bf16.mxu0 %v4836
    %4918 = vmatpush1.bf16.msra.mxu0 %v4835
    %4919 = vmatprep.subr.bf16.mxu0 %v4839
    %4920 = vmatpush1.bf16.msra.mxu0 %v4838
    %4921 = vmatprep.mubr.bf16.mxu0 %v4592
    %4922 = vmatmul.mubr.bf16.gmra.mrb[0].mxu0 %v4591
    %v4923 = vpop.f32.mrb[0].mxu0
    %v4924 = vadd.f32 %v4621, %v4923
    %v4925 = vpop.f32.mrb[0].mxu0
    %v4926 = vadd.f32 %v4625, %v4925
    %v4927 = vpop.f32.mrb[0].mxu0
    %v4928 = vadd.f32 %v4621, %v4927
    %v4929 = vpop.f32.mrb[0].mxu0
    %v4930 = vadd.f32 %v4625, %v4929
    %4931 = vmatprep.mubr.bf16.mxu0 %v4594
    %4932 = vmatmul.mubr.bf16.gmra.mrb[0].mxu0 %v4593
    %v4933 = vpop.f32.mrb[0].mxu0
    %v4934 = vadd.f32 %v4621, %v4933
    %v4935 = vpop.f32.mrb[0].mxu0
    %v4936 = vadd.f32 %v4625, %v4935
    %v4937 = vpop.f32.mrb[0].mxu0
    %v4938 = vadd.f32 %v4621, %v4937
    %v4939 = vpop.f32.mrb[0].mxu0
    %v4940 = vadd.f32 %v4625, %v4939
    %4941 = vmatprep.mubr.bf16.mxu0 %v4596
    %4942 = vmatmul.mubr.bf16.gmra.mrb[0].mxu0 %v4595
    %v4943 = vpop.f32.mrb[0].mxu0
    %v4944 = vadd.f32 %v4621, %v4943
    %v4945 = vpop.f32.mrb[0].mxu0
    %v4946 = vadd.f32 %v4625, %v4945
    %v4947 = vpop.f32.mrb[0].mxu0
    %v4948 = vadd.f32 %v4621, %v4947
    %v4949 = vpop.f32.mrb[0].mxu0
    %v4950 = vadd.f32 %v4625, %v4949
    %4951 = vmatprep.mubr.bf16.mxu0 %v4598
    %4952 = vmatmul.mubr.bf16.gmra.mrb[0].mxu0 %v4597
    %v4953 = vpop.f32.mrb[0].mxu0
    %v4954 = vadd.f32 %v4621, %v4953
    %v4955 = vpop.f32.mrb[0].mxu0
    %v4956 = vadd.f32 %v4625, %v4955
    %v4957 = vpop.f32.mrb[0].mxu0
    %v4958 = vadd.f32 %v4621, %v4957
    %v4959 = vpop.f32.mrb[0].mxu0
    %v4960 = vadd.f32 %v4625, %v4959
    %4961 = vmatprep.mubr.bf16.mxu0 %v4600
    %4962 = vmatmul.mubr.bf16.gmra.mrb[0].mxu0 %v4599
    %v4963 = vpop.f32.mrb[0].mxu0
    %v4964 = vadd.f32 %v4621, %v4963
    %v4965 = vpop.f32.mrb[0].mxu0
    %v4966 = vadd.f32 %v4625, %v4965
    %v4967 = vpop.f32.mrb[0].mxu0
    %v4968 = vadd.f32 %v4621, %v4967
    %v4969 = vpop.f32.mrb[0].mxu0
    %v4970 = vadd.f32 %v4625, %v4969
    %4971 = vmatprep.mubr.bf16.mxu0 %v4602
    %4972 = vmatmul.mubr.bf16.gmra.mrb[0].mxu0 %v4601
    %v4973 = vpop.f32.mrb[0].mxu0
    %v4974 = vadd.f32 %v4621, %v4973
    %v4975 = vpop.f32.mrb[0].mxu0
    %v4976 = vadd.f32 %v4625, %v4975
    %v4977 = vpop.f32.mrb[0].mxu0
    %v4978 = vadd.f32 %v4621, %v4977
    %v4979 = vpop.f32.mrb[0].mxu0
    %v4980 = vadd.f32 %v4625, %v4979
    %4981 = vmatprep.mubr.bf16.mxu0 %v4604
    %4982 = vmatmul.mubr.bf16.gmra.mrb[0].mxu0 %v4603
    %v4983 = vpop.f32.mrb[0].mxu0
    %v4984 = vadd.f32 %v4621, %v4983
    %v4985 = vpop.f32.mrb[0].mxu0
    %v4986 = vadd.f32 %v4625, %v4985
    %v4987 = vpop.f32.mrb[0].mxu0
    %v4988 = vadd.f32 %v4621, %v4987
    %v4989 = vpop.f32.mrb[0].mxu0
    %v4990 = vadd.f32 %v4625, %v4989
    %4991 = vmatprep.mubr.bf16.mxu0 %v4606
    %4992 = vmatmul.mubr.bf16.gmra.mrb[0].mxu0 %v4605
    %v4993 = vpop.f32.mrb[0].mxu0
    %v4994 = vadd.f32 %v4621, %v4993
    %v4995 = vpop.f32.mrb[0].mxu0
    %v4996 = vadd.f32 %v4625, %v4995
    %v4997 = vpop.f32.mrb[0].mxu0
    %v4998 = vadd.f32 %v4621, %v4997
    %v4999 = vpop.f32.mrb[0].mxu0
    %v5000 = vadd.f32 %v4625, %v4999
    %5001 = vmatprep.mubr.bf16.mxu0 %v4608
    %5002 = vmatmul.mubr.bf16.gmra.mrb[0].mxu0 %v4607
    %v5003 = vpop.f32.mrb[0].mxu0
    %v5004 = vadd.f32 %v4621, %v5003
    %v5005 = vpop.f32.mrb[0].mxu0
    %v5006 = vadd.f32 %v4625, %v5005
    %v5007 = vpop.f32.mrb[0].mxu0
    %v5008 = vadd.f32 %v4621, %v5007
    %v5009 = vpop.f32.mrb[0].mxu0
    %v5010 = vadd.f32 %v4625, %v5009
    %5011 = vmatprep.mubr.bf16.mxu0 %v4610
    %5012 = vmatmul.mubr.bf16.gmra.mrb[0].mxu0 %v4609
    %v5013 = vpop.f32.mrb[0].mxu0
    %v5014 = vadd.f32 %v4621, %v5013
    %v5015 = vpop.f32.mrb[0].mxu0
    %v5016 = vadd.f32 %v4625, %v5015
    %v5017 = vpop.f32.mrb[0].mxu0
    %v5018 = vadd.f32 %v4621, %v5017
    %v5019 = vpop.f32.mrb[0].mxu0
    %v5020 = vadd.f32 %v4625, %v5019
    %5021 = vmatprep.mubr.bf16.mxu0 %v4612
    %5022 = vmatmul.mubr.bf16.gmra.mrb[0].mxu0 %v4611
    %v5023 = vpop.f32.mrb[0].mxu0
    %v5024 = vadd.f32 %v4621, %v5023
    %v5025 = vpop.f32.mrb[0].mxu0
    %v5026 = vadd.f32 %v4625, %v5025
    %v5027 = vpop.f32.mrb[0].mxu0
    %v5028 = vadd.f32 %v4621, %v5027
    %v5029 = vpop.f32.mrb[0].mxu0
    %v5030 = vadd.f32 %v4625, %v5029
    %5031 = vmatprep.mubr.bf16.mxu0 %v4614
    %5032 = vmatmul.mubr.bf16.gmra.mrb[0].mxu0 %v4613
    %v5033 = vpop.f32.mrb[0].mxu0
    %v5034 = vadd.f32 %v4621, %v5033
    %v5035 = vpop.f32.mrb[0].mxu0
    %v5036 = vadd.f32 %v4625, %v5035
    %v5037 = vpop.f32.mrb[0].mxu0
    %v5038 = vadd.f32 %v4621, %v5037
    %v5039 = vpop.f32.mrb[0].mxu0
    %v5040 = vadd.f32 %v4625, %v5039
    %5041 = vmatprep.mubr.bf16.mxu0 %v4616
    %5042 = vmatmul.mubr.bf16.gmra.mrb[0].mxu0 %v4615
    %v5043 = vpop.f32.mrb[0].mxu0
    %v5044 = vadd.f32 %v4621, %v5043
    %v5045 = vpop.f32.mrb[0].mxu0
    %v5046 = vadd.f32 %v4625, %v5045
    %v5047 = vpop.f32.mrb[0].mxu0
    %v5048 = vpop.f32.mrb[0].mxu0
    %5049 = vdwg.mxu0
    %5050 = vmatprep.subr.bf16.mxu0 0
    %5051 = vmatpush1.bf16.msra.mxu0 %v4795
    %5052 = vmatprep.subr.bf16.mxu0 0
    %5053 = vmatpush1.bf16.msra.mxu0 %v4798
    %5054 = vmatprep.subr.bf16.mxu0 0
    %5055 = vmatpush1.bf16.msra.mxu0 %v4801
    %5056 = vmatprep.subr.bf16.mxu0 0
    %5057 = vmatpush1.bf16.msra.mxu0 %v4804
    %5058 = vmatprep.subr.bf16.mxu0 0
    %5059 = vmatpush1.bf16.msra.mxu0 %v4807
    %5060 = vmatprep.subr.bf16.mxu0 0
    %5061 = vmatpush1.bf16.msra.mxu0 %v4810
    %5062 = vmatprep.subr.bf16.mxu0 0
    %5063 = vmatpush1.bf16.msra.mxu0 %v4813
    %5064 = vmatprep.subr.bf16.mxu0 0
    %5065 = vmatpush1.bf16.msra.mxu0 %v4816
    %5066 = vmatprep.subr.bf16.mxu0 0
    %5067 = vmatpush1.bf16.msra.mxu0 %v4819
    %5068 = vmatprep.subr.bf16.mxu0 0
    %5069 = vmatpush1.bf16.msra.mxu0 %v4822
    %5070 = vmatprep.subr.bf16.mxu0 0
    %5071 = vmatpush1.bf16.msra.mxu0 %v4825
    %5072 = vmatprep.subr.bf16.mxu0 0
    %5073 = vmatpush1.bf16.msra.mxu0 %v4828
    %5074 = vmatprep.subr.bf16.mxu0 0
    %5075 = vmatpush1.bf16.msra.mxu0 %v4831
    %5076 = vmatprep.subr.bf16.mxu0 0
    %5077 = vmatpush1.bf16.msra.mxu0 %v4834
    %5078 = vmatprep.subr.bf16.mxu0 0
    %5079 = vmatpush1.bf16.msra.mxu0 %v4837
    %5080 = vmatprep.subr.bf16.mxu0 0
    %5081 = vmatpush1.bf16.msra.mxu0 %v4840
    %5082 = vmatprep.mubr.bf16.mxu0 %v4592
    %5083 = vmatmul.mubr.bf16.gmra.mrb[0].mxu0 %v4591
    %v5084 = vpop.f32.mrb[0].mxu0
    %v5085 = vadd.f32 %v4629, %v5084
    %v5086 = vpop.f32.mrb[0].mxu0
    %v5087 = vpop.f32.mrb[0].mxu0
    %v5088 = vadd.f32 %v4629, %v5087
    %v5089 = vpop.f32.mrb[0].mxu0
    %5090 = vmatprep.mubr.bf16.mxu0 %v4594
    %5091 = vmatmul.mubr.bf16.gmra.mrb[0].mxu0 %v4593
    %v5092 = vpop.f32.mrb[0].mxu0
    %v5093 = vadd.f32 %v4629, %v5092
    %v5094 = vpop.f32.mrb[0].mxu0
    %v5095 = vpop.f32.mrb[0].mxu0
    %v5096 = vadd.f32 %v4629, %v5095
    %v5097 = vpop.f32.mrb[0].mxu0
    %5098 = vmatprep.mubr.bf16.mxu0 %v4596
    %5099 = vmatmul.mubr.bf16.gmra.mrb[0].mxu0 %v4595
    %v5100 = vpop.f32.mrb[0].mxu0
    %v5101 = vadd.f32 %v4629, %v5100
    %v5102 = vpop.f32.mrb[0].mxu0
    %v5103 = vpop.f32.mrb[0].mxu0
    %v5104 = vadd.f32 %v4629, %v5103
    %v5105 = vpop.f32.mrb[0].mxu0
    %5106 = vmatprep.mubr.bf16.mxu0 %v4598
    %5107 = vmatmul.mubr.bf16.gmra.mrb[0].mxu0 %v4597
    %v5108 = vpop.f32.mrb[0].mxu0
    %v5109 = vadd.f32 %v4629, %v5108
    %v5110 = vpop.f32.mrb[0].mxu0
    %v5111 = vpop.f32.mrb[0].mxu0
    %v5112 = vadd.f32 %v4629, %v5111
    %v5113 = vpop.f32.mrb[0].mxu0
    %5114 = vmatprep.mubr.bf16.mxu0 %v4600
    %5115 = vmatmul.mubr.bf16.gmra.mrb[0].mxu0 %v4599
    %v5116 = vpop.f32.mrb[0].mxu0
    %v5117 = vadd.f32 %v4629, %v5116
    %v5118 = vpop.f32.mrb[0].mxu0
    %v5119 = vpop.f32.mrb[0].mxu0
    %v5120 = vadd.f32 %v4629, %v5119
    %v5121 = vpop.f32.mrb[0].mxu0
    %5122 = vmatprep.mubr.bf16.mxu0 %v4602
    %5123 = vmatmul.mubr.bf16.gmra.mrb[0].mxu0 %v4601
    %v5124 = vpop.f32.mrb[0].mxu0
    %v5125 = vadd.f32 %v4629, %v5124
    %v5126 = vpop.f32.mrb[0].mxu0
    %v5127 = vpop.f32.mrb[0].mxu0
    %v5128 = vadd.f32 %v4629, %v5127
    %v5129 = vpop.f32.mrb[0].mxu0
    %5130 = vmatprep.mubr.bf16.mxu0 %v4604
    %5131 = vmatmul.mubr.bf16.gmra.mrb[0].mxu0 %v4603
    %v5132 = vpop.f32.mrb[0].mxu0
    %v5133 = vadd.f32 %v4629, %v5132
    %v5134 = vpop.f32.mrb[0].mxu0
    %v5135 = vpop.f32.mrb[0].mxu0
    %v5136 = vadd.f32 %v4629, %v5135
    %v5137 = vpop.f32.mrb[0].mxu0
    %5138 = vmatprep.mubr.bf16.mxu0 %v4606
    %5139 = vmatmul.mubr.bf16.gmra.mrb[0].mxu0 %v4605
    %v5140 = vpop.f32.mrb[0].mxu0
    %v5141 = vadd.f32 %v4629, %v5140
    %v5142 = vpop.f32.mrb[0].mxu0
    %v5143 = vpop.f32.mrb[0].mxu0
    %v5144 = vadd.f32 %v4629, %v5143
    %v5145 = vpop.f32.mrb[0].mxu0
    %5146 = vmatprep.mubr.bf16.mxu0 %v4608
    %5147 = vmatmul.mubr.bf16.gmra.mrb[0].mxu0 %v4607
    %v5148 = vpop.f32.mrb[0].mxu0
    %v5149 = vadd.f32 %v4629, %v5148
    %v5150 = vpop.f32.mrb[0].mxu0
    %v5151 = vpop.f32.mrb[0].mxu0
    %v5152 = vadd.f32 %v4629, %v5151
    %v5153 = vpop.f32.mrb[0].mxu0
    %5154 = vmatprep.mubr.bf16.mxu0 %v4610
    %5155 = vmatmul.mubr.bf16.gmra.mrb[0].mxu0 %v4609
    %v5156 = vpop.f32.mrb[0].mxu0
    %v5157 = vadd.f32 %v4629, %v5156
    %v5158 = vpop.f32.mrb[0].mxu0
    %v5159 = vpop.f32.mrb[0].mxu0
    %v5160 = vadd.f32 %v4629, %v5159
    %v5161 = vpop.f32.mrb[0].mxu0
    %5162 = vmatprep.mubr.bf16.mxu0 %v4612
    %5163 = vmatmul.mubr.bf16.gmra.mrb[0].mxu0 %v4611
    %v5164 = vpop.f32.mrb[0].mxu0
    %v5165 = vadd.f32 %v4629, %v5164
    %v5166 = vpop.f32.mrb[0].mxu0
    %v5167 = vpop.f32.mrb[0].mxu0
    %v5168 = vadd.f32 %v4629, %v5167
    %v5169 = vpop.f32.mrb[0].mxu0
    %5170 = vmatprep.mubr.bf16.mxu0 %v4614
    %5171 = vmatmul.mubr.bf16.gmra.mrb[0].mxu0 %v4613
    %v5172 = vpop.f32.mrb[0].mxu0
    %v5173 = vadd.f32 %v4629, %v5172
    %v5174 = vpop.f32.mrb[0].mxu0
    %v5175 = vpop.f32.mrb[0].mxu0
    %v5176 = vadd.f32 %v4629, %v5175
    %v5177 = vpop.f32.mrb[0].mxu0
    %5178 = vmatprep.mubr.bf16.mxu0 %v4616
    %5179 = vmatmul.mubr.bf16.gmra.mrb[0].mxu0 %v4615
    %v5180 = vpop.f32.mrb[0].mxu0
    %v5181 = vadd.f32 %v4629, %v5180
    %v5182 = vpop.f32.mrb[0].mxu0
    %v5183 = vpop.f32.mrb[0].mxu0
    %v5184 = vpop.f32.mrb[0].mxu0
    %5185 = vdwg.mxu0
    %5186 = vst [vmem:[#allocation8] sm:$0xff] %v4924
    %5187 = vst [vmem:[#allocation8 + $0x8] sm:$0xff] %v4926
    %5188 = vst.msk [vmem:[#allocation8 + $0x10] sm:$0xff] %vm135, %v5085
    %5189 = vst [vmem:[#allocation8 + $0x18] sm:$0xff] %v4928
    %5190 = vst [vmem:[#allocation8 + $0x20] sm:$0xff] %v4930
    %5191 = vst.msk [vmem:[#allocation8 + $0x28] sm:$0xff] %vm135, %v5088
    %5192 = vst [vmem:[#allocation8 + $0x30] sm:$0xff] %v4934
    %5193 = vst [vmem:[#allocation8 + $0x38] sm:$0xff] %v4936
    %5194 = vst.msk [vmem:[#allocation8 + $0x40] sm:$0xff] %vm135, %v5093
    %5195 = vst [vmem:[#allocation8 + $0x48] sm:$0xff] %v4938
    %5196 = vst [vmem:[#allocation8 + $0x50] sm:$0xff] %v4940
    %5197 = vst.msk [vmem:[#allocation8 + $0x58] sm:$0xff] %vm135, %v5096
    %5198 = vst [vmem:[#allocation8 + $0x60] sm:$0xff] %v4944
    %5199 = vst [vmem:[#allocation8 + $0x68] sm:$0xff] %v4946
    %5200 = vst.msk [vmem:[#allocation8 + $0x70] sm:$0xff] %vm135, %v5101
    %5201 = vst [vmem:[#allocation8 + $0x78] sm:$0xff] %v4948
    %5202 = vst [vmem:[#allocation8 + $0x80] sm:$0xff] %v4950
    %5203 = vst.msk [vmem:[#allocation8 + $0x88] sm:$0xff] %vm135, %v5104
    %5204 = vst [vmem:[#allocation8 + $0x90] sm:$0xff] %v4954
    %5205 = vst [vmem:[#allocation8 + $0x98] sm:$0xff] %v4956
    %5206 = vst.msk [vmem:[#allocation8 + $0xa0] sm:$0xff] %vm135, %v5109
    %5207 = vst [vmem:[#allocation8 + $0xa8] sm:$0xff] %v4958
    %5208 = vst [vmem:[#allocation8 + $0xb0] sm:$0xff] %v4960
    %5209 = vst.msk [vmem:[#allocation8 + $0xb8] sm:$0xff] %vm135, %v5112
    %5210 = vst [vmem:[#allocation8 + $0xc0] sm:$0xff] %v4964
    %5211 = vst [vmem:[#allocation8 + $0xc8] sm:$0xff] %v4966
    %5212 = vst.msk [vmem:[#allocation8 + $0xd0] sm:$0xff] %vm135, %v5117
    %5213 = vst [vmem:[#allocation8 + $0xd8] sm:$0xff] %v4968
    %5214 = vst [vmem:[#allocation8 + $0xe0] sm:$0xff] %v4970
    %5215 = vst.msk [vmem:[#allocation8 + $0xe8] sm:$0xff] %vm135, %v5120
    %5216 = vst [vmem:[#allocation8 + $0xf0] sm:$0xff] %v4974
    %5217 = vst [vmem:[#allocation8 + $0xf8] sm:$0xff] %v4976
    %5218 = vst.msk [vmem:[#allocation8 + $0x100] sm:$0xff] %vm135, %v5125
    %5219 = vst [vmem:[#allocation8 + $0x108] sm:$0xff] %v4978
    %5220 = vst [vmem:[#allocation8 + $0x110] sm:$0xff] %v4980
    %5221 = vst.msk [vmem:[#allocation8 + $0x118] sm:$0xff] %vm135, %v5128
    %5222 = vst [vmem:[#allocation8 + $0x120] sm:$0xff] %v4984
    %5223 = vst [vmem:[#allocation8 + $0x128] sm:$0xff] %v4986
    %5224 = vst.msk [vmem:[#allocation8 + $0x130] sm:$0xff] %vm135, %v5133
    %5225 = vst [vmem:[#allocation8 + $0x138] sm:$0xff] %v4988
    %5226 = vst [vmem:[#allocation8 + $0x140] sm:$0xff] %v4990
    %5227 = vst.msk [vmem:[#allocation8 + $0x148] sm:$0xff] %vm135, %v5136
    %5228 = vst [vmem:[#allocation8 + $0x150] sm:$0xff] %v4994
    %5229 = vst [vmem:[#allocation8 + $0x158] sm:$0xff] %v4996
    %5230 = vst.msk [vmem:[#allocation8 + $0x160] sm:$0xff] %vm135, %v5141
    %5231 = vst [vmem:[#allocation8 + $0x168] sm:$0xff] %v4998
    %5232 = vst [vmem:[#allocation8 + $0x170] sm:$0xff] %v5000
    %5233 = vst.msk [vmem:[#allocation8 + $0x178] sm:$0xff] %vm135, %v5144
    %5234 = vst [vmem:[#allocation8 + $0x180] sm:$0xff] %v5004
    %5235 = vst [vmem:[#allocation8 + $0x188] sm:$0xff] %v5006
    %5236 = vst.msk [vmem:[#allocation8 + $0x190] sm:$0xff] %vm135, %v5149
    %5237 = vst [vmem:[#allocation8 + $0x198] sm:$0xff] %v5008
    %5238 = vst [vmem:[#allocation8 + $0x1a0] sm:$0xff] %v5010
    %5239 = vst.msk [vmem:[#allocation8 + $0x1a8] sm:$0xff] %vm135, %v5152
    %5240 = vst [vmem:[#allocation8 + $0x1b0] sm:$0xff] %v5014
    %5241 = vst [vmem:[#allocation8 + $0x1b8] sm:$0xff] %v5016
    %5242 = vst.msk [vmem:[#allocation8 + $0x1c0] sm:$0xff] %vm135, %v5157
    %5243 = vst [vmem:[#allocation8 + $0x1c8] sm:$0xff] %v5018
    %5244 = vst [vmem:[#allocation8 + $0x1d0] sm:$0xff] %v5020
    %5245 = vst.msk [vmem:[#allocation8 + $0x1d8] sm:$0xff] %vm135, %v5160
    %5246 = vst [vmem:[#allocation8 + $0x1e0] sm:$0xff] %v5024
    %5247 = vst [vmem:[#allocation8 + $0x1e8] sm:$0xff] %v5026
    %5248 = vst.msk [vmem:[#allocation8 + $0x1f0] sm:$0xff] %vm135, %v5165
    %5249 = vst [vmem:[#allocation8 + $0x1f8] sm:$0xff] %v5028
    %5250 = vst [vmem:[#allocation8 + $0x200] sm:$0xff] %v5030
    %5251 = vst.msk [vmem:[#allocation8 + $0x208] sm:$0xff] %vm135, %v5168
    %5252 = vst [vmem:[#allocation8 + $0x210] sm:$0xff] %v5034
    %5253 = vst [vmem:[#allocation8 + $0x218] sm:$0xff] %v5036
    %5254 = vst.msk [vmem:[#allocation8 + $0x220] sm:$0xff] %vm135, %v5173
    %5255 = vst [vmem:[#allocation8 + $0x228] sm:$0xff] %v5038
    %5256 = vst [vmem:[#allocation8 + $0x230] sm:$0xff] %v5040
    %5257 = vst.msk [vmem:[#allocation8 + $0x238] sm:$0xff] %vm135, %v5176
    %5258 = vst [vmem:[#allocation8 + $0x240] sm:$0xff] %v5044
    %5259 = vst [vmem:[#allocation8 + $0x248] sm:$0xff] %v5046
    %5260 = vst.msk [vmem:[#allocation8 + $0x250] sm:$0xff] %vm135, %v5181
    // Predicated region
    $region26: #{_net_forward_padded.1} parent=1 // pred_check
      _
    $region27: #{_net_forward_padded.1} parent=1 // pred_check_branch
      %5262 = sbr.rel (0) target = $region29
    $region28: #{_net_forward_padded.1} parent=1 // pred_region
      %s5264 = ssub.s32 9600, 9600
      %5265 = vsyncadd [#allocation4], %s5264
      %s5266 = sshll.u32 [#allocation8], 4
      %s5267 = int_to_ptr.vmem [resolvable:$true] %s5266
      %5272 = dma.vmem_to_hbm [thread:$0]  %s5267, 9600, %s3, [#allocation4], 384, 384, 24
    $region29: #{_net_forward_padded.1} parent=1 // pred_fallthru
      _
    // Predicated region
    $region30: #{_net_forward_padded.1} parent=1 // pred_check
      _
    $region31: #{_net_forward_padded.1} parent=1 // pred_check_branch
      %5274 = sbr.rel (0) target = $region33
    $region32: #{_net_forward_padded.1} parent=1 // pred_region
      %s5276 = ssub.s32 3200, 3200
      %5277 = vsyncadd [#allocation10], %s5276
      %s5278 = sshll.u32 [#allocation9], 4
      %s5279 = int_to_ptr.vmem [resolvable:$true] %s5278
      %5284 = dma.vmem_to_hbm [thread:$0]  %s5279, 3200, %s4, [#allocation10], 128, 128, 8
    $region33: #{_net_forward_padded.1} parent=1 // pred_fallthru
      _
    // Predicated region
    $region34: #{_net_forward_padded.1} parent=1 // pred_check
      _
    $region35: #{_net_forward_padded.1} parent=1 // pred_check_branch
      %5286 = sbr.rel (0) target = $region37
    $region36: #{_net_forward_padded.1} parent=1 // pred_region
      %5287 = dma.done [#allocation4], 9600
    $region37: #{_net_forward_padded.1} parent=1 // pred_fallthru
      _
    // Predicated region
    $region38: #{_net_forward_padded.1} parent=1 // pred_check
      _
    $region39: #{_net_forward_padded.1} parent=1 // pred_check_branch
      %5289 = sbr.rel (0) target = $region41
    $region40: #{_net_forward_padded.1} parent=1 // pred_region
      %5290 = dma.done [#allocation10], 3200
    $region41: #{_net_forward_padded.1} parent=1 // pred_fallthru
      _
    %5291 = vsyncpa [#allocation3], 1
    %5292 = vsyncpa [#allocation6], 1
    %5293 = vsyncpa [#allocation4], 1
    %5294 = vsyncpa [#allocation10], 1

</llo_original>
